<compile_context>
chip_gen: v7x
topology: tpu7x:2x2x1
jax: 0.10.0
libtpu: 0.0.40
codegen_flags: <defaults>
</compile_context>

<pallas_src>
import functools

import jax
import jax.numpy as jnp
from jax import lax
from jax.experimental import pallas as pl
from jax.experimental.pallas import tpu as pltpu

LN_EPS = 1e-5  # nn.LayerNorm default eps

# Tile targets: 256-aligned for the v6e/v7x 2x256x256 MXU (also multiples of 128,
# so they tile the v5e 4x128x128 MXU).  Helpers fall back to smaller / full-extent
# blocks when a dimension does not divide (e.g. the toy shapes below).
TM, TN, TK = 256, 256, 512
VMEM_LIMIT = 48 * 1024 * 1024      # headroom under v7x's 64 MiB physical VMEM
LN_BLOCK_BYTES = 6 * 1024 * 1024   # per-block cap for the full-E add+LN kernel


def _tile_lane(dim, target):
    """Block size for a last (lane) dim: multiple of 128, else the full dim."""
    t = target
    while t >= 128:
        if dim % t == 0:
            return t
        t //= 2
    return dim


def _tile_sublane(dim, target):
    """Block size for a second-to-last (sublane) dim: multiple of 8, else full dim."""
    t = target
    while t >= 8:
        if dim % t == 0:
            return t
        t //= 2
    return dim


# ---------------------------------------------------------------------------
# Tiled matmul + bias (+ optional ReLU)
# ---------------------------------------------------------------------------
def _mm_bias_kernel(x_ref, w_ref, b_ref, o_ref, acc_ref, *, relu):
    @pl.when(pl.program_id(2) == 0)
    def _():
        acc_ref[...] = jnp.zeros_like(acc_ref)

    acc_ref[...] += jnp.dot(x_ref[...], w_ref[...],
                            preferred_element_type=jnp.float32)

    @pl.when(pl.program_id(2) == pl.num_programs(2) - 1)
    def _():
        y = acc_ref[...] + b_ref[...]
        if relu:
            y = jnp.maximum(y, 0.0)
        o_ref[...] = y.astype(o_ref.dtype)


def matmul_bias(x, w_t, b, *, relu=False, out_dtype=jnp.float32):
    """(M,K) @ (K,N) + b.  bf16 MXU operands, f32 K-reduction accumulator.
    out_dtype=bf16 for intermediates consumed only by a later bf16 matmul."""
    M, K = x.shape
    N = w_t.shape[1]
    tm, tn, tk = _tile_sublane(M, TM), _tile_lane(N, TN), _tile_lane(K, TK)
    grid = (M // tm, N // tn, K // tk)
    out_bytes = 2 if out_dtype == jnp.bfloat16 else 4
    flops = 2 * M * N * K
    bytes_accessed = (M * K + K * N) * 2 + M * N * out_bytes + N * 4
    return pl.pallas_call(
        functools.partial(_mm_bias_kernel, relu=relu),
        out_shape=jax.ShapeDtypeStruct((M, N), out_dtype),
        grid=grid,
        in_specs=[
            pl.BlockSpec((tm, tk), lambda i, j, k: (i, k)),
            pl.BlockSpec((tk, tn), lambda i, j, k: (k, j)),
            pl.BlockSpec((1, tn), lambda i, j, k: (0, j)),
        ],
        out_specs=pl.BlockSpec((tm, tn), lambda i, j, k: (i, j)),
        scratch_shapes=[pltpu.VMEM((tm, tn), jnp.float32)],
        compiler_params=pltpu.CompilerParams(
            dimension_semantics=("parallel", "parallel", "arbitrary"),
            vmem_limit_bytes=VMEM_LIMIT),
        cost_estimate=pl.CostEstimate(flops=flops, transcendentals=0,
                                      bytes_accessed=bytes_accessed),
    )(x.astype(jnp.bfloat16), w_t.astype(jnp.bfloat16),
      b.reshape(1, N).astype(jnp.float32))


# ---------------------------------------------------------------------------
# Tiled matmul + bias + residual add + LayerNorm fused in the epilogue
# ---------------------------------------------------------------------------
def _mm_add_ln_kernel(x_ref, w_ref, b_ref, r_ref, g_ref, bb_ref, o_ref, acc_ref):
    @pl.when(pl.program_id(1) == 0)
    def _():
        acc_ref[...] = jnp.zeros_like(acc_ref)

    acc_ref[...] += jnp.dot(x_ref[...], w_ref[...],
                            preferred_element_type=jnp.float32)

    @pl.when(pl.program_id(1) == pl.num_programs(1) - 1)
    def _():
        z = acc_ref[...] + b_ref[...] + r_ref[...]          # f32
        mu = jnp.mean(z, axis=-1, keepdims=True)
        var = jnp.mean(jnp.square(z - mu), axis=-1, keepdims=True)
        zn = (z - mu) * lax.rsqrt(var + LN_EPS)
        o_ref[...] = (zn * g_ref[...] + bb_ref[...]).astype(o_ref.dtype)


def matmul_bias_add_ln(x, w_t, b, residual, gamma, beta):
    """LayerNorm(residual + (x @ w_t + b)) — add+LN fused into the matmul epilogue.
    Output rows (full width E) stay resident in the accumulator so LN stats are exact."""
    M, K = x.shape
    E = w_t.shape[1]
    # VMEM-aware tile capping: the weight block is (tk, E) bf16, the residual /
    # accumulator / output blocks are (tm, E) f32.  Shrink targets so each stays
    # under LN_BLOCK_BYTES even for very large d_model (e.g. 14848).
    tk_target = TK
    while tk_target > 128 and tk_target * E * 2 > LN_BLOCK_BYTES:
        tk_target //= 2
    tm_target = TM
    while tm_target > 8 and tm_target * E * 4 > LN_BLOCK_BYTES:
        tm_target //= 2
    tm, tk = _tile_sublane(M, tm_target), _tile_lane(K, tk_target)
    grid = (M // tm, K // tk)
    flops = 2 * M * E * K + 10 * M * E
    bytes_accessed = (M * K + K * E) * 2 + (2 * M * E + 3 * E) * 4
    return pl.pallas_call(
        _mm_add_ln_kernel,
        out_shape=jax.ShapeDtypeStruct((M, E), jnp.float32),
        grid=grid,
        in_specs=[
            pl.BlockSpec((tm, tk), lambda i, k: (i, k)),
            pl.BlockSpec((tk, E), lambda i, k: (k, 0)),
            pl.BlockSpec((1, E), lambda i, k: (0, 0)),
            pl.BlockSpec((tm, E), lambda i, k: (i, 0)),
            pl.BlockSpec((1, E), lambda i, k: (0, 0)),
            pl.BlockSpec((1, E), lambda i, k: (0, 0)),
        ],
        out_specs=pl.BlockSpec((tm, E), lambda i, k: (i, 0)),
        scratch_shapes=[pltpu.VMEM((tm, E), jnp.float32)],
        compiler_params=pltpu.CompilerParams(
            dimension_semantics=("parallel", "arbitrary"),
            vmem_limit_bytes=VMEM_LIMIT),
        cost_estimate=pl.CostEstimate(flops=flops, transcendentals=M,
                                      bytes_accessed=bytes_accessed),
    )(x.astype(jnp.bfloat16), w_t.astype(jnp.bfloat16),
      b.reshape(1, E).astype(jnp.float32),
      residual.astype(jnp.float32),
      gamma.reshape(1, E).astype(jnp.float32),
      beta.reshape(1, E).astype(jnp.float32))


# ---------------------------------------------------------------------------
# Attention: all heads of one batch element per grid step
# ---------------------------------------------------------------------------
def _attn_core(q_ref, k_ref, v_ref, scale):
    # blocks are (1, H, L/S, D) -> drop the leading batch dim
    q = (q_ref[0].astype(jnp.float32) * scale).astype(jnp.bfloat16)  # scale folded into Q
    k = k_ref[0]
    v = v_ref[0]
    # contract last dims (no explicit K transpose -> no XLU transpose), batched over heads
    s = jnp.einsum("hqd,hkd->hqk", q, k, preferred_element_type=jnp.float32)
    m = jnp.max(s, axis=-1, keepdims=True)
    e = jnp.exp(s - m)
    denom = jnp.sum(e, axis=-1, keepdims=True)
    p = e * pl.reciprocal(denom, approx=True)        # divide on the EUP slot
    o = jnp.einsum("hqk,hkd->hqd", p.astype(jnp.bfloat16), v,
                   preferred_element_type=jnp.float32)
    return o, p


def _attn_kernel(q_ref, k_ref, v_ref, o_ref, *, scale):
    o, _ = _attn_core(q_ref, k_ref, v_ref, scale)
    o_ref[0] = o.astype(o_ref.dtype)


def _attn_weights_kernel(q_ref, k_ref, v_ref, o_ref, w_ref, *, scale):
    o, p = _attn_core(q_ref, k_ref, v_ref, scale)
    o_ref[0] = o.astype(o_ref.dtype)
    w_ref[0] = jnp.mean(p, axis=0)                   # head-average in-kernel (writeback / H)


def batched_attention(q, k, v, scale, *, need_weights):
    """q: (N, H, L, D); k, v: (N, H, S, D). Grid over the batch axis (parallel).
    Attention output is written bf16 (feeds a bf16 out-proj matmul next).
    need_weights=False writes no probabilities at all (self-attn);
    need_weights=True writes only the head-averaged (N, L, S) f32 tensor."""
    N, H, L, D = q.shape
    S = k.shape[2]
    q = q.astype(jnp.bfloat16)
    k = k.astype(jnp.bfloat16)
    v = v.astype(jnp.bfloat16)

    flops = 2 * N * H * L * S * D * 2
    out_shape = jax.ShapeDtypeStruct((N, H, L, D), jnp.bfloat16)
    out_specs = pl.BlockSpec((1, H, L, D), lambda b: (b, 0, 0, 0))
    if need_weights:
        out_shape = (out_shape, jax.ShapeDtypeStruct((N, L, S), jnp.float32))
        out_specs = (out_specs, pl.BlockSpec((1, L, S), lambda b: (b, 0, 0)))
        kernel = _attn_weights_kernel
        bytes_accessed = (N * H * (L + 2 * S) * D) * 2 + N * H * L * D * 2 + N * L * S * 4
    else:
        kernel = _attn_kernel
        bytes_accessed = (N * H * (L + 2 * S) * D) * 2 + N * H * L * D * 2

    return pl.pallas_call(
        functools.partial(kernel, scale=scale),
        out_shape=out_shape,
        grid=(N,),
        in_specs=[
            pl.BlockSpec((1, H, L, D), lambda b: (b, 0, 0, 0)),
            pl.BlockSpec((1, H, S, D), lambda b: (b, 0, 0, 0)),
            pl.BlockSpec((1, H, S, D), lambda b: (b, 0, 0, 0)),
        ],
        out_specs=out_specs,
        compiler_params=pltpu.CompilerParams(
            dimension_semantics=("parallel",),
            vmem_limit_bytes=VMEM_LIMIT),
        cost_estimate=pl.CostEstimate(flops=flops, transcendentals=N * H * L * S,
                                      bytes_accessed=bytes_accessed),
    )(q, k, v)


# ---------------------------------------------------------------------------
# Module forward (glue in plain JAX; all heavy math in the Pallas kernels above)
# ---------------------------------------------------------------------------
def self_attention_block(x, p, num_heads, gamma, beta):
    """attn1(x, x, x) + residual + LayerNorm.  Fused QKV projection (bf16 output);
    out_proj fused with add+LN; no attention-probability writeback."""
    L, N, E = x.shape
    hd = E // num_heads
    x2d = x.reshape(L * N, E)

    qkv = matmul_bias(x2d, p["w_qkv_t"], p["b_qkv"],
                      out_dtype=jnp.bfloat16)                            # (L*N, 3E) bf16
    qkv = qkv.reshape(L, N, 3, num_heads, hd).transpose(2, 1, 3, 0, 4)   # (3, N, H, L, hd)
    attn = batched_attention(qkv[0], qkv[1], qkv[2], float(hd) ** -0.5,
                             need_weights=False)                         # (N, H, L, hd) bf16
    attn2d = attn.transpose(2, 0, 1, 3).reshape(L * N, E)
    return matmul_bias_add_ln(attn2d, p["w_out_t"], p["b_out"], x2d, gamma, beta)


def cross_attention_block(out1_2d, enc, p, num_heads, gamma, beta, L, N):
    """attn2(out1, enc, enc) + residual + LayerNorm.  Fused KV projection (bf16);
    head-averaged attention weights computed in-kernel; out_proj fused with add+LN."""
    S, _, E = enc.shape
    hd = E // num_heads
    enc2d = enc.reshape(S * N, E)

    q = matmul_bias(out1_2d, p["w_q_t"], p["b_q"],
                    out_dtype=jnp.bfloat16)                              # (L*N, E)  bf16
    kv = matmul_bias(enc2d, p["w_kv_t"], p["b_kv"],
                     out_dtype=jnp.bfloat16)                             # (S*N, 2E) bf16

    q = q.reshape(L, N, num_heads, hd).transpose(1, 2, 0, 3)             # (N, H, L, hd)
    kv = kv.reshape(S, N, 2, num_heads, hd).transpose(2, 1, 3, 0, 4)     # (2, N, H, S, hd)

    attn, w_avg = batched_attention(q, kv[0], kv[1], float(hd) ** -0.5,
                                    need_weights=True)                   # (N,H,L,hd), (N,L,S)
    attn2d = attn.transpose(2, 0, 1, 3).reshape(L * N, E)
    out = matmul_bias_add_ln(attn2d, p["w_out_t"], p["b_out"], out1_2d, gamma, beta)
    return out, w_avg


def transformer_decoder_layer(x, encoder_output, mem, params, num_heads):
    L, N, E = x.shape

    out1 = self_attention_block(x, params["attn1"], num_heads,
                                params["norm1_w"], params["norm1_b"])    # (L*N, E) f32
    out2, attn_weights = cross_attention_block(out1, encoder_output,
                                               params["attn2"], num_heads,
                                               params["norm2_w"], params["norm2_b"],
                                               L, N)                     # (L*N, E), (N, L, S)
    h = matmul_bias(out2, params["ffn_w1_t"], params["ffn_b1"], relu=True,
                    out_dtype=jnp.bfloat16)                              # (L*N, 4E) bf16
    out3 = matmul_bias_add_ln(h, params["ffn_w2_t"], params["ffn_b2"], out2,
                              params["norm3_w"], params["norm3_b"])
    out3 = out3.reshape(L, N, E)
    mem = jnp.concatenate([mem, out3], axis=1)
    return out3, mem, attn_weights


def prepare_params(raw):
    """Torch-layout f32 params -> kernel-ready: weights pre-transposed to (K, N)
    and stored bf16 at rest (MXU operands); biases / LN affine kept f32."""
    def prep_mha(p, fuse_qkv):
        w, b = p["in_proj_weight"], p["in_proj_bias"]   # (3E, E), (3E,)
        E = w.shape[1]
        out = {"w_out_t": p["out_proj_weight"].T.astype(jnp.bfloat16),
               "b_out": p["out_proj_bias"]}
        if fuse_qkv:            # self-attn: q = k = v source -> fuse all three
            out["w_qkv_t"] = w.T.astype(jnp.bfloat16)          # (E, 3E)
            out["b_qkv"] = b
        else:                   # cross-attn: fuse K/V (same source), Q separate
            out["w_q_t"] = w[:E].T.astype(jnp.bfloat16)        # (E, E)
            out["b_q"] = b[:E]
            out["w_kv_t"] = w[E:].T.astype(jnp.bfloat16)       # (E, 2E)
            out["b_kv"] = b[E:]
        return out

    return {
        "attn1": prep_mha(raw["attn1"], fuse_qkv=True),
        "attn2": prep_mha(raw["attn2"], fuse_qkv=False),
        "ffn_w1_t": raw["ffn_w1"].T.astype(jnp.bfloat16),
        "ffn_b1": raw["ffn_b1"],
        "ffn_w2_t": raw["ffn_w2"].T.astype(jnp.bfloat16),
        "ffn_b2": raw["ffn_b2"],
        "norm1_w": raw["norm1_w"], "norm1_b": raw["norm1_b"],
        "norm2_w": raw["norm2_w"], "norm2_b": raw["norm2_b"],
        "norm3_w": raw["norm3_w"], "norm3_b": raw["norm3_b"],
    }


# ---------------------------------------------------------------------------
# Deterministic parameter init + run
# ---------------------------------------------------------------------------
if __name__ == "__main__":
    # Small shapes consistent with the module (original d_model=14848, num_heads=64).
    L, S, N, E, H = 8, 8, 2, 128, 4      # head_dim = 32
    M_MEM = 2

    key = jax.random.PRNGKey(0)
    keys = jax.random.split(key, 16)

    def mha_params(k):
        k1, k2, k3, k4 = jax.random.split(k, 4)
        return {
            "in_proj_weight": 0.02 * jax.random.normal(k1, (3 * E, E), jnp.float32),
            "in_proj_bias":   0.02 * jax.random.normal(k2, (3 * E,), jnp.float32),
            "out_proj_weight": 0.02 * jax.random.normal(k3, (E, E), jnp.float32),
            "out_proj_bias":   0.02 * jax.random.normal(k4, (E,), jnp.float32),
        }

    raw_params = {
        "attn1": mha_params(keys[0]),
        "attn2": mha_params(keys[1]),
        "ffn_w1": 0.02 * jax.random.normal(keys[2], (4 * E, E), jnp.float32),   # torch (out, in)
        "ffn_b1": 0.02 * jax.random.normal(keys[3], (4 * E,), jnp.float32),
        "ffn_w2": 0.02 * jax.random.normal(keys[4], (E, 4 * E), jnp.float32),
        "ffn_b2": 0.02 * jax.random.normal(keys[5], (E,), jnp.float32),
        "norm1_w": jnp.ones((E,), jnp.float32), "norm1_b": jnp.zeros((E,), jnp.float32),
        "norm2_w": jnp.ones((E,), jnp.float32), "norm2_b": jnp.zeros((E,), jnp.float32),
        "norm3_w": jnp.ones((E,), jnp.float32), "norm3_b": jnp.zeros((E,), jnp.float32),
    }
    params = prepare_params(raw_params)

    x = jax.random.normal(keys[6], (L, N, E), jnp.float32)
    encoder_output = jax.random.normal(keys[7], (S, N, E), jnp.float32)
    mem = jax.random.normal(keys[8], (L, M_MEM, E), jnp.float32)

    fwd = jax.jit(functools.partial(transformer_decoder_layer, num_heads=H))
    out3, mem_out, attn_w = fwd(x, encoder_output, mem, params)
    jax.block_until_ready((out3, mem_out, attn_w))

    assert out3.shape == (L, N, E)
    assert mem_out.shape == (L, M_MEM + N, E)
    assert attn_w.shape == (N, L, S)
    assert bool(jnp.all(jnp.isfinite(out3))) and bool(jnp.all(jnp.isfinite(attn_w)))
    print("KERNEL_OK")
</pallas_src>

<mosaic_0001>
module attributes {stable_mosaic.version = 11 : i64} {
  func.func @_mm_bias_kernel(%arg0: i32, %arg1: i32, %arg2: i32, %arg3: memref<16x128xbf16, #tpu.memory_space<vmem>>, %arg4: memref<128x128xbf16, #tpu.memory_space<vmem>>, %arg5: memref<1x128xf32, #tpu.memory_space<vmem>>, %arg6: memref<16x128xbf16, #tpu.memory_space<vmem>>, %arg7: memref<16x128xf32, #tpu.memory_space<vmem>>) attributes {dimension_semantics = [#tpu.dimension_semantics<parallel>, #tpu.dimension_semantics<parallel>, #tpu.dimension_semantics<arbitrary>], iteration_bounds = array<i64: 1, 3, 1>, scalar_prefetch = 0 : i64, scratch_operands = 1 : i64, tpu.core_type = #tpu.core_type<tc>, window_params = [{transform_indices = @transform_0, window_bounds = array<i64: 16, 128>}, {transform_indices = @transform_1, window_bounds = array<i64: 128, 128>}, {transform_indices = @transform_2, window_bounds = array<i64: 1, 128>}, {transform_indices = @transform_3, window_bounds = array<i64: 16, 128>}]} {
    %c0_i32 = arith.constant 0 : i32
    %0 = arith.cmpi eq, %arg2, %c0_i32 : i32
    %1 = arith.extui %0 : i1 to i32
    %c0_i32_0 = arith.constant 0 : i32
    %2 = arith.cmpi ne, %1, %c0_i32_0 : i32
    scf.if %2 {
      %cst_10 = arith.constant 0.000000e+00 : f32
      %12 = vector.broadcast %cst_10 : f32 to vector<16x128xf32>
      %c0_11 = arith.constant 0 : index
      %c0_12 = arith.constant 0 : index
      %13 = vector.load %arg7[%c0_11, %c0_12] : memref<16x128xf32, #tpu.memory_space<vmem>>, vector<16x128xf32>
      tpu.vector_store %arg7[%c0_11, %c0_12], %12 {strides = array<i32>} : memref<16x128xf32, #tpu.memory_space<vmem>>, vector<16x128xf32>,
    } else {
    }
    %c0 = arith.constant 0 : index
    %c0_1 = arith.constant 0 : index
    %3 = vector.load %arg7[%c0, %c0_1] : memref<16x128xf32, #tpu.memory_space<vmem>>, vector<16x128xf32>
    %c0_2 = arith.constant 0 : index
    %c0_3 = arith.constant 0 : index
    %4 = vector.load %arg3[%c0_2, %c0_3] : memref<16x128xbf16, #tpu.memory_space<vmem>>, vector<16x128xbf16>
    %c0_4 = arith.constant 0 : index
    %c0_5 = arith.constant 0 : index
    %5 = vector.load %arg4[%c0_4, %c0_5] : memref<128x128xbf16, #tpu.memory_space<vmem>>, vector<128x128xbf16>
    %cst = arith.constant dense<0.000000e+00> : vector<16x128xf32>
    %6 = tpu.matmul %4, %5, %cst {dimension_numbers = #tpu.dot_dimension_numbers<[1], [0], [0], [1], [0, 0, 1, 1], [], []>} : vector<16x128xbf16>, vector<128x128xbf16>, vector<16x128xf32> -> vector<16x128xf32>
    %7 = arith.addf %3, %6 : vector<16x128xf32>
    %c0_6 = arith.constant 0 : index
    %c0_7 = arith.constant 0 : index
    %8 = vector.load %arg7[%c0_6, %c0_7] : memref<16x128xf32, #tpu.memory_space<vmem>>, vector<16x128xf32>
    tpu.vector_store %arg7[%c0_6, %c0_7], %7 {strides = array<i32>} : memref<16x128xf32, #tpu.memory_space<vmem>>, vector<16x128xf32>,
    %c0_i32_8 = arith.constant 0 : i32
    %9 = arith.cmpi eq, %arg2, %c0_i32_8 : i32
    %10 = arith.extui %9 : i1 to i32
    %c0_i32_9 = arith.constant 0 : i32
    %11 = arith.cmpi ne, %10, %c0_i32_9 : i32
    scf.if %11 {
      %c0_10 = arith.constant 0 : index
      %c0_11 = arith.constant 0 : index
      %12 = vector.load %arg7[%c0_10, %c0_11] : memref<16x128xf32, #tpu.memory_space<vmem>>, vector<16x128xf32>
      %c0_12 = arith.constant 0 : index
      %c0_13 = arith.constant 0 : index
      %13 = vector.load %arg5[%c0_12, %c0_13] : memref<1x128xf32, #tpu.memory_space<vmem>>, vector<1x128xf32>
      %14 = vector.broadcast %13 : vector<1x128xf32> to vector<16x128xf32>
      %15 = arith.addf %12, %14 : vector<16x128xf32>
      %16 = arith.truncf %15 : vector<16x128xf32> to vector<16x128xbf16>
      %c0_14 = arith.constant 0 : index
      %c0_15 = arith.constant 0 : index
      %17 = vector.load %arg6[%c0_14, %c0_15] : memref<16x128xbf16, #tpu.memory_space<vmem>>, vector<16x128xbf16>
      tpu.vector_store %arg6[%c0_14, %c0_15], %16 {strides = array<i32>} : memref<16x128xbf16, #tpu.memory_space<vmem>>, vector<16x128xbf16>,
    } else {
    }
    return
  }
  func.func @transform_0(%arg0: i32, %arg1: i32, %arg2: i32) -> (i32, i32) {
    %c0_i32 = arith.constant 0 : i32
    return %arg0, %arg2 : i32, i32
  }
  func.func @transform_1(%arg0: i32, %arg1: i32, %arg2: i32) -> (i32, i32) {
    %c0_i32 = arith.constant 0 : i32
    return %arg2, %arg1 : i32, i32
  }
  func.func @transform_2(%arg0: i32, %arg1: i32, %arg2: i32) -> (i32, i32) {
    %c0_i32 = arith.constant 0 : i32
    %c0_i32_0 = arith.constant 0 : i32
    return %c0_i32, %arg1 : i32, i32
  }
  func.func @transform_3(%arg0: i32, %arg1: i32, %arg2: i32) -> (i32, i32) {
    %c0_i32 = arith.constant 0 : i32
    return %arg0, %arg1 : i32, i32
  }
}

module attributes {stable_mosaic.version = 11 : i64} {
  func.func @_attn_kernel(%arg0: i32, %arg1: memref<1x4x8x32xbf16, #tpu.memory_space<vmem>>, %arg2: memref<1x4x8x32xbf16, #tpu.memory_space<vmem>>, %arg3: memref<1x4x8x32xbf16, #tpu.memory_space<vmem>>, %arg4: memref<1x4x8x32xbf16, #tpu.memory_space<vmem>>) attributes {dimension_semantics = [#tpu.dimension_semantics<parallel>], iteration_bounds = array<i64: 2>, scalar_prefetch = 0 : i64, scratch_operands = 0 : i64, tpu.core_type = #tpu.core_type<tc>, window_params = [{transform_indices = @transform_0, window_bounds = array<i64: 1, 4, 8, 32>}, {transform_indices = @transform_1, window_bounds = array<i64: 1, 4, 8, 32>}, {transform_indices = @transform_2, window_bounds = array<i64: 1, 4, 8, 32>}, {transform_indices = @transform_3, window_bounds = array<i64: 1, 4, 8, 32>}]} {
    %c0 = arith.constant 0 : index
    %c0_0 = arith.constant 0 : index
    %c0_1 = arith.constant 0 : index
    %c0_2 = arith.constant 0 : index
    %0 = vector.load %arg1[%c0, %c0_0, %c0_1, %c0_2] : memref<1x4x8x32xbf16, #tpu.memory_space<vmem>>, vector<1x4x8x32xbf16>
    %1 = vector.shape_cast %0 : vector<1x4x8x32xbf16> to vector<4x8x32xbf16>
    %2 = arith.extf %1 : vector<4x8x32xbf16> to vector<4x8x32xf32>
    %cst = arith.constant 0.176776692 : f32
    %3 = vector.broadcast %cst : f32 to vector<4x8x32xf32>
    %4 = arith.mulf %2, %3 : vector<4x8x32xf32>
    %5 = arith.truncf %4 : vector<4x8x32xf32> to vector<4x8x32xbf16>
    %c0_3 = arith.constant 0 : index
    %c0_4 = arith.constant 0 : index
    %c0_5 = arith.constant 0 : index
    %c0_6 = arith.constant 0 : index
    %6 = vector.load %arg2[%c0_3, %c0_4, %c0_5, %c0_6] : memref<1x4x8x32xbf16, #tpu.memory_space<vmem>>, vector<1x4x8x32xbf16>
    %7 = vector.shape_cast %6 : vector<1x4x8x32xbf16> to vector<4x8x32xbf16>
    %c0_7 = arith.constant 0 : index
    %c0_8 = arith.constant 0 : index
    %c0_9 = arith.constant 0 : index
    %c0_10 = arith.constant 0 : index
    %8 = vector.load %arg3[%c0_7, %c0_8, %c0_9, %c0_10] : memref<1x4x8x32xbf16, #tpu.memory_space<vmem>>, vector<1x4x8x32xbf16>
    %9 = vector.shape_cast %8 : vector<1x4x8x32xbf16> to vector<4x8x32xbf16>
    "tpu.trace_start"() <{level = 10 : i32, message = "hqd,hkd->hqk"}> : () -> ()
    %cst_11 = arith.constant dense<0.000000e+00> : vector<4x8x8xf32>
    %10 = tpu.matmul %5, %7, %cst_11 {dimension_numbers = #tpu.dot_dimension_numbers<[2], [2], [1], [1], [0, 0, 0, 1, 1, 1], [0], [0]>} : vector<4x8x32xbf16>, vector<4x8x32xbf16>, vector<4x8x8xf32> -> vector<4x8x8xf32>
    "tpu.trace_stop"() : () -> ()
    %cst_12 = arith.constant dense<0xFF800000> : vector<4x8xf32>
    %11 = vector.multi_reduction <maximumf>, %10, %cst_12 [2] : vector<4x8x8xf32> to vector<4x8xf32>
    %12 = vector.shape_cast %11 : vector<4x8xf32> to vector<4x8x1xf32>
    %13 = vector.broadcast %12 : vector<4x8x1xf32> to vector<4x8x8xf32>
    %14 = arith.subf %10, %13 : vector<4x8x8xf32>
    %15 = math.exp %14 : vector<4x8x8xf32>
    %cst_13 = arith.constant dense<0.000000e+00> : vector<4x8xf32>
    %16 = vector.multi_reduction <add>, %15, %cst_13 [2] : vector<4x8x8xf32> to vector<4x8xf32>
    %17 = vector.shape_cast %16 : vector<4x8xf32> to vector<4x8x1xf32>
    %18 = tpu.reciprocal %17 {approx = true} : vector<4x8x1xf32> -> vector<4x8x1xf32>
    %19 = vector.broadcast %18 : vector<4x8x1xf32> to vector<4x8x8xf32>
    %20 = arith.mulf %15, %19 : vector<4x8x8xf32>
    %21 = arith.truncf %20 : vector<4x8x8xf32> to vector<4x8x8xbf16>
    "tpu.trace_start"() <{level = 10 : i32, message = "hqk,hkd->hqd"}> : () -> ()
    %cst_14 = arith.constant dense<0.000000e+00> : vector<4x8x32xf32>
    %22 = tpu.matmul %21, %9, %cst_14 {dimension_numbers = #tpu.dot_dimension_numbers<[2], [1], [1], [2], [0, 0, 0, 1, 1, 2], [0], [0]>} : vector<4x8x8xbf16>, vector<4x8x32xbf16>, vector<4x8x32xf32> -> vector<4x8x32xf32>
    "tpu.trace_stop"() : () -> ()
    %23 = arith.truncf %22 : vector<4x8x32xf32> to vector<4x8x32xbf16>
    %c0_15 = arith.constant 0 : index
    %c0_16 = arith.constant 0 : index
    %c0_17 = arith.constant 0 : index
    %c0_18 = arith.constant 0 : index
    %24 = vector.load %arg4[%c0_15, %c0_16, %c0_17, %c0_18] : memref<1x4x8x32xbf16, #tpu.memory_space<vmem>>, vector<1x4x8x32xbf16>
    %25 = vector.shape_cast %24 : vector<1x4x8x32xbf16> to vector<4x8x32xbf16>
    %26 = vector.shape_cast %23 : vector<4x8x32xbf16> to vector<1x4x8x32xbf16>
    tpu.vector_store %arg4[%c0_15, %c0_16, %c0_17, %c0_18], %26 {strides = array<i32>} : memref<1x4x8x32xbf16, #tpu.memory_space<vmem>>, vector<1x4x8x32xbf16>,
    return
  }
  func.func @transform_0(%arg0: i32) -> (i32, i32, i32, i32) {
    %c0_i32 = arith.constant 0 : i32
    %c0_i32_0 = arith.constant 0 : i32
    %c0_i32_1 = arith.constant 0 : i32
    %c0_i32_2 = arith.constant 0 : i32
    return %arg0, %c0_i32, %c0_i32_0, %c0_i32_1 : i32, i32, i32, i32
  }
  func.func @transform_1(%arg0: i32) -> (i32, i32, i32, i32) {
    %c0_i32 = arith.constant 0 : i32
    %c0_i32_0 = arith.constant 0 : i32
    %c0_i32_1 = arith.constant 0 : i32
    %c0_i32_2 = arith.constant 0 : i32
    return %arg0, %c0_i32, %c0_i32_0, %c0_i32_1 : i32, i32, i32, i32
  }
  func.func @transform_2(%arg0: i32) -> (i32, i32, i32, i32) {
    %c0_i32 = arith.constant 0 : i32
    %c0_i32_0 = arith.constant 0 : i32
    %c0_i32_1 = arith.constant 0 : i32
    %c0_i32_2 = arith.constant 0 : i32
    return %arg0, %c0_i32, %c0_i32_0, %c0_i32_1 : i32, i32, i32, i32
  }
  func.func @transform_3(%arg0: i32) -> (i32, i32, i32, i32) {
    %c0_i32 = arith.constant 0 : i32
    %c0_i32_0 = arith.constant 0 : i32
    %c0_i32_1 = arith.constant 0 : i32
    %c0_i32_2 = arith.constant 0 : i32
    return %arg0, %c0_i32, %c0_i32_0, %c0_i32_1 : i32, i32, i32, i32
  }
}

module attributes {stable_mosaic.version = 11 : i64} {
  func.func @_mm_bias_kernel(%arg0: i32, %arg1: i32, %arg2: i32, %arg3: memref<16x128xbf16, #tpu.memory_space<vmem>>, %arg4: memref<128x128xbf16, #tpu.memory_space<vmem>>, %arg5: memref<1x128xf32, #tpu.memory_space<vmem>>, %arg6: memref<16x128xbf16, #tpu.memory_space<vmem>>, %arg7: memref<16x128xf32, #tpu.memory_space<vmem>>) attributes {dimension_semantics = [#tpu.dimension_semantics<parallel>, #tpu.dimension_semantics<parallel>, #tpu.dimension_semantics<arbitrary>], iteration_bounds = array<i64: 1, 1, 1>, scalar_prefetch = 0 : i64, scratch_operands = 1 : i64, tpu.core_type = #tpu.core_type<tc>, window_params = [{transform_indices = @transform_0, window_bounds = array<i64: 16, 128>}, {transform_indices = @transform_1, window_bounds = array<i64: 128, 128>}, {transform_indices = @transform_2, window_bounds = array<i64: 1, 128>}, {transform_indices = @transform_3, window_bounds = array<i64: 16, 128>}]} {
    %c0_i32 = arith.constant 0 : i32
    %0 = arith.cmpi eq, %arg2, %c0_i32 : i32
    %1 = arith.extui %0 : i1 to i32
    %c0_i32_0 = arith.constant 0 : i32
    %2 = arith.cmpi ne, %1, %c0_i32_0 : i32
    scf.if %2 {
      %cst_10 = arith.constant 0.000000e+00 : f32
      %12 = vector.broadcast %cst_10 : f32 to vector<16x128xf32>
      %c0_11 = arith.constant 0 : index
      %c0_12 = arith.constant 0 : index
      %13 = vector.load %arg7[%c0_11, %c0_12] : memref<16x128xf32, #tpu.memory_space<vmem>>, vector<16x128xf32>
      tpu.vector_store %arg7[%c0_11, %c0_12], %12 {strides = array<i32>} : memref<16x128xf32, #tpu.memory_space<vmem>>, vector<16x128xf32>,
    } else {
    }
    %c0 = arith.constant 0 : index
    %c0_1 = arith.constant 0 : index
    %3 = vector.load %arg7[%c0, %c0_1] : memref<16x128xf32, #tpu.memory_space<vmem>>, vector<16x128xf32>
    %c0_2 = arith.constant 0 : index
    %c0_3 = arith.constant 0 : index
    %4 = vector.load %arg3[%c0_2, %c0_3] : memref<16x128xbf16, #tpu.memory_space<vmem>>, vector<16x128xbf16>
    %c0_4 = arith.constant 0 : index
    %c0_5 = arith.constant 0 : index
    %5 = vector.load %arg4[%c0_4, %c0_5] : memref<128x128xbf16, #tpu.memory_space<vmem>>, vector<128x128xbf16>
    %cst = arith.constant dense<0.000000e+00> : vector<16x128xf32>
    %6 = tpu.matmul %4, %5, %cst {dimension_numbers = #tpu.dot_dimension_numbers<[1], [0], [0], [1], [0, 0, 1, 1], [], []>} : vector<16x128xbf16>, vector<128x128xbf16>, vector<16x128xf32> -> vector<16x128xf32>
    %7 = arith.addf %3, %6 : vector<16x128xf32>
    %c0_6 = arith.constant 0 : index
    %c0_7 = arith.constant 0 : index
    %8 = vector.load %arg7[%c0_6, %c0_7] : memref<16x128xf32, #tpu.memory_space<vmem>>, vector<16x128xf32>
    tpu.vector_store %arg7[%c0_6, %c0_7], %7 {strides = array<i32>} : memref<16x128xf32, #tpu.memory_space<vmem>>, vector<16x128xf32>,
    %c0_i32_8 = arith.constant 0 : i32
    %9 = arith.cmpi eq, %arg2, %c0_i32_8 : i32
    %10 = arith.extui %9 : i1 to i32
    %c0_i32_9 = arith.constant 0 : i32
    %11 = arith.cmpi ne, %10, %c0_i32_9 : i32
    scf.if %11 {
      %c0_10 = arith.constant 0 : index
      %c0_11 = arith.constant 0 : index
      %12 = vector.load %arg7[%c0_10, %c0_11] : memref<16x128xf32, #tpu.memory_space<vmem>>, vector<16x128xf32>
      %c0_12 = arith.constant 0 : index
      %c0_13 = arith.constant 0 : index
      %13 = vector.load %arg5[%c0_12, %c0_13] : memref<1x128xf32, #tpu.memory_space<vmem>>, vector<1x128xf32>
      %14 = vector.broadcast %13 : vector<1x128xf32> to vector<16x128xf32>
      %15 = arith.addf %12, %14 : vector<16x128xf32>
      %16 = arith.truncf %15 : vector<16x128xf32> to vector<16x128xbf16>
      %c0_14 = arith.constant 0 : index
      %c0_15 = arith.constant 0 : index
      %17 = vector.load %arg6[%c0_14, %c0_15] : memref<16x128xbf16, #tpu.memory_space<vmem>>, vector<16x128xbf16>
      tpu.vector_store %arg6[%c0_14, %c0_15], %16 {strides = array<i32>} : memref<16x128xbf16, #tpu.memory_space<vmem>>, vector<16x128xbf16>,
    } else {
    }
    return
  }
  func.func @transform_0(%arg0: i32, %arg1: i32, %arg2: i32) -> (i32, i32) {
    %c0_i32 = arith.constant 0 : i32
    return %arg0, %arg2 : i32, i32
  }
  func.func @transform_1(%arg0: i32, %arg1: i32, %arg2: i32) -> (i32, i32) {
    %c0_i32 = arith.constant 0 : i32
    return %arg2, %arg1 : i32, i32
  }
  func.func @transform_2(%arg0: i32, %arg1: i32, %arg2: i32) -> (i32, i32) {
    %c0_i32 = arith.constant 0 : i32
    %c0_i32_0 = arith.constant 0 : i32
    return %c0_i32, %arg1 : i32, i32
  }
  func.func @transform_3(%arg0: i32, %arg1: i32, %arg2: i32) -> (i32, i32) {
    %c0_i32 = arith.constant 0 : i32
    return %arg0, %arg1 : i32, i32
  }
}

module attributes {stable_mosaic.version = 11 : i64} {
  func.func @_mm_add_ln_kernel(%arg0: i32, %arg1: i32, %arg2: memref<16x128xbf16, #tpu.memory_space<vmem>>, %arg3: memref<128x128xbf16, #tpu.memory_space<vmem>>, %arg4: memref<1x128xf32, #tpu.memory_space<vmem>>, %arg5: memref<16x128xf32, #tpu.memory_space<vmem>>, %arg6: memref<1x128xf32, #tpu.memory_space<vmem>>, %arg7: memref<1x128xf32, #tpu.memory_space<vmem>>, %arg8: memref<16x128xf32, #tpu.memory_space<vmem>>, %arg9: memref<16x128xf32, #tpu.memory_space<vmem>>) attributes {dimension_semantics = [#tpu.dimension_semantics<parallel>, #tpu.dimension_semantics<arbitrary>], iteration_bounds = array<i64: 1, 1>, scalar_prefetch = 0 : i64, scratch_operands = 1 : i64, tpu.core_type = #tpu.core_type<tc>, window_params = [{transform_indices = @transform_0, window_bounds = array<i64: 16, 128>}, {transform_indices = @transform_1, window_bounds = array<i64: 128, 128>}, {pipeline_mode = #tpu.pipeline_mode<synchronous>, transform_indices = @transform_2, window_bounds = array<i64: 1, 128>}, {transform_indices = @transform_3, window_bounds = array<i64: 16, 128>}, {pipeline_mode = #tpu.pipeline_mode<synchronous>, transform_indices = @transform_4, window_bounds = array<i64: 1, 128>}, {pipeline_mode = #tpu.pipeline_mode<synchronous>, transform_indices = @transform_5, window_bounds = array<i64: 1, 128>}, {transform_indices = @transform_6, window_bounds = array<i64: 16, 128>}]} {
    %c0_i32 = arith.constant 0 : i32
    %0 = arith.cmpi eq, %arg1, %c0_i32 : i32
    %1 = arith.extui %0 : i1 to i32
    %c0_i32_0 = arith.constant 0 : i32
    %2 = arith.cmpi ne, %1, %c0_i32_0 : i32
    scf.if %2 {
      %cst_10 = arith.constant 0.000000e+00 : f32
      %12 = vector.broadcast %cst_10 : f32 to vector<16x128xf32>
      %c0_11 = arith.constant 0 : index
      %c0_12 = arith.constant 0 : index
      %13 = vector.load %arg9[%c0_11, %c0_12] : memref<16x128xf32, #tpu.memory_space<vmem>>, vector<16x128xf32>
      tpu.vector_store %arg9[%c0_11, %c0_12], %12 {strides = array<i32>} : memref<16x128xf32, #tpu.memory_space<vmem>>, vector<16x128xf32>,
    } else {
    }
    %c0 = arith.constant 0 : index
    %c0_1 = arith.constant 0 : index
    %3 = vector.load %arg9[%c0, %c0_1] : memref<16x128xf32, #tpu.memory_space<vmem>>, vector<16x128xf32>
    %c0_2 = arith.constant 0 : index
    %c0_3 = arith.constant 0 : index
    %4 = vector.load %arg2[%c0_2, %c0_3] : memref<16x128xbf16, #tpu.memory_space<vmem>>, vector<16x128xbf16>
    %c0_4 = arith.constant 0 : index
    %c0_5 = arith.constant 0 : index
    %5 = vector.load %arg3[%c0_4, %c0_5] : memref<128x128xbf16, #tpu.memory_space<vmem>>, vector<128x128xbf16>
    %cst = arith.constant dense<0.000000e+00> : vector<16x128xf32>
    %6 = tpu.matmul %4, %5, %cst {dimension_numbers = #tpu.dot_dimension_numbers<[1], [0], [0], [1], [0, 0, 1, 1], [], []>} : vector<16x128xbf16>, vector<128x128xbf16>, vector<16x128xf32> -> vector<16x128xf32>
    %7 = arith.addf %3, %6 : vector<16x128xf32>
    %c0_6 = arith.constant 0 : index
    %c0_7 = arith.constant 0 : index
    %8 = vector.load %arg9[%c0_6, %c0_7] : memref<16x128xf32, #tpu.memory_space<vmem>>, vector<16x128xf32>
    tpu.vector_store %arg9[%c0_6, %c0_7], %7 {strides = array<i32>} : memref<16x128xf32, #tpu.memory_space<vmem>>, vector<16x128xf32>,
    %c0_i32_8 = arith.constant 0 : i32
    %9 = arith.cmpi eq, %arg1, %c0_i32_8 : i32
    %10 = arith.extui %9 : i1 to i32
    %c0_i32_9 = arith.constant 0 : i32
    %11 = arith.cmpi ne, %10, %c0_i32_9 : i32
    scf.if %11 {
      %c0_10 = arith.constant 0 : index
      %c0_11 = arith.constant 0 : index
      %12 = vector.load %arg9[%c0_10, %c0_11] : memref<16x128xf32, #tpu.memory_space<vmem>>, vector<16x128xf32>
      %c0_12 = arith.constant 0 : index
      %c0_13 = arith.constant 0 : index
      %13 = vector.load %arg4[%c0_12, %c0_13] : memref<1x128xf32, #tpu.memory_space<vmem>>, vector<1x128xf32>
      %14 = vector.broadcast %13 : vector<1x128xf32> to vector<16x128xf32>
      %15 = arith.addf %12, %14 : vector<16x128xf32>
      %c0_14 = arith.constant 0 : index
      %c0_15 = arith.constant 0 : index
      %16 = vector.load %arg5[%c0_14, %c0_15] : memref<16x128xf32, #tpu.memory_space<vmem>>, vector<16x128xf32>
      %17 = arith.addf %15, %16 : vector<16x128xf32>
      %cst_16 = arith.constant dense<0.000000e+00> : vector<16xf32>
      %18 = vector.multi_reduction <add>, %17, %cst_16 [1] : vector<16x128xf32> to vector<16xf32>
      %19 = vector.shape_cast %18 : vector<16xf32> to vector<16x1xf32>
      %cst_17 = arith.constant 1.280000e+02 : f32
      %20 = vector.broadcast %cst_17 : f32 to vector<16x1xf32>
      %21 = arith.divf %19, %20 : vector<16x1xf32>
      %22 = vector.broadcast %21 : vector<16x1xf32> to vector<16x128xf32>
      %23 = arith.subf %17, %22 : vector<16x128xf32>
      %24 = arith.mulf %23, %23 : vector<16x128xf32>
      %cst_18 = arith.constant dense<0.000000e+00> : vector<16xf32>
      %25 = vector.multi_reduction <add>, %24, %cst_18 [1] : vector<16x128xf32> to vector<16xf32>
      %26 = vector.shape_cast %25 : vector<16xf32> to vector<16x1xf32>
      %cst_19 = arith.constant 1.280000e+02 : f32
      %27 = vector.broadcast %cst_19 : f32 to vector<16x1xf32>
      %28 = arith.divf %26, %27 : vector<16x1xf32>
      %29 = vector.broadcast %21 : vector<16x1xf32> to vector<16x128xf32>
      %30 = arith.subf %17, %29 : vector<16x128xf32>
      %cst_20 = arith.constant 9.99999974E-6 : f32
      %31 = vector.broadcast %cst_20 : f32 to vector<16x1xf32>
      %32 = arith.addf %28, %31 : vector<16x1xf32>
      %33 = math.rsqrt %32 : vector<16x1xf32>
      %34 = vector.broadcast %33 : vector<16x1xf32> to vector<16x128xf32>
      %35 = arith.mulf %30, %34 : vector<16x128xf32>
      %c0_21 = arith.constant 0 : index
      %c0_22 = arith.constant 0 : index
      %36 = vector.load %arg6[%c0_21, %c0_22] : memref<1x128xf32, #tpu.memory_space<vmem>>, vector<1x128xf32>
      %37 = vector.broadcast %36 : vector<1x128xf32> to vector<16x128xf32>
      %38 = arith.mulf %35, %37 : vector<16x128xf32>
      %c0_23 = arith.constant 0 : index
      %c0_24 = arith.constant 0 : index
      %39 = vector.load %arg7[%c0_23, %c0_24] : memref<1x128xf32, #tpu.memory_space<vmem>>, vector<1x128xf32>
      %40 = vector.broadcast %39 : vector<1x128xf32> to vector<16x128xf32>
      %41 = arith.addf %38, %40 : vector<16x128xf32>
      %c0_25 = arith.constant 0 : index
      %c0_26 = arith.constant 0 : index
      %42 = vector.load %arg8[%c0_25, %c0_26] : memref<16x128xf32, #tpu.memory_space<vmem>>, vector<16x128xf32>
      tpu.vector_store %arg8[%c0_25, %c0_26], %41 {strides = array<i32>} : memref<16x128xf32, #tpu.memory_space<vmem>>, vector<16x128xf32>,
    } else {
    }
    return
  }
  func.func @transform_0(%arg0: i32, %arg1: i32) -> (i32, i32) {
    %c0_i32 = arith.constant 0 : i32
    return %arg0, %arg1 : i32, i32
  }
  func.func @transform_1(%arg0: i32, %arg1: i32) -> (i32, i32) {
    %c0_i32 = arith.constant 0 : i32
    %c0_i32_0 = arith.constant 0 : i32
    return %arg1, %c0_i32 : i32, i32
  }
  func.func @transform_2(%arg0: i32, %arg1: i32) -> (i32, i32) {
    %c0_i32 = arith.constant 0 : i32
    %c0_i32_0 = arith.constant 0 : i32
    %c0_i32_1 = arith.constant 0 : i32
    return %c0_i32, %c0_i32_0 : i32, i32
  }
  func.func @transform_3(%arg0: i32, %arg1: i32) -> (i32, i32) {
    %c0_i32 = arith.constant 0 : i32
    %c0_i32_0 = arith.constant 0 : i32
    return %arg0, %c0_i32 : i32, i32
  }
  func.func @transform_4(%arg0: i32, %arg1: i32) -> (i32, i32) {
    %c0_i32 = arith.constant 0 : i32
    %c0_i32_0 = arith.constant 0 : i32
    %c0_i32_1 = arith.constant 0 : i32
    return %c0_i32, %c0_i32_0 : i32, i32
  }
  func.func @transform_5(%arg0: i32, %arg1: i32) -> (i32, i32) {
    %c0_i32 = arith.constant 0 : i32
    %c0_i32_0 = arith.constant 0 : i32
    %c0_i32_1 = arith.constant 0 : i32
    return %c0_i32, %c0_i32_0 : i32, i32
  }
  func.func @transform_6(%arg0: i32, %arg1: i32) -> (i32, i32) {
    %c0_i32 = arith.constant 0 : i32
    %c0_i32_0 = arith.constant 0 : i32
    return %arg0, %c0_i32 : i32, i32
  }
}

module attributes {stable_mosaic.version = 11 : i64} {
  func.func @_mm_bias_kernel(%arg0: i32, %arg1: i32, %arg2: i32, %arg3: memref<16x128xbf16, #tpu.memory_space<vmem>>, %arg4: memref<128x256xbf16, #tpu.memory_space<vmem>>, %arg5: memref<1x256xf32, #tpu.memory_space<vmem>>, %arg6: memref<16x256xbf16, #tpu.memory_space<vmem>>, %arg7: memref<16x256xf32, #tpu.memory_space<vmem>>) attributes {dimension_semantics = [#tpu.dimension_semantics<parallel>, #tpu.dimension_semantics<parallel>, #tpu.dimension_semantics<arbitrary>], iteration_bounds = array<i64: 1, 1, 1>, scalar_prefetch = 0 : i64, scratch_operands = 1 : i64, tpu.core_type = #tpu.core_type<tc>, window_params = [{transform_indices = @transform_0, window_bounds = array<i64: 16, 128>}, {transform_indices = @transform_1, window_bounds = array<i64: 128, 256>}, {transform_indices = @transform_2, window_bounds = array<i64: 1, 256>}, {transform_indices = @transform_3, window_bounds = array<i64: 16, 256>}]} {
    %c0_i32 = arith.constant 0 : i32
    %0 = arith.cmpi eq, %arg2, %c0_i32 : i32
    %1 = arith.extui %0 : i1 to i32
    %c0_i32_0 = arith.constant 0 : i32
    %2 = arith.cmpi ne, %1, %c0_i32_0 : i32
    scf.if %2 {
      %cst_10 = arith.constant 0.000000e+00 : f32
      %12 = vector.broadcast %cst_10 : f32 to vector<16x256xf32>
      %c0_11 = arith.constant 0 : index
      %c0_12 = arith.constant 0 : index
      %13 = vector.load %arg7[%c0_11, %c0_12] : memref<16x256xf32, #tpu.memory_space<vmem>>, vector<16x256xf32>
      tpu.vector_store %arg7[%c0_11, %c0_12], %12 {strides = array<i32>} : memref<16x256xf32, #tpu.memory_space<vmem>>, vector<16x256xf32>,
    } else {
    }
    %c0 = arith.constant 0 : index
    %c0_1 = arith.constant 0 : index
    %3 = vector.load %arg7[%c0, %c0_1] : memref<16x256xf32, #tpu.memory_space<vmem>>, vector<16x256xf32>
    %c0_2 = arith.constant 0 : index
    %c0_3 = arith.constant 0 : index
    %4 = vector.load %arg3[%c0_2, %c0_3] : memref<16x128xbf16, #tpu.memory_space<vmem>>, vector<16x128xbf16>
    %c0_4 = arith.constant 0 : index
    %c0_5 = arith.constant 0 : index
    %5 = vector.load %arg4[%c0_4, %c0_5] : memref<128x256xbf16, #tpu.memory_space<vmem>>, vector<128x256xbf16>
    %cst = arith.constant dense<0.000000e+00> : vector<16x256xf32>
    %6 = tpu.matmul %4, %5, %cst {dimension_numbers = #tpu.dot_dimension_numbers<[1], [0], [0], [1], [0, 0, 1, 1], [], []>} : vector<16x128xbf16>, vector<128x256xbf16>, vector<16x256xf32> -> vector<16x256xf32>
    %7 = arith.addf %3, %6 : vector<16x256xf32>
    %c0_6 = arith.constant 0 : index
    %c0_7 = arith.constant 0 : index
    %8 = vector.load %arg7[%c0_6, %c0_7] : memref<16x256xf32, #tpu.memory_space<vmem>>, vector<16x256xf32>
    tpu.vector_store %arg7[%c0_6, %c0_7], %7 {strides = array<i32>} : memref<16x256xf32, #tpu.memory_space<vmem>>, vector<16x256xf32>,
    %c0_i32_8 = arith.constant 0 : i32
    %9 = arith.cmpi eq, %arg2, %c0_i32_8 : i32
    %10 = arith.extui %9 : i1 to i32
    %c0_i32_9 = arith.constant 0 : i32
    %11 = arith.cmpi ne, %10, %c0_i32_9 : i32
    scf.if %11 {
      %c0_10 = arith.constant 0 : index
      %c0_11 = arith.constant 0 : index
      %12 = vector.load %arg7[%c0_10, %c0_11] : memref<16x256xf32, #tpu.memory_space<vmem>>, vector<16x256xf32>
      %c0_12 = arith.constant 0 : index
      %c0_13 = arith.constant 0 : index
      %13 = vector.load %arg5[%c0_12, %c0_13] : memref<1x256xf32, #tpu.memory_space<vmem>>, vector<1x256xf32>
      %14 = vector.broadcast %13 : vector<1x256xf32> to vector<16x256xf32>
      %15 = arith.addf %12, %14 : vector<16x256xf32>
      %16 = arith.truncf %15 : vector<16x256xf32> to vector<16x256xbf16>
      %c0_14 = arith.constant 0 : index
      %c0_15 = arith.constant 0 : index
      %17 = vector.load %arg6[%c0_14, %c0_15] : memref<16x256xbf16, #tpu.memory_space<vmem>>, vector<16x256xbf16>
      tpu.vector_store %arg6[%c0_14, %c0_15], %16 {strides = array<i32>} : memref<16x256xbf16, #tpu.memory_space<vmem>>, vector<16x256xbf16>,
    } else {
    }
    return
  }
  func.func @transform_0(%arg0: i32, %arg1: i32, %arg2: i32) -> (i32, i32) {
    %c0_i32 = arith.constant 0 : i32
    return %arg0, %arg2 : i32, i32
  }
  func.func @transform_1(%arg0: i32, %arg1: i32, %arg2: i32) -> (i32, i32) {
    %c0_i32 = arith.constant 0 : i32
    return %arg2, %arg1 : i32, i32
  }
  func.func @transform_2(%arg0: i32, %arg1: i32, %arg2: i32) -> (i32, i32) {
    %c0_i32 = arith.constant 0 : i32
    %c0_i32_0 = arith.constant 0 : i32
    return %c0_i32, %arg1 : i32, i32
  }
  func.func @transform_3(%arg0: i32, %arg1: i32, %arg2: i32) -> (i32, i32) {
    %c0_i32 = arith.constant 0 : i32
    return %arg0, %arg1 : i32, i32
  }
}

module attributes {stable_mosaic.version = 11 : i64} {
  func.func @_mm_bias_kernel(%arg0: i32, %arg1: i32, %arg2: i32, %arg3: memref<16x128xbf16, #tpu.memory_space<vmem>>, %arg4: memref<128x256xbf16, #tpu.memory_space<vmem>>, %arg5: memref<1x256xf32, #tpu.memory_space<vmem>>, %arg6: memref<16x256xbf16, #tpu.memory_space<vmem>>, %arg7: memref<16x256xf32, #tpu.memory_space<vmem>>) attributes {dimension_semantics = [#tpu.dimension_semantics<parallel>, #tpu.dimension_semantics<parallel>, #tpu.dimension_semantics<arbitrary>], iteration_bounds = array<i64: 1, 2, 1>, scalar_prefetch = 0 : i64, scratch_operands = 1 : i64, tpu.core_type = #tpu.core_type<tc>, window_params = [{transform_indices = @transform_0, window_bounds = array<i64: 16, 128>}, {transform_indices = @transform_1, window_bounds = array<i64: 128, 256>}, {transform_indices = @transform_2, window_bounds = array<i64: 1, 256>}, {transform_indices = @transform_3, window_bounds = array<i64: 16, 256>}]} {
    %c0_i32 = arith.constant 0 : i32
    %0 = arith.cmpi eq, %arg2, %c0_i32 : i32
    %1 = arith.extui %0 : i1 to i32
    %c0_i32_0 = arith.constant 0 : i32
    %2 = arith.cmpi ne, %1, %c0_i32_0 : i32
    scf.if %2 {
      %cst_10 = arith.constant 0.000000e+00 : f32
      %12 = vector.broadcast %cst_10 : f32 to vector<16x256xf32>
      %c0_11 = arith.constant 0 : index
      %c0_12 = arith.constant 0 : index
      %13 = vector.load %arg7[%c0_11, %c0_12] : memref<16x256xf32, #tpu.memory_space<vmem>>, vector<16x256xf32>
      tpu.vector_store %arg7[%c0_11, %c0_12], %12 {strides = array<i32>} : memref<16x256xf32, #tpu.memory_space<vmem>>, vector<16x256xf32>,
    } else {
    }
    %c0 = arith.constant 0 : index
    %c0_1 = arith.constant 0 : index
    %3 = vector.load %arg7[%c0, %c0_1] : memref<16x256xf32, #tpu.memory_space<vmem>>, vector<16x256xf32>
    %c0_2 = arith.constant 0 : index
    %c0_3 = arith.constant 0 : index
    %4 = vector.load %arg3[%c0_2, %c0_3] : memref<16x128xbf16, #tpu.memory_space<vmem>>, vector<16x128xbf16>
    %c0_4 = arith.constant 0 : index
    %c0_5 = arith.constant 0 : index
    %5 = vector.load %arg4[%c0_4, %c0_5] : memref<128x256xbf16, #tpu.memory_space<vmem>>, vector<128x256xbf16>
    %cst = arith.constant dense<0.000000e+00> : vector<16x256xf32>
    %6 = tpu.matmul %4, %5, %cst {dimension_numbers = #tpu.dot_dimension_numbers<[1], [0], [0], [1], [0, 0, 1, 1], [], []>} : vector<16x128xbf16>, vector<128x256xbf16>, vector<16x256xf32> -> vector<16x256xf32>
    %7 = arith.addf %3, %6 : vector<16x256xf32>
    %c0_6 = arith.constant 0 : index
    %c0_7 = arith.constant 0 : index
    %8 = vector.load %arg7[%c0_6, %c0_7] : memref<16x256xf32, #tpu.memory_space<vmem>>, vector<16x256xf32>
    tpu.vector_store %arg7[%c0_6, %c0_7], %7 {strides = array<i32>} : memref<16x256xf32, #tpu.memory_space<vmem>>, vector<16x256xf32>,
    %c0_i32_8 = arith.constant 0 : i32
    %9 = arith.cmpi eq, %arg2, %c0_i32_8 : i32
    %10 = arith.extui %9 : i1 to i32
    %c0_i32_9 = arith.constant 0 : i32
    %11 = arith.cmpi ne, %10, %c0_i32_9 : i32
    scf.if %11 {
      %c0_10 = arith.constant 0 : index
      %c0_11 = arith.constant 0 : index
      %12 = vector.load %arg7[%c0_10, %c0_11] : memref<16x256xf32, #tpu.memory_space<vmem>>, vector<16x256xf32>
      %c0_12 = arith.constant 0 : index
      %c0_13 = arith.constant 0 : index
      %13 = vector.load %arg5[%c0_12, %c0_13] : memref<1x256xf32, #tpu.memory_space<vmem>>, vector<1x256xf32>
      %14 = vector.broadcast %13 : vector<1x256xf32> to vector<16x256xf32>
      %15 = arith.addf %12, %14 : vector<16x256xf32>
      %cst_14 = arith.constant 0.000000e+00 : f32
      %16 = vector.broadcast %cst_14 : f32 to vector<16x256xf32>
      %17 = arith.maximumf %15, %16 : vector<16x256xf32>
      %18 = arith.truncf %17 : vector<16x256xf32> to vector<16x256xbf16>
      %c0_15 = arith.constant 0 : index
      %c0_16 = arith.constant 0 : index
      %19 = vector.load %arg6[%c0_15, %c0_16] : memref<16x256xbf16, #tpu.memory_space<vmem>>, vector<16x256xbf16>
      tpu.vector_store %arg6[%c0_15, %c0_16], %18 {strides = array<i32>} : memref<16x256xbf16, #tpu.memory_space<vmem>>, vector<16x256xbf16>,
    } else {
    }
    return
  }
  func.func @transform_0(%arg0: i32, %arg1: i32, %arg2: i32) -> (i32, i32) {
    %c0_i32 = arith.constant 0 : i32
    return %arg0, %arg2 : i32, i32
  }
  func.func @transform_1(%arg0: i32, %arg1: i32, %arg2: i32) -> (i32, i32) {
    %c0_i32 = arith.constant 0 : i32
    return %arg2, %arg1 : i32, i32
  }
  func.func @transform_2(%arg0: i32, %arg1: i32, %arg2: i32) -> (i32, i32) {
    %c0_i32 = arith.constant 0 : i32
    %c0_i32_0 = arith.constant 0 : i32
    return %c0_i32, %arg1 : i32, i32
  }
  func.func @transform_3(%arg0: i32, %arg1: i32, %arg2: i32) -> (i32, i32) {
    %c0_i32 = arith.constant 0 : i32
    return %arg0, %arg1 : i32, i32
  }
}

module attributes {stable_mosaic.version = 11 : i64} {
  func.func @_attn_weights_kernel(%arg0: i32, %arg1: memref<1x4x8x32xbf16, #tpu.memory_space<vmem>>, %arg2: memref<1x4x8x32xbf16, #tpu.memory_space<vmem>>, %arg3: memref<1x4x8x32xbf16, #tpu.memory_space<vmem>>, %arg4: memref<1x4x8x32xbf16, #tpu.memory_space<vmem>>, %arg5: memref<1x8x8xf32, #tpu.memory_space<vmem>>) attributes {dimension_semantics = [#tpu.dimension_semantics<parallel>], iteration_bounds = array<i64: 2>, scalar_prefetch = 0 : i64, scratch_operands = 0 : i64, tpu.core_type = #tpu.core_type<tc>, window_params = [{transform_indices = @transform_0, window_bounds = array<i64: 1, 4, 8, 32>}, {transform_indices = @transform_1, window_bounds = array<i64: 1, 4, 8, 32>}, {transform_indices = @transform_2, window_bounds = array<i64: 1, 4, 8, 32>}, {transform_indices = @transform_3, window_bounds = array<i64: 1, 4, 8, 32>}, {transform_indices = @transform_4, window_bounds = array<i64: 1, 8, 8>}]} {
    %c0 = arith.constant 0 : index
    %c0_0 = arith.constant 0 : index
    %c0_1 = arith.constant 0 : index
    %c0_2 = arith.constant 0 : index
    %0 = vector.load %arg1[%c0, %c0_0, %c0_1, %c0_2] : memref<1x4x8x32xbf16, #tpu.memory_space<vmem>>, vector<1x4x8x32xbf16>
    %1 = vector.shape_cast %0 : vector<1x4x8x32xbf16> to vector<4x8x32xbf16>
    %2 = arith.extf %1 : vector<4x8x32xbf16> to vector<4x8x32xf32>
    %cst = arith.constant 0.176776692 : f32
    %3 = vector.broadcast %cst : f32 to vector<4x8x32xf32>
    %4 = arith.mulf %2, %3 : vector<4x8x32xf32>
    %5 = arith.truncf %4 : vector<4x8x32xf32> to vector<4x8x32xbf16>
    %c0_3 = arith.constant 0 : index
    %c0_4 = arith.constant 0 : index
    %c0_5 = arith.constant 0 : index
    %c0_6 = arith.constant 0 : index
    %6 = vector.load %arg2[%c0_3, %c0_4, %c0_5, %c0_6] : memref<1x4x8x32xbf16, #tpu.memory_space<vmem>>, vector<1x4x8x32xbf16>
    %7 = vector.shape_cast %6 : vector<1x4x8x32xbf16> to vector<4x8x32xbf16>
    %c0_7 = arith.constant 0 : index
    %c0_8 = arith.constant 0 : index
    %c0_9 = arith.constant 0 : index
    %c0_10 = arith.constant 0 : index
    %8 = vector.load %arg3[%c0_7, %c0_8, %c0_9, %c0_10] : memref<1x4x8x32xbf16, #tpu.memory_space<vmem>>, vector<1x4x8x32xbf16>
    %9 = vector.shape_cast %8 : vector<1x4x8x32xbf16> to vector<4x8x32xbf16>
    "tpu.trace_start"() <{level = 10 : i32, message = "hqd,hkd->hqk"}> : () -> ()
    %cst_11 = arith.constant dense<0.000000e+00> : vector<4x8x8xf32>
    %10 = tpu.matmul %5, %7, %cst_11 {dimension_numbers = #tpu.dot_dimension_numbers<[2], [2], [1], [1], [0, 0, 0, 1, 1, 1], [0], [0]>} : vector<4x8x32xbf16>, vector<4x8x32xbf16>, vector<4x8x8xf32> -> vector<4x8x8xf32>
    "tpu.trace_stop"() : () -> ()
    %cst_12 = arith.constant dense<0xFF800000> : vector<4x8xf32>
    %11 = vector.multi_reduction <maximumf>, %10, %cst_12 [2] : vector<4x8x8xf32> to vector<4x8xf32>
    %12 = vector.shape_cast %11 : vector<4x8xf32> to vector<4x8x1xf32>
    %13 = vector.broadcast %12 : vector<4x8x1xf32> to vector<4x8x8xf32>
    %14 = arith.subf %10, %13 : vector<4x8x8xf32>
    %15 = math.exp %14 : vector<4x8x8xf32>
    %cst_13 = arith.constant dense<0.000000e+00> : vector<4x8xf32>
    %16 = vector.multi_reduction <add>, %15, %cst_13 [2] : vector<4x8x8xf32> to vector<4x8xf32>
    %17 = vector.shape_cast %16 : vector<4x8xf32> to vector<4x8x1xf32>
    %18 = tpu.reciprocal %17 {approx = true} : vector<4x8x1xf32> -> vector<4x8x1xf32>
    %19 = vector.broadcast %18 : vector<4x8x1xf32> to vector<4x8x8xf32>
    %20 = arith.mulf %15, %19 : vector<4x8x8xf32>
    %21 = arith.truncf %20 : vector<4x8x8xf32> to vector<4x8x8xbf16>
    "tpu.trace_start"() <{level = 10 : i32, message = "hqk,hkd->hqd"}> : () -> ()
    %cst_14 = arith.constant dense<0.000000e+00> : vector<4x8x32xf32>
    %22 = tpu.matmul %21, %9, %cst_14 {dimension_numbers = #tpu.dot_dimension_numbers<[2], [1], [1], [2], [0, 0, 0, 1, 1, 2], [0], [0]>} : vector<4x8x8xbf16>, vector<4x8x32xbf16>, vector<4x8x32xf32> -> vector<4x8x32xf32>
    "tpu.trace_stop"() : () -> ()
    %23 = arith.truncf %22 : vector<4x8x32xf32> to vector<4x8x32xbf16>
    %c0_15 = arith.constant 0 : index
    %c0_16 = arith.constant 0 : index
    %c0_17 = arith.constant 0 : index
    %c0_18 = arith.constant 0 : index
    %24 = vector.load %arg4[%c0_15, %c0_16, %c0_17, %c0_18] : memref<1x4x8x32xbf16, #tpu.memory_space<vmem>>, vector<1x4x8x32xbf16>
    %25 = vector.shape_cast %24 : vector<1x4x8x32xbf16> to vector<4x8x32xbf16>
    %26 = vector.shape_cast %23 : vector<4x8x32xbf16> to vector<1x4x8x32xbf16>
    tpu.vector_store %arg4[%c0_15, %c0_16, %c0_17, %c0_18], %26 {strides = array<i32>} : memref<1x4x8x32xbf16, #tpu.memory_space<vmem>>, vector<1x4x8x32xbf16>,
    %cst_19 = arith.constant dense<0.000000e+00> : vector<8x8xf32>
    %27 = vector.multi_reduction <add>, %20, %cst_19 [0] : vector<4x8x8xf32> to vector<8x8xf32>
    %cst_20 = arith.constant 4.000000e+00 : f32
    %28 = vector.broadcast %cst_20 : f32 to vector<8x8xf32>
    %29 = arith.divf %27, %28 : vector<8x8xf32>
    %c0_21 = arith.constant 0 : index
    %c0_22 = arith.constant 0 : index
    %c0_23 = arith.constant 0 : index
    %30 = vector.load %arg5[%c0_21, %c0_22, %c0_23] : memref<1x8x8xf32, #tpu.memory_space<vmem>>, vector<1x8x8xf32>
    %31 = vector.shape_cast %30 : vector<1x8x8xf32> to vector<8x8xf32>
    %32 = vector.shape_cast %29 : vector<8x8xf32> to vector<1x8x8xf32>
    tpu.vector_store %arg5[%c0_21, %c0_22, %c0_23], %32 {strides = array<i32>} : memref<1x8x8xf32, #tpu.memory_space<vmem>>, vector<1x8x8xf32>,
    return
  }
  func.func @transform_0(%arg0: i32) -> (i32, i32, i32, i32) {
    %c0_i32 = arith.constant 0 : i32
    %c0_i32_0 = arith.constant 0 : i32
    %c0_i32_1 = arith.constant 0 : i32
    %c0_i32_2 = arith.constant 0 : i32
    return %arg0, %c0_i32, %c0_i32_0, %c0_i32_1 : i32, i32, i32, i32
  }
  func.func @transform_1(%arg0: i32) -> (i32, i32, i32, i32) {
    %c0_i32 = arith.constant 0 : i32
    %c0_i32_0 = arith.constant 0 : i32
    %c0_i32_1 = arith.constant 0 : i32
    %c0_i32_2 = arith.constant 0 : i32
    return %arg0, %c0_i32, %c0_i32_0, %c0_i32_1 : i32, i32, i32, i32
  }
  func.func @transform_2(%arg0: i32) -> (i32, i32, i32, i32) {
    %c0_i32 = arith.constant 0 : i32
    %c0_i32_0 = arith.constant 0 : i32
    %c0_i32_1 = arith.constant 0 : i32
    %c0_i32_2 = arith.constant 0 : i32
    return %arg0, %c0_i32, %c0_i32_0, %c0_i32_1 : i32, i32, i32, i32
  }
  func.func @transform_3(%arg0: i32) -> (i32, i32, i32, i32) {
    %c0_i32 = arith.constant 0 : i32
    %c0_i32_0 = arith.constant 0 : i32
    %c0_i32_1 = arith.constant 0 : i32
    %c0_i32_2 = arith.constant 0 : i32
    return %arg0, %c0_i32, %c0_i32_0, %c0_i32_1 : i32, i32, i32, i32
  }
  func.func @transform_4(%arg0: i32) -> (i32, i32, i32) {
    %c0_i32 = arith.constant 0 : i32
    %c0_i32_0 = arith.constant 0 : i32
    %c0_i32_1 = arith.constant 0 : i32
    return %arg0, %c0_i32, %c0_i32_0 : i32, i32, i32
  }
}

module attributes {stable_mosaic.version = 11 : i64} {
  func.func @_mm_add_ln_kernel(%arg0: i32, %arg1: i32, %arg2: memref<16x512xbf16, #tpu.memory_space<vmem>>, %arg3: memref<512x128xbf16, #tpu.memory_space<vmem>>, %arg4: memref<1x128xf32, #tpu.memory_space<vmem>>, %arg5: memref<16x128xf32, #tpu.memory_space<vmem>>, %arg6: memref<1x128xf32, #tpu.memory_space<vmem>>, %arg7: memref<1x128xf32, #tpu.memory_space<vmem>>, %arg8: memref<16x128xf32, #tpu.memory_space<vmem>>, %arg9: memref<16x128xf32, #tpu.memory_space<vmem>>) attributes {dimension_semantics = [#tpu.dimension_semantics<parallel>, #tpu.dimension_semantics<arbitrary>], iteration_bounds = array<i64: 1, 1>, scalar_prefetch = 0 : i64, scratch_operands = 1 : i64, tpu.core_type = #tpu.core_type<tc>, window_params = [{transform_indices = @transform_0, window_bounds = array<i64: 16, 512>}, {transform_indices = @transform_1, window_bounds = array<i64: 512, 128>}, {pipeline_mode = #tpu.pipeline_mode<synchronous>, transform_indices = @transform_2, window_bounds = array<i64: 1, 128>}, {transform_indices = @transform_3, window_bounds = array<i64: 16, 128>}, {pipeline_mode = #tpu.pipeline_mode<synchronous>, transform_indices = @transform_4, window_bounds = array<i64: 1, 128>}, {pipeline_mode = #tpu.pipeline_mode<synchronous>, transform_indices = @transform_5, window_bounds = array<i64: 1, 128>}, {transform_indices = @transform_6, window_bounds = array<i64: 16, 128>}]} {
    %c0_i32 = arith.constant 0 : i32
    %0 = arith.cmpi eq, %arg1, %c0_i32 : i32
    %1 = arith.extui %0 : i1 to i32
    %c0_i32_0 = arith.constant 0 : i32
    %2 = arith.cmpi ne, %1, %c0_i32_0 : i32
    scf.if %2 {
      %cst_10 = arith.constant 0.000000e+00 : f32
      %12 = vector.broadcast %cst_10 : f32 to vector<16x128xf32>
      %c0_11 = arith.constant 0 : index
      %c0_12 = arith.constant 0 : index
      %13 = vector.load %arg9[%c0_11, %c0_12] : memref<16x128xf32, #tpu.memory_space<vmem>>, vector<16x128xf32>
      tpu.vector_store %arg9[%c0_11, %c0_12], %12 {strides = array<i32>} : memref<16x128xf32, #tpu.memory_space<vmem>>, vector<16x128xf32>,
    } else {
    }
    %c0 = arith.constant 0 : index
    %c0_1 = arith.constant 0 : index
    %3 = vector.load %arg9[%c0, %c0_1] : memref<16x128xf32, #tpu.memory_space<vmem>>, vector<16x128xf32>
    %c0_2 = arith.constant 0 : index
    %c0_3 = arith.constant 0 : index
    %4 = vector.load %arg2[%c0_2, %c0_3] : memref<16x512xbf16, #tpu.memory_space<vmem>>, vector<16x512xbf16>
    %c0_4 = arith.constant 0 : index
    %c0_5 = arith.constant 0 : index
    %5 = vector.load %arg3[%c0_4, %c0_5] : memref<512x128xbf16, #tpu.memory_space<vmem>>, vector<512x128xbf16>
    %cst = arith.constant dense<0.000000e+00> : vector<16x128xf32>
    %6 = tpu.matmul %4, %5, %cst {dimension_numbers = #tpu.dot_dimension_numbers<[1], [0], [0], [1], [0, 0, 1, 1], [], []>} : vector<16x512xbf16>, vector<512x128xbf16>, vector<16x128xf32> -> vector<16x128xf32>
    %7 = arith.addf %3, %6 : vector<16x128xf32>
    %c0_6 = arith.constant 0 : index
    %c0_7 = arith.constant 0 : index
    %8 = vector.load %arg9[%c0_6, %c0_7] : memref<16x128xf32, #tpu.memory_space<vmem>>, vector<16x128xf32>
    tpu.vector_store %arg9[%c0_6, %c0_7], %7 {strides = array<i32>} : memref<16x128xf32, #tpu.memory_space<vmem>>, vector<16x128xf32>,
    %c0_i32_8 = arith.constant 0 : i32
    %9 = arith.cmpi eq, %arg1, %c0_i32_8 : i32
    %10 = arith.extui %9 : i1 to i32
    %c0_i32_9 = arith.constant 0 : i32
    %11 = arith.cmpi ne, %10, %c0_i32_9 : i32
    scf.if %11 {
      %c0_10 = arith.constant 0 : index
      %c0_11 = arith.constant 0 : index
      %12 = vector.load %arg9[%c0_10, %c0_11] : memref<16x128xf32, #tpu.memory_space<vmem>>, vector<16x128xf32>
      %c0_12 = arith.constant 0 : index
      %c0_13 = arith.constant 0 : index
      %13 = vector.load %arg4[%c0_12, %c0_13] : memref<1x128xf32, #tpu.memory_space<vmem>>, vector<1x128xf32>
      %14 = vector.broadcast %13 : vector<1x128xf32> to vector<16x128xf32>
      %15 = arith.addf %12, %14 : vector<16x128xf32>
      %c0_14 = arith.constant 0 : index
      %c0_15 = arith.constant 0 : index
      %16 = vector.load %arg5[%c0_14, %c0_15] : memref<16x128xf32, #tpu.memory_space<vmem>>, vector<16x128xf32>
      %17 = arith.addf %15, %16 : vector<16x128xf32>
      %cst_16 = arith.constant dense<0.000000e+00> : vector<16xf32>
      %18 = vector.multi_reduction <add>, %17, %cst_16 [1] : vector<16x128xf32> to vector<16xf32>
      %19 = vector.shape_cast %18 : vector<16xf32> to vector<16x1xf32>
      %cst_17 = arith.constant 1.280000e+02 : f32
      %20 = vector.broadcast %cst_17 : f32 to vector<16x1xf32>
      %21 = arith.divf %19, %20 : vector<16x1xf32>
      %22 = vector.broadcast %21 : vector<16x1xf32> to vector<16x128xf32>
      %23 = arith.subf %17, %22 : vector<16x128xf32>
      %24 = arith.mulf %23, %23 : vector<16x128xf32>
      %cst_18 = arith.constant dense<0.000000e+00> : vector<16xf32>
      %25 = vector.multi_reduction <add>, %24, %cst_18 [1] : vector<16x128xf32> to vector<16xf32>
      %26 = vector.shape_cast %25 : vector<16xf32> to vector<16x1xf32>
      %cst_19 = arith.constant 1.280000e+02 : f32
      %27 = vector.broadcast %cst_19 : f32 to vector<16x1xf32>
      %28 = arith.divf %26, %27 : vector<16x1xf32>
      %29 = vector.broadcast %21 : vector<16x1xf32> to vector<16x128xf32>
      %30 = arith.subf %17, %29 : vector<16x128xf32>
      %cst_20 = arith.constant 9.99999974E-6 : f32
      %31 = vector.broadcast %cst_20 : f32 to vector<16x1xf32>
      %32 = arith.addf %28, %31 : vector<16x1xf32>
      %33 = math.rsqrt %32 : vector<16x1xf32>
      %34 = vector.broadcast %33 : vector<16x1xf32> to vector<16x128xf32>
      %35 = arith.mulf %30, %34 : vector<16x128xf32>
      %c0_21 = arith.constant 0 : index
      %c0_22 = arith.constant 0 : index
      %36 = vector.load %arg6[%c0_21, %c0_22] : memref<1x128xf32, #tpu.memory_space<vmem>>, vector<1x128xf32>
      %37 = vector.broadcast %36 : vector<1x128xf32> to vector<16x128xf32>
      %38 = arith.mulf %35, %37 : vector<16x128xf32>
      %c0_23 = arith.constant 0 : index
      %c0_24 = arith.constant 0 : index
      %39 = vector.load %arg7[%c0_23, %c0_24] : memref<1x128xf32, #tpu.memory_space<vmem>>, vector<1x128xf32>
      %40 = vector.broadcast %39 : vector<1x128xf32> to vector<16x128xf32>
      %41 = arith.addf %38, %40 : vector<16x128xf32>
      %c0_25 = arith.constant 0 : index
      %c0_26 = arith.constant 0 : index
      %42 = vector.load %arg8[%c0_25, %c0_26] : memref<16x128xf32, #tpu.memory_space<vmem>>, vector<16x128xf32>
      tpu.vector_store %arg8[%c0_25, %c0_26], %41 {strides = array<i32>} : memref<16x128xf32, #tpu.memory_space<vmem>>, vector<16x128xf32>,
    } else {
    }
    return
  }
  func.func @transform_0(%arg0: i32, %arg1: i32) -> (i32, i32) {
    %c0_i32 = arith.constant 0 : i32
    return %arg0, %arg1 : i32, i32
  }
  func.func @transform_1(%arg0: i32, %arg1: i32) -> (i32, i32) {
    %c0_i32 = arith.constant 0 : i32
    %c0_i32_0 = arith.constant 0 : i32
    return %arg1, %c0_i32 : i32, i32
  }
  func.func @transform_2(%arg0: i32, %arg1: i32) -> (i32, i32) {
    %c0_i32 = arith.constant 0 : i32
    %c0_i32_0 = arith.constant 0 : i32
    %c0_i32_1 = arith.constant 0 : i32
    return %c0_i32, %c0_i32_0 : i32, i32
  }
  func.func @transform_3(%arg0: i32, %arg1: i32) -> (i32, i32) {
    %c0_i32 = arith.constant 0 : i32
    %c0_i32_0 = arith.constant 0 : i32
    return %arg0, %c0_i32 : i32, i32
  }
  func.func @transform_4(%arg0: i32, %arg1: i32) -> (i32, i32) {
    %c0_i32 = arith.constant 0 : i32
    %c0_i32_0 = arith.constant 0 : i32
    %c0_i32_1 = arith.constant 0 : i32
    return %c0_i32, %c0_i32_0 : i32, i32
  }
  func.func @transform_5(%arg0: i32, %arg1: i32) -> (i32, i32) {
    %c0_i32 = arith.constant 0 : i32
    %c0_i32_0 = arith.constant 0 : i32
    %c0_i32_1 = arith.constant 0 : i32
    return %c0_i32, %c0_i32_0 : i32, i32
  }
  func.func @transform_6(%arg0: i32, %arg1: i32) -> (i32, i32) {
    %c0_i32 = arith.constant 0 : i32
    %c0_i32_0 = arith.constant 0 : i32
    return %arg0, %c0_i32 : i32, i32
  }
}

</mosaic_0001>

<llo_original>
// kernel: transformer_decoder_layer.9
$region0: #{transformer_decoder_layer.9}
  #allocation0 [shape = 'u32[]', space=smem, size = 0x4, offset = 0x4, fixed_abs, tag = 'smem constant byte address 0x4 - core index']
  #allocation1 [shape = 'u32[144,128]{1,0:T(1,128)}', space=vmem, size = 0x12000, scoped, tag = 'internal scratch']
  #allocation2 [shape = 'f32[16,128]{1,0:T(8,128)}', space=vmem, size = 0x2000, scoped, tag = 'scratch operand']
  %s0 = inlined_call_operand.vmem [shape: bf16[16,128], index: 0, kind: input, shape index: {}]
  %s1 = inlined_call_operand.hbm [shape: bf16[128,384], index: 1, kind: input, shape index: {}]
  %s2 = inlined_call_operand.vmem [shape: f32[1,384], index: 2, kind: input, shape index: {}]
  %s3 = inlined_call_operand.vmem [shape: bf16[16,384], index: 3, kind: output, shape index: {}]
  %s4 = sld [smem:[#allocation0]]
  $region94: #{transformer_decoder_layer.9} parent=0
    _
  %s6 = ssub.s32 1, %s4
  %s7 = scalar_select 0, %s6, %s4
  $region1: #{transformer_decoder_layer.9} parent=0
    #allocation3 [shape = 'u8[65536]{0}', space=vmem, size = 0x10000, scoped, tag = 'input window, operand 1']
    #allocation4 [shape = 's32[2]{0}', space=sflag, size = 0x8, scoped, tag = 'scoped memory for transformer_decoder_layer.9']
    #allocation5 [shape = 'u8[8192]{0}', space=vmem, size = 0x2000, scoped, tag = 'output window, operand 0']
    %8 = vsyncpa [#allocation4], 0
    %s9 = scalar_lea.sflag [#allocation4], 1
    %10 = vsyncpa %s9, 0
    loop: start=0, step=1, limit=5
    $region2: #{transformer_decoder_layer.9} parent=1 // loop_pre_header
      _
    $region3: #{transformer_decoder_layer.9} parent=1 // loop_header
      %s12 = sphi 0, %s16
      %p13 = scmp.ge.s32.totalorder %s12, 5
      %s19 = sphi 0, %s38
      %s20 = sphi 0, %s34
      %s21 = sphi 0, %s30
      %s22 = sphi 0, %s19
      %s23 = sphi 0, %s20
      %s24 = sphi 0, %s21
      %s25 = sphi 0, %s22
      %s26 = sphi 0, %s23
      %s27 = sphi 0, %s24
      %s43 = sphi 0, %s45
      %s46 = sphi 0, %s43
      %s47 = sphi 0, %s46
      %s63 = sphi 0, %s47
      %s71 = sphi 0, %s73
      %s74 = sphi 0, %s71
      %s75 = sphi 0, %s74
      %s91 = sphi 0, %s75
      %s97 = sphi 0, %s99
      %s100 = sphi 0, %s97
      %s101 = sphi 0, %s100
      %s117 = sphi 0, %s101
      %s125 = sphi 0, %s127
      %s128 = sphi 0, %s125
      %s129 = sphi 0, %s128
      %s145 = sphi 0, %s129
    $region4: #{transformer_decoder_layer.9} parent=1 // loop_header_branch
      %15 = sbr.rel (%p13) target = $region8
    $region5: #{transformer_decoder_layer.9} parent=1 // loop_body
      %s17 = ssub.s32 %s12, 1
      %s18 = ssub.s32 %s12, 2
      %s28 = sadd.s32 1, %s21
      %p29 = scmp.ge.s32.totalorder %s28, 1
      %s30 = scalar_select %p29, 0, %s28
      %s31 = sadd.s32 1, %s20
      %s32 = scalar_select %p29, %s31, %s20
      %p33 = scmp.ge.s32.totalorder %s32, 3
      %s34 = scalar_select %p33, 0, %s32
      %s35 = sadd.s32 1, %s19
      %s36 = scalar_select %p33, %s35, %s19
      %p37 = scmp.ge.s32.totalorder %s36, 1
      %s38 = scalar_select %p37, 0, %s36
      %s39 = ssub.s32 %s19, %s38
      %s40 = ssub.s32 %s21, %s30
      %s41 = sor.u32 %s39, %s40
      %p42 = scmp.eq.s32.totalorder %s41, 0
      %s44 = sadd.s32 %s43, 1
      %s45 = scalar_select %p42, %s43, %s44
      %p48 = pneg %p42
      %p49 = scmp.eq.s32.totalorder %s12, 2
      %p50 = por %p48, %p49
      %p51 = scmp.ne.s32.totalorder %s43, %s46
      %p52 = scmp.eq.s32.totalorder %s12, 0
      %p53 = por %p51, %p52
      %p54 = scmp.ne.s32.totalorder %s43, %s46
      %p55 = scmp.eq.s32.totalorder %s17, 2
      %p56 = por %p54, %p55
      %p57 = scmp.ne.s32.totalorder %s46, %s47
      %p58 = scmp.eq.s32.totalorder %s17, 0
      %p59 = por %p57, %p58
      %p60 = scmp.ne.s32.totalorder %s46, %s47
      %p61 = scmp.eq.s32.totalorder %s18, 2
      %p62 = por %p60, %p61
      %p64 = scmp.ne.s32.totalorder %s47, %s63
      %p65 = scmp.eq.s32.totalorder %s18, 0
      %p66 = por %p64, %p65
      %s67 = ssub.s32 %s21, %s30
      %s68 = ssub.s32 %s20, %s34
      %s69 = sor.u32 %s67, %s68
      %p70 = scmp.eq.s32.totalorder %s69, 0
      %s72 = sadd.s32 %s71, 1
      %s73 = scalar_select %p70, %s71, %s72
      %p76 = pneg %p70
      %p77 = scmp.eq.s32.totalorder %s12, 2
      %p78 = por %p76, %p77
      %p79 = scmp.ne.s32.totalorder %s71, %s74
      %p80 = scmp.eq.s32.totalorder %s12, 0
      %p81 = por %p79, %p80
      %p82 = scmp.ne.s32.totalorder %s71, %s74
      %p83 = scmp.eq.s32.totalorder %s17, 2
      %p84 = por %p82, %p83
      %p85 = scmp.ne.s32.totalorder %s74, %s75
      %p86 = scmp.eq.s32.totalorder %s17, 0
      %p87 = por %p85, %p86
      %p88 = scmp.ne.s32.totalorder %s74, %s75
      %p89 = scmp.eq.s32.totalorder %s18, 2
      %p90 = por %p88, %p89
      %p92 = scmp.ne.s32.totalorder %s75, %s91
      %p93 = scmp.eq.s32.totalorder %s18, 0
      %p94 = por %p92, %p93
      %s95 = ssub.s32 %s20, %s34
      %p96 = scmp.eq.s32.totalorder %s95, 0
      %s98 = sadd.s32 %s97, 1
      %s99 = scalar_select %p96, %s97, %s98
      %p102 = pneg %p96
      %p103 = scmp.eq.s32.totalorder %s12, 2
      %p104 = por %p102, %p103
      %p105 = scmp.ne.s32.totalorder %s97, %s100
      %p106 = scmp.eq.s32.totalorder %s12, 0
      %p107 = por %p105, %p106
      %p108 = scmp.ne.s32.totalorder %s97, %s100
      %p109 = scmp.eq.s32.totalorder %s17, 2
      %p110 = por %p108, %p109
      %p111 = scmp.ne.s32.totalorder %s100, %s101
      %p112 = scmp.eq.s32.totalorder %s17, 0
      %p113 = por %p111, %p112
      %p114 = scmp.ne.s32.totalorder %s100, %s101
      %p115 = scmp.eq.s32.totalorder %s18, 2
      %p116 = por %p114, %p115
      %p118 = scmp.ne.s32.totalorder %s101, %s117
      %p119 = scmp.eq.s32.totalorder %s18, 0
      %p120 = por %p118, %p119
      %s121 = ssub.s32 %s19, %s38
      %s122 = ssub.s32 %s20, %s34
      %s123 = sor.u32 %s121, %s122
      %p124 = scmp.eq.s32.totalorder %s123, 0
      %s126 = sadd.s32 %s125, 1
      %s127 = scalar_select %p124, %s125, %s126
      %p130 = pneg %p124
      %p131 = scmp.eq.s32.totalorder %s12, 2
      %p132 = por %p130, %p131
      %p133 = scmp.ne.s32.totalorder %s125, %s128
      %p134 = scmp.eq.s32.totalorder %s12, 0
      %p135 = por %p133, %p134
      %p136 = scmp.ne.s32.totalorder %s125, %s128
      %p137 = scmp.eq.s32.totalorder %s17, 2
      %p138 = por %p136, %p137
      %p139 = scmp.ne.s32.totalorder %s128, %s129
      %p140 = scmp.eq.s32.totalorder %s17, 0
      %p141 = por %p139, %p140
      %p142 = scmp.ne.s32.totalorder %s128, %s129
      %p143 = scmp.eq.s32.totalorder %s18, 2
      %p144 = por %p142, %p143
      %p146 = scmp.ne.s32.totalorder %s129, %s145
      %p147 = scmp.eq.s32.totalorder %s18, 0
      %p148 = por %p146, %p147
      %p149 = scmp.le.s32.totalorder 1, %s12
      %p150 = scmp.lt.s32.totalorder %s12, 4
      %p151 = pnand %p149, %p150
      %p152 = pneg %p151
      // Predicated region
      $region9: #{transformer_decoder_layer.9} parent=5 // pred_check
        _
      $region10: #{transformer_decoder_layer.9} parent=5 // pred_check_branch
        %154 = sbr.rel (%p151) target = $region12
      $region11: #{transformer_decoder_layer.9} parent=5 // pred_region
        %s155 = ssub.s32 %s12, 1
        // Predicated region
        $region13: #{transformer_decoder_layer.9} parent=11 // pred_check
          %p156 = pneg %p59
        $region14: #{transformer_decoder_layer.9} parent=11 // pred_check_branch
          %158 = sbr.rel (%p156) target = $region16
        $region15: #{transformer_decoder_layer.9} parent=11 // pred_region
          %s159 = smul.u32 2, %s22
          %p160 = scmp.lt.s32.totalorder %s159, 1
          %s161 = scalar_select %p160, %s159, 1
          %p162 = scmp.lt.s32.totalorder %s24, 0
          %s163 = scalar_select %p162, %s24, 0
          %s164 = sadd.s32 %s163, %s161
          %s165 = smul.addr %s164, 4
          %s166 = scalar_lea.vmem %s0, %s165
          %s167 = smul.u32 2, %s22
        $region16: #{transformer_decoder_layer.9} parent=11 // pred_fallthru
          _
      $region12: #{transformer_decoder_layer.9} parent=5 // pred_fallthru
        _
      %p168 = scmp.lt.s32.totalorder %s12, 3
      // Predicated region
      $region17: #{transformer_decoder_layer.9} parent=5 // pred_check
        %p169 = pneg %p168
      $region18: #{transformer_decoder_layer.9} parent=5 // pred_check_branch
        %171 = sbr.rel (%p169) target = $region20
      $region19: #{transformer_decoder_layer.9} parent=5 // pred_region
        // Predicated region
        $region21: #{transformer_decoder_layer.9} parent=19 // pred_check
          %p172 = pneg %p81
        $region22: #{transformer_decoder_layer.9} parent=19 // pred_check_branch
          %174 = sbr.rel (%p172) target = $region24
        $region23: #{transformer_decoder_layer.9} parent=19 // pred_region
          %s175 = sand.u32 %s71, 1
          %s176 = scalar_lea.sflag [#allocation4], %s175
          %s177 = sand.u32 %s71, 1
          %s178 = smul.addr %s177, 64
          %s179 = scalar_lea.vmem [#allocation3], %s178
          %s180 = smul.u32 16, %s21
          %s182 = ssub.s32 1024, 1024
          %183 = vsyncadd %s176, %s182
          %s184 = smul.addr %s180, 3
          %s185 = sadd.s32 %s20, %s184
          %s186 = smul.addr %s185, 64
          %s187 = scalar_lea.hbm %s1, %s186
          %s188 = sshll.u32 %s179, 4
          %s189 = int_to_ptr.vmem [resolvable:$true] %s188
          %194 = dma.hbm_to_vmem [thread:$0]  %s187, 1024, %s189, %s176, 192, 64, 4
        $region24: #{transformer_decoder_layer.9} parent=19 // pred_fallthru
          _
        // Predicated region
        $region25: #{transformer_decoder_layer.9} parent=19 // pred_check
          %p195 = pneg %p107
        $region26: #{transformer_decoder_layer.9} parent=19 // pred_check_branch
          %197 = sbr.rel (%p195) target = $region28
        $region27: #{transformer_decoder_layer.9} parent=19 // pred_region
          %p198 = scmp.lt.s32.totalorder %s20, 2
          %s199 = scalar_select %p198, %s20, 2
          %s200 = scalar_lea.vmem %s2, %s199
        $region28: #{transformer_decoder_layer.9} parent=19 // pred_fallthru
          _
      $region20: #{transformer_decoder_layer.9} parent=5 // pred_fallthru
        _
      %p201 = scmp.le.s32.totalorder 1, %s12
      %p202 = scmp.lt.s32.totalorder %s12, 4
      %p203 = pnand %p201, %p202
      %p204 = pneg %p203
      // Predicated region
      $region29: #{transformer_decoder_layer.9} parent=5 // pred_check
        _
      $region30: #{transformer_decoder_layer.9} parent=5 // pred_check_branch
        %206 = sbr.rel (%p203) target = $region32
      $region31: #{transformer_decoder_layer.9} parent=5 // pred_region
        %s207 = ssub.s32 %s12, 1
        %s208 = sand.u32 %s74, 1
        %s209 = scalar_lea.sflag [#allocation4], %s208
        %s210 = sand.u32 %s74, 1
        %s211 = smul.addr %s210, 64
        %s212 = scalar_lea.vmem [#allocation3], %s211
        // Predicated region
        $region33: #{transformer_decoder_layer.9} parent=31 // pred_check
          %p213 = pneg %p87
        $region34: #{transformer_decoder_layer.9} parent=31 // pred_check_branch
          %215 = sbr.rel (%p213) target = $region36
        $region35: #{transformer_decoder_layer.9} parent=31 // pred_region
          %216 = dma.done %s209, 1024
        $region36: #{transformer_decoder_layer.9} parent=31 // pred_fallthru
          _
        %s217 = smul.u32 2, %s22
        %p218 = scmp.lt.s32.totalorder %s217, 1
        %s219 = scalar_select %p218, %s217, 1
        %p220 = scmp.lt.s32.totalorder %s24, 0
        %s221 = scalar_select %p220, %s24, 0
        %s222 = sadd.s32 %s221, %s219
        %s223 = smul.addr %s222, 4
        %s224 = scalar_lea.vmem %s0, %s223
        %p225 = pneg %p59
        %p226 = pneg %p56
        %s227 = sand.u32 %s74, 1
        %s228 = scalar_lea.sflag [#allocation4], %s227
        %s229 = sand.u32 %s74, 1
        %s230 = smul.addr %s229, 64
        %s231 = scalar_lea.vmem [#allocation3], %s230
        %p232 = pneg %p87
        %p233 = pneg %p84
        %p234 = scmp.lt.s32.totalorder %s23, 2
        %s235 = scalar_select %p234, %s23, 2
        %s236 = scalar_lea.vmem %s2, %s235
        %p237 = pneg %p113
        %p238 = pneg %p110
        %p239 = pneg %p141
        %p240 = pneg %p138
        %s241 = sand.u32 %s128, 1
        %s242 = sand.u32 %s128, 1
        %s243 = smul.addr %s242, 8
        %s244 = scalar_lea.vmem [#allocation5], %s243
        %s245 = smul.u32 2, %s22
        %p246 = scmp.lt.s32.totalorder %s245, 1
        %s247 = scalar_select %p246, %s245, 1
        %p248 = scmp.lt.s32.totalorder %s24, 0
        %s249 = scalar_select %p248, %s24, 0
        %s250 = sadd.s32 %s249, %s247
        %s251 = smul.addr %s250, 4
        %s252 = scalar_lea.vmem %s0, %s251
        %s253 = smul.u32 2, %s22
        %s254 = smul.u32 16, %s24
        %p255 = scmp.lt.s32.totalorder %s23, 2
        %s256 = scalar_select %p255, %s23, 2
        %s257 = scalar_lea.vmem %s2, %s256
        %s258 = smul.u32 2, %s22
        %p260 = scmp.eq.s32.totalorder %s24, 0
        // Predicated region
        $region37: #{transformer_decoder_layer.9} parent=31 // pred_check
          %p261 = pneg %p260
        $region38: #{transformer_decoder_layer.9} parent=31 // pred_check_branch
          %263 = sbr.rel (%p261) target = $region40
        $region39: #{transformer_decoder_layer.9} parent=31 // pred_region
          %264 = vst [vmem:[#allocation2] sm:$0xff] 0.0
          %265 = vst [vmem:[#allocation2 + $0x8] sm:$0xff] 0.0
        $region40: #{transformer_decoder_layer.9} parent=31 // pred_fallthru
          _
        %v266 = vld [vmem:[#allocation2] sm:$0xff]
        %v267 = vld [vmem:[#allocation2 + $0x8] sm:$0xff]
        %v268 = vld [vmem:[%s252] sm:$0xf]
        %v269 = vld [vmem:[%s252 + $0x4] sm:$0xf]
        %v270 = vld [vmem:[%s212] sm:$0xf]
        %v271 = vld [vmem:[%s212 + $0x4] sm:$0xf]
        %v272 = vld [vmem:[%s212 + $0x8] sm:$0xf]
        %v273 = vld [vmem:[%s212 + $0xc] sm:$0xf]
        %v274 = vld [vmem:[%s212 + $0x10] sm:$0xf]
        %v275 = vld [vmem:[%s212 + $0x14] sm:$0xf]
        %v276 = vld [vmem:[%s212 + $0x18] sm:$0xf]
        %v277 = vld [vmem:[%s212 + $0x1c] sm:$0xf]
        %v278 = vld [vmem:[%s212 + $0x20] sm:$0xf]
        %v279 = vld [vmem:[%s212 + $0x24] sm:$0xf]
        %v280 = vld [vmem:[%s212 + $0x28] sm:$0xf]
        %v281 = vld [vmem:[%s212 + $0x2c] sm:$0xf]
        %v282 = vld [vmem:[%s212 + $0x30] sm:$0xf]
        %v283 = vld [vmem:[%s212 + $0x34] sm:$0xf]
        %v284 = vld [vmem:[%s212 + $0x38] sm:$0xf]
        %v285 = vld [vmem:[%s212 + $0x3c] sm:$0xf]
        %v288 = vunpack.c.l.b16 %v268
        %v289 = vunpack.c.l.b16 %v269
        %v290 = vpack.c.b16 %v289, %v288
        %v308 = vunpack.c.l.b16 %v270
        %v309 = vunpack.c.l.b16 %v271
        %v310 = vunpack.c.l.b16 %v272
        %v311 = vunpack.c.l.b16 %v273
        %v312 = vunpack.c.l.b16 %v274
        %v313 = vunpack.c.l.b16 %v275
        %v314 = vunpack.c.l.b16 %v276
        %v315 = vunpack.c.l.b16 %v277
        %v316 = vunpack.c.l.b16 %v278
        %v317 = vunpack.c.l.b16 %v279
        %v318 = vunpack.c.l.b16 %v280
        %v319 = vunpack.c.l.b16 %v281
        %v320 = vunpack.c.l.b16 %v282
        %v321 = vunpack.c.l.b16 %v283
        %v322 = vunpack.c.l.b16 %v284
        %v323 = vunpack.c.l.b16 %v285
        %v324 = vpack.c.b16 %v309, %v308
        %v325 = vpack.c.b16 %v311, %v310
        %v326 = vpack.c.b16 %v313, %v312
        %v327 = vpack.c.b16 %v315, %v314
        %v328 = vpack.c.b16 %v317, %v316
        %v329 = vpack.c.b16 %v319, %v318
        %v330 = vpack.c.b16 %v321, %v320
        %v331 = vpack.c.b16 %v323, %v322
        %340 = vmatprep.subr.bf16.mxu0 0
        %341 = vmatpush1.bf16.msra.mxu0 %v324
        %342 = vmatprep.subr.bf16.mxu0 0
        %343 = vmatpush1.bf16.msra.mxu0 %v325
        %344 = vmatprep.subr.bf16.mxu0 0
        %345 = vmatpush1.bf16.msra.mxu0 %v326
        %346 = vmatprep.subr.bf16.mxu0 0
        %347 = vmatpush1.bf16.msra.mxu0 %v327
        %348 = vmatprep.subr.bf16.mxu0 0
        %349 = vmatpush1.bf16.msra.mxu0 %v328
        %350 = vmatprep.subr.bf16.mxu0 0
        %351 = vmatpush1.bf16.msra.mxu0 %v329
        %352 = vmatprep.subr.bf16.mxu0 0
        %353 = vmatpush1.bf16.msra.mxu0 %v330
        %354 = vmatprep.subr.bf16.mxu0 0
        %355 = vmatpush1.bf16.msra.mxu0 %v331
        %356 = vmatprep.subr.bf16.mxu0 0
        %357 = vmatpush1.bf16.msra.mxu0 0
        %358 = vmatprep.subr.bf16.mxu0 0
        %359 = vmatpush1.bf16.msra.mxu0 0
        %360 = vmatprep.subr.bf16.mxu0 0
        %361 = vmatpush1.bf16.msra.mxu0 0
        %362 = vmatprep.subr.bf16.mxu0 0
        %363 = vmatpush1.bf16.msra.mxu0 0
        %364 = vmatprep.subr.bf16.mxu0 0
        %365 = vmatpush1.bf16.msra.mxu0 0
        %366 = vmatprep.subr.bf16.mxu0 0
        %367 = vmatpush1.bf16.msra.mxu0 0
        %368 = vmatprep.subr.bf16.mxu0 0
        %369 = vmatpush1.bf16.msra.mxu0 0
        %370 = vmatprep.subr.bf16.mxu0 0
        %371 = vmatpush1.bf16.msra.mxu0 0
        %372 = vmatprep.mubr.bf16.mxu0 0
        %373 = vmatmul.mubr.bf16.gmra.mrb[0].mxu0 %v290
        %v374 = vpop.f32.mrb[0].mxu0
        %v375 = vadd.f32 0.0, %v374
        %v376 = vpop.f32.mrb[0].mxu0
        %v377 = vpop.f32.mrb[0].mxu0
        %v378 = vadd.f32 0.0, %v377
        %v379 = vpop.f32.mrb[0].mxu0
        %380 = vdwg.mxu0
        %v381 = vadd.f32 %v266, %v375
        %v382 = vadd.f32 %v267, %v378
        %383 = vst [vmem:[#allocation2] sm:$0xff] %v381
        %384 = vst [vmem:[#allocation2 + $0x8] sm:$0xff] %v382
        // Predicated region
        $region41: #{transformer_decoder_layer.9} parent=31 // pred_check
          %p385 = pneg %p260
        $region42: #{transformer_decoder_layer.9} parent=31 // pred_check_branch
          %387 = sbr.rel (%p385) target = $region44
        $region43: #{transformer_decoder_layer.9} parent=31 // pred_region
          %v388 = vld [vmem:[#allocation2] sm:$0xff]
          %v389 = vld [vmem:[#allocation2 + $0x8] sm:$0xff]
          %v390 = vld [vmem:[%s257] sm:$0x1]
          %v392 = vlaneseq
          %v393 = vshrl.u32 %v392, 7
          %v394 = vsub.s32 0, %v393
          %v395 = vrot.slane %v390, %v394
          %v397 = vadd.f32 %v388, %v395
          %v398 = vadd.f32 %v389, %v395
          %v399 = vpack.c.bf16 %v398, %v397
          %v401 = vunpack.c.l.b16 %v399
          %v402 = vunpack.c.h.b16 %v399
          %v403 = vpack.c.b16 %v401, %v401
          %v404 = vpack.c.b16 %v402, %v402
          %407 = vst [vmem:[%s244] sm:$0xf] %v403
          %408 = vst [vmem:[%s244 + $0x4] sm:$0xf] %v404
        $region44: #{transformer_decoder_layer.9} parent=31 // pred_fallthru
          _
        %s409 = sand.u32 %s128, 1
        %s410 = sand.u32 %s128, 1
        %s411 = smul.addr %s410, 8
        %s412 = scalar_lea.vmem [#allocation5], %s411
        // Predicated region
        $region45: #{transformer_decoder_layer.9} parent=31 // pred_check
          %p413 = pneg %p138
        $region46: #{transformer_decoder_layer.9} parent=31 // pred_check_branch
          %415 = sbr.rel (%p413) target = $region48
        $region47: #{transformer_decoder_layer.9} parent=31 // pred_region
          %s416 = smul.u32 2, %s22
          %s417 = smul.addr %s416, 3
          %s418 = sadd.s32 %s23, %s417
          %s419 = smul.addr %s418, 4
          %s420 = scalar_lea.vmem %s3, %s419
          // Predicated region
          $region49: #{transformer_decoder_layer.9} parent=47 // pred_check
            _
          $region50: #{transformer_decoder_layer.9} parent=47 // pred_check_branch
            %422 = sbr.rel (0) target = $region52
          $region51: #{transformer_decoder_layer.9} parent=47 // pred_region
            // Predicated region
            $region53: #{transformer_decoder_layer.9} parent=51 // pred_check
              _
            $region54: #{transformer_decoder_layer.9} parent=51 // pred_check_branch
              %424 = sbr.rel target = $region56
            $region55: #{transformer_decoder_layer.9} parent=51 // pred_region
              // Predicated region
              $region68: #{transformer_decoder_layer.9} parent=55 // pred_check
                _
              $region69: #{transformer_decoder_layer.9} parent=55 // pred_check_branch
                %441 = sbr.rel (0) target = $region71
              $region70: #{transformer_decoder_layer.9} parent=55 // pred_region
                loop: start=0, step=1, limit=1
                $region72: #{transformer_decoder_layer.9} parent=70 // loop_pre_header
                  _
                $region73: #{transformer_decoder_layer.9} parent=70 // loop_header
                  %s443 = sphi 0, %s447
                  %p444 = scmp.ge.s32.totalorder %s443, 1
                  %s448 = sphi %s412, %s412
                  %s449 = sphi %s420, %s420
                $region74: #{transformer_decoder_layer.9} parent=70 // loop_header_branch
                  %446 = sbr.rel (%p444) target = $region78
                $region75: #{transformer_decoder_layer.9} parent=70 // loop_body
                  _
                $region76: #{transformer_decoder_layer.9} parent=70 // loop_footer
                  %s447 = sadd.s32 1, %s443
                $region77: #{transformer_decoder_layer.9} parent=70 // loop_footer_branch
                  %442 = sbr.rel target = $region73
                $region78: #{transformer_decoder_layer.9} parent=70 // loop_exit
                  _
                loop: start=0, step=1, limit=1
                $region79: #{transformer_decoder_layer.9} parent=70 // loop_pre_header
                  _
                $region80: #{transformer_decoder_layer.9} parent=70 // loop_header
                  %s452 = sphi 0, %s456
                  %p453 = scmp.ge.s32.totalorder %s452, 1
                  %s457 = sphi %s412, %s412
                  %s458 = sphi %s420, %s420
                $region81: #{transformer_decoder_layer.9} parent=70 // loop_header_branch
                  %455 = sbr.rel (%p453) target = $region85
                $region82: #{transformer_decoder_layer.9} parent=70 // loop_body
                  %v459 = vld [vmem:[%s457] sm:$0xf]
                  %460 = vst [vmem:[%s458] sm:$0xf] %v459
                  %v461 = vld [vmem:[%s457 + $0x4] sm:$0xf]
                  %462 = vst [vmem:[%s458 + $0xc] sm:$0xf] %v461
                $region83: #{transformer_decoder_layer.9} parent=70 // loop_footer
                  %s456 = sadd.s32 1, %s452
                $region84: #{transformer_decoder_layer.9} parent=70 // loop_footer_branch
                  %451 = sbr.rel target = $region80
                $region85: #{transformer_decoder_layer.9} parent=70 // loop_exit
                  _
              $region71: #{transformer_decoder_layer.9} parent=55 // pred_fallthru
                _
            $region56: #{transformer_decoder_layer.9} parent=51 // pred_fallthru
              _
            // Predicated region
            $region57: #{transformer_decoder_layer.9} parent=51 // pred_check
              _
            $region58: #{transformer_decoder_layer.9} parent=51 // pred_check_branch
              %426 = sbr.rel (0) target = $region60
            $region59: #{transformer_decoder_layer.9} parent=51 // pred_region
              loop: start=0, step=1, limit=1
              $region61: #{transformer_decoder_layer.9} parent=59 // loop_pre_header
                _
              $region62: #{transformer_decoder_layer.9} parent=59 // loop_header
                %s429 = sphi 0, %s433
                %p430 = scmp.ge.s32.totalorder %s429, 1
                %s434 = sphi %s412, %s412
                %s435 = sphi %s420, %s420
              $region63: #{transformer_decoder_layer.9} parent=59 // loop_header_branch
                %432 = sbr.rel (%p430) target = $region67
              $region64: #{transformer_decoder_layer.9} parent=59 // loop_body
                %v436 = vld [vmem:[%s434] sm:$0xf]
                %437 = vst [vmem:[%s435] sm:$0xf] %v436
                %v438 = vld [vmem:[%s434 + $0x4] sm:$0xf]
                %439 = vst [vmem:[%s435 + $0xc] sm:$0xf] %v438
              $region65: #{transformer_decoder_layer.9} parent=59 // loop_footer
                %s433 = sadd.s32 1, %s429
              $region66: #{transformer_decoder_layer.9} parent=59 // loop_footer_branch
                %428 = sbr.rel target = $region62
              $region67: #{transformer_decoder_layer.9} parent=59 // loop_exit
                _
            $region60: #{transformer_decoder_layer.9} parent=51 // pred_fallthru
              _
          $region52: #{transformer_decoder_layer.9} parent=47 // pred_fallthru
            _
          %463 = vnop
        $region48: #{transformer_decoder_layer.9} parent=31 // pred_fallthru
          _
      $region32: #{transformer_decoder_layer.9} parent=5 // pred_fallthru
        _
      %p464 = scmp.le.s32.totalorder 2, %s12
      // Predicated region
      $region86: #{transformer_decoder_layer.9} parent=5 // pred_check
        %p465 = pneg %p464
      $region87: #{transformer_decoder_layer.9} parent=5 // pred_check_branch
        %467 = sbr.rel (%p465) target = $region89
      $region88: #{transformer_decoder_layer.9} parent=5 // pred_region
        %s468 = ssub.s32 %s12, 2
        // Predicated region
        $region90: #{transformer_decoder_layer.9} parent=88 // pred_check
          %p469 = pneg %p144
        $region91: #{transformer_decoder_layer.9} parent=88 // pred_check_branch
          %471 = sbr.rel (%p469) target = $region93
        $region92: #{transformer_decoder_layer.9} parent=88 // pred_region
          %s472 = sand.u32 %s129, 1
          %s473 = sand.u32 %s129, 1
          %s474 = smul.addr %s473, 8
          %s475 = scalar_lea.vmem [#allocation5], %s474
        $region93: #{transformer_decoder_layer.9} parent=88 // pred_fallthru
          _
      $region89: #{transformer_decoder_layer.9} parent=5 // pred_fallthru
        _
    $region6: #{transformer_decoder_layer.9} parent=1 // loop_footer
      %s16 = sadd.s32 1, %s12
    $region7: #{transformer_decoder_layer.9} parent=1 // loop_footer_branch
      %11 = sbr.rel target = $region3
    $region8: #{transformer_decoder_layer.9} parent=1 // loop_exit
      _
    %476 = vsyncpa [#allocation4], 1
    %s477 = scalar_lea.sflag [#allocation4], 1
    %478 = vsyncpa %s477, 1

// kernel: transformer_decoder_layer.12
$region0: #{transformer_decoder_layer.12}
  #allocation0 [shape = 'u32[]', space=smem, size = 0x4, offset = 0x4, fixed_abs, tag = 'smem constant byte address 0x4 - core index']
  #allocation1 [shape = 'u32[144,128]{1,0:T(1,128)}', space=vmem, size = 0x12000, scoped, tag = 'internal scratch']
  #allocation2 [shape = 'f32[16,128]{1,0:T(8,128)}', space=vmem, size = 0x2000, scoped, tag = 'scratch operand']
  %s0 = inlined_call_operand.vmem [shape: bf16[16,128], index: 0, kind: input, shape index: {}]
  %s1 = inlined_call_operand.vmem [shape: bf16[128,128], index: 1, kind: input, shape index: {}]
  %s2 = inlined_call_operand.vmem [shape: f32[1,128], index: 2, kind: input, shape index: {}]
  %s3 = inlined_call_operand.vmem [shape: bf16[16,128], index: 3, kind: output, shape index: {}]
  %s4 = sld [smem:[#allocation0]]
  $region30: #{transformer_decoder_layer.12} parent=0
    _
  %s6 = ssub.s32 1, %s4
  %s7 = scalar_select 0, %s6, %s4
  // Predicated region
  $region2: #{transformer_decoder_layer.12} parent=0 // pred_check
    _
  $region3: #{transformer_decoder_layer.12} parent=0 // pred_check_branch
    %9 = sbr.rel (0) target = $region5
  $region4: #{transformer_decoder_layer.12} parent=0 // pred_region
    _
  $region5: #{transformer_decoder_layer.12} parent=0 // pred_fallthru
    _
  // Predicated region
  $region6: #{transformer_decoder_layer.12} parent=0 // pred_check
    _
  $region7: #{transformer_decoder_layer.12} parent=0 // pred_check_branch
    %11 = sbr.rel (0) target = $region9
  $region8: #{transformer_decoder_layer.12} parent=0 // pred_region
    _
  $region9: #{transformer_decoder_layer.12} parent=0 // pred_fallthru
    _
  // Predicated region
  $region10: #{transformer_decoder_layer.12} parent=0 // pred_check
    _
  $region11: #{transformer_decoder_layer.12} parent=0 // pred_check_branch
    %13 = sbr.rel (0) target = $region13
  $region12: #{transformer_decoder_layer.12} parent=0 // pred_region
    _
  $region13: #{transformer_decoder_layer.12} parent=0 // pred_fallthru
    _
  %p15 = scmp.eq.s32.totalorder 0, 0
  // Predicated region
  $region14: #{transformer_decoder_layer.12} parent=0 // pred_check
    %p16 = pneg %p15
  $region15: #{transformer_decoder_layer.12} parent=0 // pred_check_branch
    %18 = sbr.rel (%p16) target = $region17
  $region16: #{transformer_decoder_layer.12} parent=0 // pred_region
    %19 = vst [vmem:[#allocation2] sm:$0xff] 0.0
    %20 = vst [vmem:[#allocation2 + $0x8] sm:$0xff] 0.0
  $region17: #{transformer_decoder_layer.12} parent=0 // pred_fallthru
    _
  %v21 = vld [vmem:[#allocation2] sm:$0xff]
  %v22 = vld [vmem:[#allocation2 + $0x8] sm:$0xff]
  %v23 = vld [vmem:[%s0] sm:$0xf]
  %v24 = vld [vmem:[%s0 + $0x4] sm:$0xf]
  %v25 = vld [vmem:[%s1] sm:$0xf]
  %v26 = vld [vmem:[%s1 + $0x4] sm:$0xf]
  %v27 = vld [vmem:[%s1 + $0x8] sm:$0xf]
  %v28 = vld [vmem:[%s1 + $0xc] sm:$0xf]
  %v29 = vld [vmem:[%s1 + $0x10] sm:$0xf]
  %v30 = vld [vmem:[%s1 + $0x14] sm:$0xf]
  %v31 = vld [vmem:[%s1 + $0x18] sm:$0xf]
  %v32 = vld [vmem:[%s1 + $0x1c] sm:$0xf]
  %v33 = vld [vmem:[%s1 + $0x20] sm:$0xf]
  %v34 = vld [vmem:[%s1 + $0x24] sm:$0xf]
  %v35 = vld [vmem:[%s1 + $0x28] sm:$0xf]
  %v36 = vld [vmem:[%s1 + $0x2c] sm:$0xf]
  %v37 = vld [vmem:[%s1 + $0x30] sm:$0xf]
  %v38 = vld [vmem:[%s1 + $0x34] sm:$0xf]
  %v39 = vld [vmem:[%s1 + $0x38] sm:$0xf]
  %v40 = vld [vmem:[%s1 + $0x3c] sm:$0xf]
  %v43 = vunpack.c.l.b16 %v23
  %v44 = vunpack.c.l.b16 %v24
  %v45 = vpack.c.b16 %v44, %v43
  %v63 = vunpack.c.l.b16 %v25
  %v64 = vunpack.c.l.b16 %v26
  %v65 = vunpack.c.l.b16 %v27
  %v66 = vunpack.c.l.b16 %v28
  %v67 = vunpack.c.l.b16 %v29
  %v68 = vunpack.c.l.b16 %v30
  %v69 = vunpack.c.l.b16 %v31
  %v70 = vunpack.c.l.b16 %v32
  %v71 = vunpack.c.l.b16 %v33
  %v72 = vunpack.c.l.b16 %v34
  %v73 = vunpack.c.l.b16 %v35
  %v74 = vunpack.c.l.b16 %v36
  %v75 = vunpack.c.l.b16 %v37
  %v76 = vunpack.c.l.b16 %v38
  %v77 = vunpack.c.l.b16 %v39
  %v78 = vunpack.c.l.b16 %v40
  %v79 = vpack.c.b16 %v64, %v63
  %v80 = vpack.c.b16 %v66, %v65
  %v81 = vpack.c.b16 %v68, %v67
  %v82 = vpack.c.b16 %v70, %v69
  %v83 = vpack.c.b16 %v72, %v71
  %v84 = vpack.c.b16 %v74, %v73
  %v85 = vpack.c.b16 %v76, %v75
  %v86 = vpack.c.b16 %v78, %v77
  %95 = vmatprep.subr.bf16.mxu0 0
  %96 = vmatpush1.bf16.msra.mxu0 %v79
  %97 = vmatprep.subr.bf16.mxu0 0
  %98 = vmatpush1.bf16.msra.mxu0 %v80
  %99 = vmatprep.subr.bf16.mxu0 0
  %100 = vmatpush1.bf16.msra.mxu0 %v81
  %101 = vmatprep.subr.bf16.mxu0 0
  %102 = vmatpush1.bf16.msra.mxu0 %v82
  %103 = vmatprep.subr.bf16.mxu0 0
  %104 = vmatpush1.bf16.msra.mxu0 %v83
  %105 = vmatprep.subr.bf16.mxu0 0
  %106 = vmatpush1.bf16.msra.mxu0 %v84
  %107 = vmatprep.subr.bf16.mxu0 0
  %108 = vmatpush1.bf16.msra.mxu0 %v85
  %109 = vmatprep.subr.bf16.mxu0 0
  %110 = vmatpush1.bf16.msra.mxu0 %v86
  %111 = vmatprep.subr.bf16.mxu0 0
  %112 = vmatpush1.bf16.msra.mxu0 0
  %113 = vmatprep.subr.bf16.mxu0 0
  %114 = vmatpush1.bf16.msra.mxu0 0
  %115 = vmatprep.subr.bf16.mxu0 0
  %116 = vmatpush1.bf16.msra.mxu0 0
  %117 = vmatprep.subr.bf16.mxu0 0
  %118 = vmatpush1.bf16.msra.mxu0 0
  %119 = vmatprep.subr.bf16.mxu0 0
  %120 = vmatpush1.bf16.msra.mxu0 0
  %121 = vmatprep.subr.bf16.mxu0 0
  %122 = vmatpush1.bf16.msra.mxu0 0
  %123 = vmatprep.subr.bf16.mxu0 0
  %124 = vmatpush1.bf16.msra.mxu0 0
  %125 = vmatprep.subr.bf16.mxu0 0
  %126 = vmatpush1.bf16.msra.mxu0 0
  %127 = vmatprep.mubr.bf16.mxu0 0
  %128 = vmatmul.mubr.bf16.gmra.mrb[0].mxu0 %v45
  %v129 = vpop.f32.mrb[0].mxu0
  %v130 = vadd.f32 0.0, %v129
  %v131 = vpop.f32.mrb[0].mxu0
  %v132 = vpop.f32.mrb[0].mxu0
  %v133 = vadd.f32 0.0, %v132
  %v134 = vpop.f32.mrb[0].mxu0
  %135 = vdwg.mxu0
  %v136 = vadd.f32 %v21, %v130
  %v137 = vadd.f32 %v22, %v133
  %138 = vst [vmem:[#allocation2] sm:$0xff] %v136
  %139 = vst [vmem:[#allocation2 + $0x8] sm:$0xff] %v137
  // Predicated region
  $region18: #{transformer_decoder_layer.12} parent=0 // pred_check
    %p140 = pneg %p15
  $region19: #{transformer_decoder_layer.12} parent=0 // pred_check_branch
    %142 = sbr.rel (%p140) target = $region21
  $region20: #{transformer_decoder_layer.12} parent=0 // pred_region
    %v143 = vld [vmem:[#allocation2] sm:$0xff]
    %v144 = vld [vmem:[#allocation2 + $0x8] sm:$0xff]
    %v145 = vld [vmem:[%s2] sm:$0x1]
    %v147 = vlaneseq
    %v148 = vshrl.u32 %v147, 7
    %v149 = vsub.s32 0, %v148
    %v150 = vrot.slane %v145, %v149
    %v152 = vadd.f32 %v143, %v150
    %v153 = vadd.f32 %v144, %v150
    %v154 = vpack.c.bf16 %v153, %v152
    %v156 = vunpack.c.l.b16 %v154
    %v157 = vunpack.c.h.b16 %v154
    %v158 = vpack.c.b16 %v156, %v156
    %v159 = vpack.c.b16 %v157, %v157
    %162 = vst [vmem:[%s3] sm:$0xf] %v158
    %163 = vst [vmem:[%s3 + $0x4] sm:$0xf] %v159
  $region21: #{transformer_decoder_layer.12} parent=0 // pred_fallthru
    _
  // Predicated region
  $region22: #{transformer_decoder_layer.12} parent=0 // pred_check
    _
  $region23: #{transformer_decoder_layer.12} parent=0 // pred_check_branch
    %165 = sbr.rel (0) target = $region25
  $region24: #{transformer_decoder_layer.12} parent=0 // pred_region
    _
  $region25: #{transformer_decoder_layer.12} parent=0 // pred_fallthru
    _
  // Predicated region
  $region26: #{transformer_decoder_layer.12} parent=0 // pred_check
    _
  $region27: #{transformer_decoder_layer.12} parent=0 // pred_check_branch
    %167 = sbr.rel (0) target = $region29
  $region28: #{transformer_decoder_layer.12} parent=0 // pred_region
    _
  $region29: #{transformer_decoder_layer.12} parent=0 // pred_fallthru
    _

// kernel: transformer_decoder_layer.11
$region0: #{transformer_decoder_layer.11}
  #allocation0 [shape = 'u32[]', space=smem, size = 0x4, offset = 0x4, fixed_abs, tag = 'smem constant byte address 0x4 - core index']
  #allocation1 [shape = 'u32[144,128]{1,0:T(1,128)}', space=vmem, size = 0x12000, scoped, tag = 'internal scratch']
  #allocation2 [shape = 'f32[16,128]{1,0:T(8,128)}', space=vmem, size = 0x2000, scoped, tag = 'scratch operand']
  %s0 = inlined_call_operand.vmem [shape: bf16[16,128], index: 0, kind: input, shape index: {}]
  %s1 = inlined_call_operand.vmem [shape: bf16[128,128], index: 1, kind: input, shape index: {}]
  %s2 = inlined_call_operand.vmem [shape: f32[1,128], index: 2, kind: input, shape index: {}]
  %s3 = inlined_call_operand.vmem [shape: f32[16,128], index: 3, kind: input, shape index: {}]
  %s4 = inlined_call_operand.vmem [shape: f32[1,128], index: 4, kind: input, shape index: {}]
  %s5 = inlined_call_operand.vmem [shape: f32[1,128], index: 5, kind: input, shape index: {}]
  %s6 = inlined_call_operand.vmem [shape: f32[16,128], index: 6, kind: output, shape index: {}]
  %s7 = sld [smem:[#allocation0]]
  $region42: #{transformer_decoder_layer.11} parent=0
    _
  %s9 = ssub.s32 1, %s7
  %s10 = scalar_select 0, %s9, %s7
  // Predicated region
  $region2: #{transformer_decoder_layer.11} parent=0 // pred_check
    _
  $region3: #{transformer_decoder_layer.11} parent=0 // pred_check_branch
    %12 = sbr.rel (0) target = $region5
  $region4: #{transformer_decoder_layer.11} parent=0 // pred_region
    _
  $region5: #{transformer_decoder_layer.11} parent=0 // pred_fallthru
    _
  // Predicated region
  $region6: #{transformer_decoder_layer.11} parent=0 // pred_check
    _
  $region7: #{transformer_decoder_layer.11} parent=0 // pred_check_branch
    %14 = sbr.rel (0) target = $region9
  $region8: #{transformer_decoder_layer.11} parent=0 // pred_region
    _
  $region9: #{transformer_decoder_layer.11} parent=0 // pred_fallthru
    _
  // Predicated region
  $region10: #{transformer_decoder_layer.11} parent=0 // pred_check
    _
  $region11: #{transformer_decoder_layer.11} parent=0 // pred_check_branch
    %16 = sbr.rel (0) target = $region13
  $region12: #{transformer_decoder_layer.11} parent=0 // pred_region
    _
  $region13: #{transformer_decoder_layer.11} parent=0 // pred_fallthru
    _
  // Predicated region
  $region14: #{transformer_decoder_layer.11} parent=0 // pred_check
    _
  $region15: #{transformer_decoder_layer.11} parent=0 // pred_check_branch
    %18 = sbr.rel (0) target = $region17
  $region16: #{transformer_decoder_layer.11} parent=0 // pred_region
    _
  $region17: #{transformer_decoder_layer.11} parent=0 // pred_fallthru
    _
  // Predicated region
  $region18: #{transformer_decoder_layer.11} parent=0 // pred_check
    _
  $region19: #{transformer_decoder_layer.11} parent=0 // pred_check_branch
    %20 = sbr.rel (0) target = $region21
  $region20: #{transformer_decoder_layer.11} parent=0 // pred_region
    _
  $region21: #{transformer_decoder_layer.11} parent=0 // pred_fallthru
    _
  // Predicated region
  $region22: #{transformer_decoder_layer.11} parent=0 // pred_check
    _
  $region23: #{transformer_decoder_layer.11} parent=0 // pred_check_branch
    %22 = sbr.rel (0) target = $region25
  $region24: #{transformer_decoder_layer.11} parent=0 // pred_region
    _
  $region25: #{transformer_decoder_layer.11} parent=0 // pred_fallthru
    _
  %p24 = scmp.eq.s32.totalorder 0, 0
  // Predicated region
  $region26: #{transformer_decoder_layer.11} parent=0 // pred_check
    %p25 = pneg %p24
  $region27: #{transformer_decoder_layer.11} parent=0 // pred_check_branch
    %27 = sbr.rel (%p25) target = $region29
  $region28: #{transformer_decoder_layer.11} parent=0 // pred_region
    %28 = vst [vmem:[#allocation2] sm:$0xff] 0.0
    %29 = vst [vmem:[#allocation2 + $0x8] sm:$0xff] 0.0
  $region29: #{transformer_decoder_layer.11} parent=0 // pred_fallthru
    _
  %v30 = vld [vmem:[#allocation2] sm:$0xff]
  %v31 = vld [vmem:[#allocation2 + $0x8] sm:$0xff]
  %v32 = vld [vmem:[%s0] sm:$0xf]
  %v33 = vld [vmem:[%s0 + $0x4] sm:$0xf]
  %v34 = vld [vmem:[%s1] sm:$0xf]
  %v35 = vld [vmem:[%s1 + $0x4] sm:$0xf]
  %v36 = vld [vmem:[%s1 + $0x8] sm:$0xf]
  %v37 = vld [vmem:[%s1 + $0xc] sm:$0xf]
  %v38 = vld [vmem:[%s1 + $0x10] sm:$0xf]
  %v39 = vld [vmem:[%s1 + $0x14] sm:$0xf]
  %v40 = vld [vmem:[%s1 + $0x18] sm:$0xf]
  %v41 = vld [vmem:[%s1 + $0x1c] sm:$0xf]
  %v42 = vld [vmem:[%s1 + $0x20] sm:$0xf]
  %v43 = vld [vmem:[%s1 + $0x24] sm:$0xf]
  %v44 = vld [vmem:[%s1 + $0x28] sm:$0xf]
  %v45 = vld [vmem:[%s1 + $0x2c] sm:$0xf]
  %v46 = vld [vmem:[%s1 + $0x30] sm:$0xf]
  %v47 = vld [vmem:[%s1 + $0x34] sm:$0xf]
  %v48 = vld [vmem:[%s1 + $0x38] sm:$0xf]
  %v49 = vld [vmem:[%s1 + $0x3c] sm:$0xf]
  %v52 = vunpack.c.l.b16 %v32
  %v53 = vunpack.c.l.b16 %v33
  %v54 = vpack.c.b16 %v53, %v52
  %v72 = vunpack.c.l.b16 %v34
  %v73 = vunpack.c.l.b16 %v35
  %v74 = vunpack.c.l.b16 %v36
  %v75 = vunpack.c.l.b16 %v37
  %v76 = vunpack.c.l.b16 %v38
  %v77 = vunpack.c.l.b16 %v39
  %v78 = vunpack.c.l.b16 %v40
  %v79 = vunpack.c.l.b16 %v41
  %v80 = vunpack.c.l.b16 %v42
  %v81 = vunpack.c.l.b16 %v43
  %v82 = vunpack.c.l.b16 %v44
  %v83 = vunpack.c.l.b16 %v45
  %v84 = vunpack.c.l.b16 %v46
  %v85 = vunpack.c.l.b16 %v47
  %v86 = vunpack.c.l.b16 %v48
  %v87 = vunpack.c.l.b16 %v49
  %v88 = vpack.c.b16 %v73, %v72
  %v89 = vpack.c.b16 %v75, %v74
  %v90 = vpack.c.b16 %v77, %v76
  %v91 = vpack.c.b16 %v79, %v78
  %v92 = vpack.c.b16 %v81, %v80
  %v93 = vpack.c.b16 %v83, %v82
  %v94 = vpack.c.b16 %v85, %v84
  %v95 = vpack.c.b16 %v87, %v86
  %104 = vmatprep.subr.bf16.mxu0 0
  %105 = vmatpush1.bf16.msra.mxu0 %v88
  %106 = vmatprep.subr.bf16.mxu0 0
  %107 = vmatpush1.bf16.msra.mxu0 %v89
  %108 = vmatprep.subr.bf16.mxu0 0
  %109 = vmatpush1.bf16.msra.mxu0 %v90
  %110 = vmatprep.subr.bf16.mxu0 0
  %111 = vmatpush1.bf16.msra.mxu0 %v91
  %112 = vmatprep.subr.bf16.mxu0 0
  %113 = vmatpush1.bf16.msra.mxu0 %v92
  %114 = vmatprep.subr.bf16.mxu0 0
  %115 = vmatpush1.bf16.msra.mxu0 %v93
  %116 = vmatprep.subr.bf16.mxu0 0
  %117 = vmatpush1.bf16.msra.mxu0 %v94
  %118 = vmatprep.subr.bf16.mxu0 0
  %119 = vmatpush1.bf16.msra.mxu0 %v95
  %120 = vmatprep.subr.bf16.mxu0 0
  %121 = vmatpush1.bf16.msra.mxu0 0
  %122 = vmatprep.subr.bf16.mxu0 0
  %123 = vmatpush1.bf16.msra.mxu0 0
  %124 = vmatprep.subr.bf16.mxu0 0
  %125 = vmatpush1.bf16.msra.mxu0 0
  %126 = vmatprep.subr.bf16.mxu0 0
  %127 = vmatpush1.bf16.msra.mxu0 0
  %128 = vmatprep.subr.bf16.mxu0 0
  %129 = vmatpush1.bf16.msra.mxu0 0
  %130 = vmatprep.subr.bf16.mxu0 0
  %131 = vmatpush1.bf16.msra.mxu0 0
  %132 = vmatprep.subr.bf16.mxu0 0
  %133 = vmatpush1.bf16.msra.mxu0 0
  %134 = vmatprep.subr.bf16.mxu0 0
  %135 = vmatpush1.bf16.msra.mxu0 0
  %136 = vmatprep.mubr.bf16.mxu0 0
  %137 = vmatmul.mubr.bf16.gmra.mrb[0].mxu0 %v54
  %v138 = vpop.f32.mrb[0].mxu0
  %v139 = vadd.f32 0.0, %v138
  %v140 = vpop.f32.mrb[0].mxu0
  %v141 = vpop.f32.mrb[0].mxu0
  %v142 = vadd.f32 0.0, %v141
  %v143 = vpop.f32.mrb[0].mxu0
  %144 = vdwg.mxu0
  %v145 = vadd.f32 %v30, %v139
  %v146 = vadd.f32 %v31, %v142
  %147 = vst [vmem:[#allocation2] sm:$0xff] %v145
  %148 = vst [vmem:[#allocation2 + $0x8] sm:$0xff] %v146
  // Predicated region
  $region30: #{transformer_decoder_layer.11} parent=0 // pred_check
    %p149 = pneg %p24
  $region31: #{transformer_decoder_layer.11} parent=0 // pred_check_branch
    %151 = sbr.rel (%p149) target = $region33
  $region32: #{transformer_decoder_layer.11} parent=0 // pred_region
    %v152 = vld [vmem:[#allocation2] sm:$0xff]
    %v153 = vld [vmem:[#allocation2 + $0x8] sm:$0xff]
    %v154 = vld [vmem:[%s2] sm:$0x1]
    %v156 = vlaneseq
    %v157 = vshrl.u32 %v156, 7
    %v158 = vsub.s32 0, %v157
    %v159 = vrot.slane %v154, %v158
    %v161 = vadd.f32 %v152, %v159
    %v162 = vadd.f32 %v153, %v159
    %v163 = vld [vmem:[%s3] sm:$0xff]
    %v164 = vld [vmem:[%s3 + $0x8] sm:$0xff]
    %v165 = vadd.f32 %v161, %v163
    %v166 = vadd.f32 %v162, %v164
    %167 = vadd.xlane.f32.xlu0 %v165
    %v168 = vpop.xlane.xlu0 %167
    %169 = vadd.xlane.f32.xlu0 %v166
    %v170 = vpop.xlane.xlu0 %169
    %v171 = vrcp.pop 128.0
    %v172 = vmul.f32 %v168, %v171
    %v173 = vmul.f32 %v170, %v171
    %v174 = vsub.f32 %v165, %v172
    %v175 = vsub.f32 %v166, %v173
    %v176 = vmul.f32 %v174, %v174
    %v177 = vmul.f32 %v175, %v175
    %178 = vadd.xlane.f32.xlu0 %v176
    %v179 = vpop.xlane.xlu0 %178
    %180 = vadd.xlane.f32.xlu0 %v177
    %v181 = vpop.xlane.xlu0 %180
    %v182 = vmul.f32 %v179, %v171
    %v183 = vmul.f32 %v181, %v171
    %v184 = vadd.f32 %v182, 1e-05
    %v185 = vadd.f32 %v183, 1e-05
    %v186 = vrsqrt.pop %v184
    %v187 = vrsqrt.pop %v185
    %v188 = vmul.f32 %v174, %v186
    %v189 = vmul.f32 %v175, %v187
    %v190 = vld [vmem:[%s4] sm:$0x1]
    %v192 = vlaneseq
    %v193 = vshrl.u32 %v192, 7
    %v194 = vsub.s32 0, %v193
    %v195 = vrot.slane %v190, %v194
    %v197 = vmul.f32 %v188, %v195
    %v198 = vmul.f32 %v189, %v195
    %v199 = vld [vmem:[%s5] sm:$0x1]
    %v201 = vlaneseq
    %v202 = vshrl.u32 %v201, 7
    %v203 = vsub.s32 0, %v202
    %v204 = vrot.slane %v199, %v203
    %v206 = vadd.f32 %v197, %v204
    %v207 = vadd.f32 %v198, %v204
    %208 = vst [vmem:[%s6] sm:$0xff] %v206
    %209 = vst [vmem:[%s6 + $0x8] sm:$0xff] %v207
  $region33: #{transformer_decoder_layer.11} parent=0 // pred_fallthru
    _
  // Predicated region
  $region34: #{transformer_decoder_layer.11} parent=0 // pred_check
    _
  $region35: #{transformer_decoder_layer.11} parent=0 // pred_check_branch
    %211 = sbr.rel (0) target = $region37
  $region36: #{transformer_decoder_layer.11} parent=0 // pred_region
    _
  $region37: #{transformer_decoder_layer.11} parent=0 // pred_fallthru
    _
  // Predicated region
  $region38: #{transformer_decoder_layer.11} parent=0 // pred_check
    _
  $region39: #{transformer_decoder_layer.11} parent=0 // pred_check_branch
    %213 = sbr.rel (0) target = $region41
  $region40: #{transformer_decoder_layer.11} parent=0 // pred_region
    _
  $region41: #{transformer_decoder_layer.11} parent=0 // pred_fallthru
    _

// kernel: transformer_decoder_layer.10
$region0: #{transformer_decoder_layer.10}
  #allocation0 [shape = 'u32[]', space=smem, size = 0x4, offset = 0x4, fixed_abs, tag = 'smem constant byte address 0x4 - core index']
  #allocation1 [shape = 'u32[144,128]{1,0:T(1,128)}', space=vmem, size = 0x12000, scoped, tag = 'internal scratch']
  %s0 = inlined_call_operand.vmem [shape: bf16[2,4,8,32], index: 0, kind: input, shape index: {}]
  %s1 = inlined_call_operand.vmem [shape: bf16[2,4,8,32], index: 1, kind: input, shape index: {}]
  %s2 = inlined_call_operand.vmem [shape: bf16[2,4,8,32], index: 2, kind: input, shape index: {}]
  %s3 = inlined_call_operand.vmem [shape: bf16[2,4,8,32], index: 3, kind: output, shape index: {}]
  %s4 = sld [smem:[#allocation0]]
  $region45: #{transformer_decoder_layer.10} parent=0
    _
  %s6 = ssub.s32 1, %s4
  %s7 = scalar_select 0, %s6, %s4
  loop: start=0, step=1, limit=4
  $region2: #{transformer_decoder_layer.10} parent=0 // loop_pre_header
    _
  $region3: #{transformer_decoder_layer.10} parent=0 // loop_header
    %s9 = sphi 0, %s13
    %p10 = scmp.ge.s32.totalorder %s9, 4
    %s19 = sphi 0, %s21
    %s22 = sphi 0, %s19
    %s23 = sphi 0, %s22
    %s39 = sphi 0, %s23
    %s45 = sphi 0, %s47
    %s48 = sphi 0, %s45
    %s49 = sphi 0, %s48
    %s65 = sphi 0, %s49
    %s71 = sphi 0, %s73
    %s74 = sphi 0, %s71
    %s75 = sphi 0, %s74
    %s91 = sphi 0, %s75
    %s97 = sphi 0, %s99
    %s100 = sphi 0, %s97
    %s101 = sphi 0, %s100
    %s117 = sphi 0, %s101
  $region4: #{transformer_decoder_layer.10} parent=0 // loop_header_branch
    %12 = sbr.rel (%p10) target = $region8
  $region5: #{transformer_decoder_layer.10} parent=0 // loop_body
    %s14 = ssub.s32 %s9, 1
    %s15 = ssub.s32 %s9, 2
    %s16 = sadd.s32 %s9, 1
    %s17 = ssub.s32 %s9, %s16
    %p18 = scmp.eq.s32.totalorder %s17, 0
    %s20 = sadd.s32 %s19, 1
    %s21 = scalar_select %p18, %s19, %s20
    %p24 = pneg %p18
    %p25 = scmp.eq.s32.totalorder %s9, 1
    %p26 = por %p24, %p25
    %p27 = scmp.ne.s32.totalorder %s19, %s22
    %p28 = scmp.eq.s32.totalorder %s9, 0
    %p29 = por %p27, %p28
    %p30 = scmp.ne.s32.totalorder %s19, %s22
    %p31 = scmp.eq.s32.totalorder %s14, 1
    %p32 = por %p30, %p31
    %p33 = scmp.ne.s32.totalorder %s22, %s23
    %p34 = scmp.eq.s32.totalorder %s14, 0
    %p35 = por %p33, %p34
    %p36 = scmp.ne.s32.totalorder %s22, %s23
    %p37 = scmp.eq.s32.totalorder %s15, 1
    %p38 = por %p36, %p37
    %p40 = scmp.ne.s32.totalorder %s23, %s39
    %p41 = scmp.eq.s32.totalorder %s15, 0
    %p42 = por %p40, %p41
    %s43 = ssub.s32 %s9, %s16
    %p44 = scmp.eq.s32.totalorder %s43, 0
    %s46 = sadd.s32 %s45, 1
    %s47 = scalar_select %p44, %s45, %s46
    %p50 = pneg %p44
    %p51 = scmp.eq.s32.totalorder %s9, 1
    %p52 = por %p50, %p51
    %p53 = scmp.ne.s32.totalorder %s45, %s48
    %p54 = scmp.eq.s32.totalorder %s9, 0
    %p55 = por %p53, %p54
    %p56 = scmp.ne.s32.totalorder %s45, %s48
    %p57 = scmp.eq.s32.totalorder %s14, 1
    %p58 = por %p56, %p57
    %p59 = scmp.ne.s32.totalorder %s48, %s49
    %p60 = scmp.eq.s32.totalorder %s14, 0
    %p61 = por %p59, %p60
    %p62 = scmp.ne.s32.totalorder %s48, %s49
    %p63 = scmp.eq.s32.totalorder %s15, 1
    %p64 = por %p62, %p63
    %p66 = scmp.ne.s32.totalorder %s49, %s65
    %p67 = scmp.eq.s32.totalorder %s15, 0
    %p68 = por %p66, %p67
    %s69 = ssub.s32 %s9, %s16
    %p70 = scmp.eq.s32.totalorder %s69, 0
    %s72 = sadd.s32 %s71, 1
    %s73 = scalar_select %p70, %s71, %s72
    %p76 = pneg %p70
    %p77 = scmp.eq.s32.totalorder %s9, 1
    %p78 = por %p76, %p77
    %p79 = scmp.ne.s32.totalorder %s71, %s74
    %p80 = scmp.eq.s32.totalorder %s9, 0
    %p81 = por %p79, %p80
    %p82 = scmp.ne.s32.totalorder %s71, %s74
    %p83 = scmp.eq.s32.totalorder %s14, 1
    %p84 = por %p82, %p83
    %p85 = scmp.ne.s32.totalorder %s74, %s75
    %p86 = scmp.eq.s32.totalorder %s14, 0
    %p87 = por %p85, %p86
    %p88 = scmp.ne.s32.totalorder %s74, %s75
    %p89 = scmp.eq.s32.totalorder %s15, 1
    %p90 = por %p88, %p89
    %p92 = scmp.ne.s32.totalorder %s75, %s91
    %p93 = scmp.eq.s32.totalorder %s15, 0
    %p94 = por %p92, %p93
    %s95 = ssub.s32 %s9, %s16
    %p96 = scmp.eq.s32.totalorder %s95, 0
    %s98 = sadd.s32 %s97, 1
    %s99 = scalar_select %p96, %s97, %s98
    %p102 = pneg %p96
    %p103 = scmp.eq.s32.totalorder %s9, 1
    %p104 = por %p102, %p103
    %p105 = scmp.ne.s32.totalorder %s97, %s100
    %p106 = scmp.eq.s32.totalorder %s9, 0
    %p107 = por %p105, %p106
    %p108 = scmp.ne.s32.totalorder %s97, %s100
    %p109 = scmp.eq.s32.totalorder %s14, 1
    %p110 = por %p108, %p109
    %p111 = scmp.ne.s32.totalorder %s100, %s101
    %p112 = scmp.eq.s32.totalorder %s14, 0
    %p113 = por %p111, %p112
    %p114 = scmp.ne.s32.totalorder %s100, %s101
    %p115 = scmp.eq.s32.totalorder %s15, 1
    %p116 = por %p114, %p115
    %p118 = scmp.ne.s32.totalorder %s101, %s117
    %p119 = scmp.eq.s32.totalorder %s15, 0
    %p120 = por %p118, %p119
    %p121 = scmp.le.s32.totalorder 1, %s9
    %p122 = scmp.lt.s32.totalorder %s9, 3
    %p123 = pnand %p121, %p122
    %p124 = pneg %p123
    // Predicated region
    $region9: #{transformer_decoder_layer.10} parent=5 // pred_check
      _
    $region10: #{transformer_decoder_layer.10} parent=5 // pred_check_branch
      %126 = sbr.rel (%p123) target = $region12
    $region11: #{transformer_decoder_layer.10} parent=5 // pred_region
      %s127 = ssub.s32 %s9, 1
    $region12: #{transformer_decoder_layer.10} parent=5 // pred_fallthru
      _
    %p128 = scmp.lt.s32.totalorder %s9, 2
    // Predicated region
    $region13: #{transformer_decoder_layer.10} parent=5 // pred_check
      %p129 = pneg %p128
    $region14: #{transformer_decoder_layer.10} parent=5 // pred_check_branch
      %131 = sbr.rel (%p129) target = $region16
    $region15: #{transformer_decoder_layer.10} parent=5 // pred_region
      // Predicated region
      $region17: #{transformer_decoder_layer.10} parent=15 // pred_check
        %p132 = pneg %p29
      $region18: #{transformer_decoder_layer.10} parent=15 // pred_check_branch
        %134 = sbr.rel (%p132) target = $region20
      $region19: #{transformer_decoder_layer.10} parent=15 // pred_region
        %p135 = scmp.lt.s32.totalorder %s9, 1
        %s136 = scalar_select %p135, %s9, 1
        %s137 = smul.addr %s136, 4
        %s138 = smul.addr %s137, 4
        %s139 = scalar_lea.vmem %s0, %s138
      $region20: #{transformer_decoder_layer.10} parent=15 // pred_fallthru
        _
      // Predicated region
      $region21: #{transformer_decoder_layer.10} parent=15 // pred_check
        %p140 = pneg %p55
      $region22: #{transformer_decoder_layer.10} parent=15 // pred_check_branch
        %142 = sbr.rel (%p140) target = $region24
      $region23: #{transformer_decoder_layer.10} parent=15 // pred_region
        %p143 = scmp.lt.s32.totalorder %s9, 1
        %s144 = scalar_select %p143, %s9, 1
        %s145 = smul.addr %s144, 4
        %s146 = smul.addr %s145, 4
        %s147 = scalar_lea.vmem %s1, %s146
      $region24: #{transformer_decoder_layer.10} parent=15 // pred_fallthru
        _
      // Predicated region
      $region25: #{transformer_decoder_layer.10} parent=15 // pred_check
        %p148 = pneg %p81
      $region26: #{transformer_decoder_layer.10} parent=15 // pred_check_branch
        %150 = sbr.rel (%p148) target = $region28
      $region27: #{transformer_decoder_layer.10} parent=15 // pred_region
        %p151 = scmp.lt.s32.totalorder %s9, 1
        %s152 = scalar_select %p151, %s9, 1
        %s153 = smul.addr %s152, 4
        %s154 = smul.addr %s153, 4
        %s155 = scalar_lea.vmem %s2, %s154
      $region28: #{transformer_decoder_layer.10} parent=15 // pred_fallthru
        _
    $region16: #{transformer_decoder_layer.10} parent=5 // pred_fallthru
      _
    %p156 = scmp.le.s32.totalorder 1, %s9
    %p157 = scmp.lt.s32.totalorder %s9, 3
    %p158 = pnand %p156, %p157
    %p159 = pneg %p158
    // Predicated region
    $region29: #{transformer_decoder_layer.10} parent=5 // pred_check
      _
    $region30: #{transformer_decoder_layer.10} parent=5 // pred_check_branch
      %161 = sbr.rel (%p158) target = $region32
    $region31: #{transformer_decoder_layer.10} parent=5 // pred_region
      %s162 = ssub.s32 %s9, 1
      %p163 = scmp.lt.s32.totalorder %s14, 1
      %s164 = scalar_select %p163, %s14, 1
      %s165 = smul.addr %s164, 4
      %s166 = smul.addr %s165, 4
      %s167 = scalar_lea.vmem %s0, %s166
      %p168 = pneg %p35
      %p169 = pneg %p32
      %p170 = scmp.lt.s32.totalorder %s14, 1
      %s171 = scalar_select %p170, %s14, 1
      %s172 = smul.addr %s171, 4
      %s173 = smul.addr %s172, 4
      %s174 = scalar_lea.vmem %s1, %s173
      %p175 = pneg %p61
      %p176 = pneg %p58
      %p177 = scmp.lt.s32.totalorder %s14, 1
      %s178 = scalar_select %p177, %s14, 1
      %s179 = smul.addr %s178, 4
      %s180 = smul.addr %s179, 4
      %s181 = scalar_lea.vmem %s2, %s180
      %p182 = pneg %p87
      %p183 = pneg %p84
      %p184 = pneg %p113
      %p185 = pneg %p110
      %p186 = scmp.lt.s32.totalorder %s14, 1
      %s187 = scalar_select %p186, %s14, 1
      %s188 = smul.addr %s187, 4
      %s189 = smul.addr %s188, 4
      %s190 = scalar_lea.vmem %s3, %s189
      %p191 = scmp.lt.s32.totalorder %s14, 1
      %s192 = scalar_select %p191, %s14, 1
      %s193 = smul.addr %s192, 4
      %s194 = smul.addr %s193, 4
      %s195 = scalar_lea.vmem %s0, %s194
      %p196 = scmp.lt.s32.totalorder %s14, 1
      %s197 = scalar_select %p196, %s14, 1
      %s198 = smul.addr %s197, 4
      %s199 = smul.addr %s198, 4
      %s200 = scalar_lea.vmem %s1, %s199
      %p201 = scmp.lt.s32.totalorder %s14, 1
      %s202 = scalar_select %p201, %s14, 1
      %s203 = smul.addr %s202, 4
      %s204 = smul.addr %s203, 4
      %s205 = scalar_lea.vmem %s2, %s204
      %p206 = scmp.lt.s32.totalorder %s14, 1
      %s207 = scalar_select %p206, %s14, 1
      %s208 = smul.addr %s207, 4
      %s209 = smul.addr %s208, 4
      %s210 = scalar_lea.vmem %s3, %s209
      %v212 = vld [vmem:[%s195] sm:$0xf]
      %v213 = vld [vmem:[%s195 + $0x4] sm:$0xf]
      %v214 = vld [vmem:[%s195 + $0x8] sm:$0xf]
      %v215 = vld [vmem:[%s195 + $0xc] sm:$0xf]
      %v216 = vunpack.c.l.bf16 %v212
      %v217 = vunpack.c.l.bf16 %v213
      %v218 = vunpack.c.l.bf16 %v214
      %v219 = vunpack.c.l.bf16 %v215
      %v220 = vmul.f32 %v216, 0.17677669
      %v221 = vmul.f32 %v217, 0.17677669
      %v222 = vmul.f32 %v218, 0.17677669
      %v223 = vmul.f32 %v219, 0.17677669
      %v224 = vpack.c.bf16 %v220, %v220
      %v225 = vpack.c.bf16 %v221, %v221
      %v226 = vpack.c.bf16 %v222, %v222
      %v227 = vpack.c.bf16 %v223, %v223
      %v228 = vld [vmem:[%s200] sm:$0xf]
      %v229 = vld [vmem:[%s200 + $0x4] sm:$0xf]
      %v230 = vld [vmem:[%s200 + $0x8] sm:$0xf]
      %v231 = vld [vmem:[%s200 + $0xc] sm:$0xf]
      %v232 = vld [vmem:[%s205] sm:$0xf]
      %v233 = vld [vmem:[%s205 + $0x4] sm:$0xf]
      %v234 = vld [vmem:[%s205 + $0x8] sm:$0xf]
      %v235 = vld [vmem:[%s205 + $0xc] sm:$0xf]
      %vm236 = vcmask 261120
      %v238 = vsel %vm236, %v224, 0
      %v241 = vsel %vm236, %v228, 0
      %243 = vmatprep.subr.bf16.mxu0 0
      %244 = vmatpush1.bf16.xpose.msra.mxu0 %v241
      %245 = vmatprep.subr.bf16.mxu0 0
      %246 = vmatpush1.bf16.xpose.msra.mxu0 0
      %247 = vmatprep.subr.bf16.mxu0 0
      %248 = vmatpush1.bf16.xpose.msra.mxu0 0
      %249 = vmatprep.subr.bf16.mxu0 0
      %250 = vmatpush1.bf16.xpose.msra.mxu0 0
      %251 = vmatprep.subr.bf16.mxu0 0
      %252 = vmatpush1.bf16.xpose.msra.mxu0 0
      %253 = vmatprep.subr.bf16.mxu0 0
      %254 = vmatpush1.bf16.xpose.msra.mxu0 0
      %255 = vmatprep.subr.bf16.mxu0 0
      %256 = vmatpush1.bf16.xpose.msra.mxu0 0
      %257 = vmatprep.subr.bf16.mxu0 0
      %258 = vmatpush1.bf16.xpose.msra.mxu0 0
      %259 = vmatprep.subr.bf16.mxu0 0
      %260 = vmatpush1.bf16.xpose.msra.mxu0 0
      %261 = vmatprep.subr.bf16.mxu0 0
      %262 = vmatpush1.bf16.xpose.msra.mxu0 0
      %263 = vmatprep.subr.bf16.mxu0 0
      %264 = vmatpush1.bf16.xpose.msra.mxu0 0
      %265 = vmatprep.subr.bf16.mxu0 0
      %266 = vmatpush1.bf16.xpose.msra.mxu0 0
      %267 = vmatprep.subr.bf16.mxu0 0
      %268 = vmatpush1.bf16.xpose.msra.mxu0 0
      %269 = vmatprep.subr.bf16.mxu0 0
      %270 = vmatpush1.bf16.xpose.msra.mxu0 0
      %271 = vmatprep.subr.bf16.mxu0 0
      %272 = vmatpush1.bf16.xpose.msra.mxu0 0
      %273 = vmatprep.subr.bf16.mxu0 0
      %274 = vmatpush1.bf16.xpose.msra.mxu0 0
      %275 = vmatprep.mubr.bf16.mxu0 0
      %276 = vmatmul.mubr.bf16.gmra.mrb[0].mxu0 %v238
      %v277 = vpop.f32.mrb[0].mxu0
      %v278 = vadd.f32 0.0, %v277
      %v279 = vpop.f32.mrb[0].mxu0
      %v280 = vpop.f32.mrb[0].mxu0
      %v281 = vpop.f32.mrb[0].mxu0
      %282 = vdwg.mxu0
      %v284 = vsel %vm236, %v225, 0
      %v287 = vsel %vm236, %v229, 0
      %289 = vmatprep.subr.bf16.mxu0 0
      %290 = vmatpush1.bf16.xpose.msra.mxu0 %v287
      %291 = vmatprep.subr.bf16.mxu0 0
      %292 = vmatpush1.bf16.xpose.msra.mxu0 0
      %293 = vmatprep.subr.bf16.mxu0 0
      %294 = vmatpush1.bf16.xpose.msra.mxu0 0
      %295 = vmatprep.subr.bf16.mxu0 0
      %296 = vmatpush1.bf16.xpose.msra.mxu0 0
      %297 = vmatprep.subr.bf16.mxu0 0
      %298 = vmatpush1.bf16.xpose.msra.mxu0 0
      %299 = vmatprep.subr.bf16.mxu0 0
      %300 = vmatpush1.bf16.xpose.msra.mxu0 0
      %301 = vmatprep.subr.bf16.mxu0 0
      %302 = vmatpush1.bf16.xpose.msra.mxu0 0
      %303 = vmatprep.subr.bf16.mxu0 0
      %304 = vmatpush1.bf16.xpose.msra.mxu0 0
      %305 = vmatprep.subr.bf16.mxu0 0
      %306 = vmatpush1.bf16.xpose.msra.mxu0 0
      %307 = vmatprep.subr.bf16.mxu0 0
      %308 = vmatpush1.bf16.xpose.msra.mxu0 0
      %309 = vmatprep.subr.bf16.mxu0 0
      %310 = vmatpush1.bf16.xpose.msra.mxu0 0
      %311 = vmatprep.subr.bf16.mxu0 0
      %312 = vmatpush1.bf16.xpose.msra.mxu0 0
      %313 = vmatprep.subr.bf16.mxu0 0
      %314 = vmatpush1.bf16.xpose.msra.mxu0 0
      %315 = vmatprep.subr.bf16.mxu0 0
      %316 = vmatpush1.bf16.xpose.msra.mxu0 0
      %317 = vmatprep.subr.bf16.mxu0 0
      %318 = vmatpush1.bf16.xpose.msra.mxu0 0
      %319 = vmatprep.subr.bf16.mxu0 0
      %320 = vmatpush1.bf16.xpose.msra.mxu0 0
      %321 = vmatprep.mubr.bf16.mxu0 0
      %322 = vmatmul.mubr.bf16.gmra.mrb[0].mxu0 %v284
      %v323 = vpop.f32.mrb[0].mxu0
      %v324 = vadd.f32 0.0, %v323
      %v325 = vpop.f32.mrb[0].mxu0
      %v326 = vpop.f32.mrb[0].mxu0
      %v327 = vpop.f32.mrb[0].mxu0
      %328 = vdwg.mxu0
      %v330 = vsel %vm236, %v226, 0
      %v333 = vsel %vm236, %v230, 0
      %335 = vmatprep.subr.bf16.mxu0 0
      %336 = vmatpush1.bf16.xpose.msra.mxu0 %v333
      %337 = vmatprep.subr.bf16.mxu0 0
      %338 = vmatpush1.bf16.xpose.msra.mxu0 0
      %339 = vmatprep.subr.bf16.mxu0 0
      %340 = vmatpush1.bf16.xpose.msra.mxu0 0
      %341 = vmatprep.subr.bf16.mxu0 0
      %342 = vmatpush1.bf16.xpose.msra.mxu0 0
      %343 = vmatprep.subr.bf16.mxu0 0
      %344 = vmatpush1.bf16.xpose.msra.mxu0 0
      %345 = vmatprep.subr.bf16.mxu0 0
      %346 = vmatpush1.bf16.xpose.msra.mxu0 0
      %347 = vmatprep.subr.bf16.mxu0 0
      %348 = vmatpush1.bf16.xpose.msra.mxu0 0
      %349 = vmatprep.subr.bf16.mxu0 0
      %350 = vmatpush1.bf16.xpose.msra.mxu0 0
      %351 = vmatprep.subr.bf16.mxu0 0
      %352 = vmatpush1.bf16.xpose.msra.mxu0 0
      %353 = vmatprep.subr.bf16.mxu0 0
      %354 = vmatpush1.bf16.xpose.msra.mxu0 0
      %355 = vmatprep.subr.bf16.mxu0 0
      %356 = vmatpush1.bf16.xpose.msra.mxu0 0
      %357 = vmatprep.subr.bf16.mxu0 0
      %358 = vmatpush1.bf16.xpose.msra.mxu0 0
      %359 = vmatprep.subr.bf16.mxu0 0
      %360 = vmatpush1.bf16.xpose.msra.mxu0 0
      %361 = vmatprep.subr.bf16.mxu0 0
      %362 = vmatpush1.bf16.xpose.msra.mxu0 0
      %363 = vmatprep.subr.bf16.mxu0 0
      %364 = vmatpush1.bf16.xpose.msra.mxu0 0
      %365 = vmatprep.subr.bf16.mxu0 0
      %366 = vmatpush1.bf16.xpose.msra.mxu0 0
      %367 = vmatprep.mubr.bf16.mxu0 0
      %368 = vmatmul.mubr.bf16.gmra.mrb[0].mxu0 %v330
      %v369 = vpop.f32.mrb[0].mxu0
      %v370 = vadd.f32 0.0, %v369
      %v371 = vpop.f32.mrb[0].mxu0
      %v372 = vpop.f32.mrb[0].mxu0
      %v373 = vpop.f32.mrb[0].mxu0
      %374 = vdwg.mxu0
      %v376 = vsel %vm236, %v227, 0
      %v379 = vsel %vm236, %v231, 0
      %381 = vmatprep.subr.bf16.mxu0 0
      %382 = vmatpush1.bf16.xpose.msra.mxu0 %v379
      %383 = vmatprep.subr.bf16.mxu0 0
      %384 = vmatpush1.bf16.xpose.msra.mxu0 0
      %385 = vmatprep.subr.bf16.mxu0 0
      %386 = vmatpush1.bf16.xpose.msra.mxu0 0
      %387 = vmatprep.subr.bf16.mxu0 0
      %388 = vmatpush1.bf16.xpose.msra.mxu0 0
      %389 = vmatprep.subr.bf16.mxu0 0
      %390 = vmatpush1.bf16.xpose.msra.mxu0 0
      %391 = vmatprep.subr.bf16.mxu0 0
      %392 = vmatpush1.bf16.xpose.msra.mxu0 0
      %393 = vmatprep.subr.bf16.mxu0 0
      %394 = vmatpush1.bf16.xpose.msra.mxu0 0
      %395 = vmatprep.subr.bf16.mxu0 0
      %396 = vmatpush1.bf16.xpose.msra.mxu0 0
      %397 = vmatprep.subr.bf16.mxu0 0
      %398 = vmatpush1.bf16.xpose.msra.mxu0 0
      %399 = vmatprep.subr.bf16.mxu0 0
      %400 = vmatpush1.bf16.xpose.msra.mxu0 0
      %401 = vmatprep.subr.bf16.mxu0 0
      %402 = vmatpush1.bf16.xpose.msra.mxu0 0
      %403 = vmatprep.subr.bf16.mxu0 0
      %404 = vmatpush1.bf16.xpose.msra.mxu0 0
      %405 = vmatprep.subr.bf16.mxu0 0
      %406 = vmatpush1.bf16.xpose.msra.mxu0 0
      %407 = vmatprep.subr.bf16.mxu0 0
      %408 = vmatpush1.bf16.xpose.msra.mxu0 0
      %409 = vmatprep.subr.bf16.mxu0 0
      %410 = vmatpush1.bf16.xpose.msra.mxu0 0
      %411 = vmatprep.subr.bf16.mxu0 0
      %412 = vmatpush1.bf16.xpose.msra.mxu0 0
      %413 = vmatprep.mubr.bf16.mxu0 0
      %414 = vmatmul.mubr.bf16.gmra.mrb[0].mxu0 %v376
      %v415 = vpop.f32.mrb[0].mxu0
      %v416 = vadd.f32 0.0, %v415
      %v417 = vpop.f32.mrb[0].mxu0
      %v418 = vpop.f32.mrb[0].mxu0
      %v419 = vpop.f32.mrb[0].mxu0
      %420 = vdwg.mxu0
      %vm421 = vcmask 64512
      %v422 = vsel %vm421, %v278, -inf
      %423 = vmax.xlane.f32.xlu0 %v422
      %v424 = vpop.xlane.xlu0 %423
      %v425 = vsel %vm421, %v324, -inf
      %426 = vmax.xlane.f32.xlu0 %v425
      %v427 = vpop.xlane.xlu0 %426
      %v428 = vsel %vm421, %v370, -inf
      %429 = vmax.xlane.f32.xlu0 %v428
      %v430 = vpop.xlane.xlu0 %429
      %v431 = vsel %vm421, %v416, -inf
      %432 = vmax.xlane.f32.xlu0 %v431
      %v433 = vpop.xlane.xlu0 %432
      %v434 = vsub.f32 %v278, %v424
      %v435 = vsub.f32 %v324, %v427
      %v436 = vsub.f32 %v370, %v430
      %v437 = vsub.f32 %v416, %v433
      %v438 = vmul.f32 %v434, 1.442695
      %v439 = vpow.pop %v438
      %v440 = vmul.f32 %v435, 1.442695
      %v441 = vpow.pop %v440
      %v442 = vmul.f32 %v436, 1.442695
      %v443 = vpow.pop %v442
      %v444 = vmul.f32 %v437, 1.442695
      %v445 = vpow.pop %v444
      %v446 = vsel %vm421, %v439, 0.0
      %447 = vadd.xlane.f32.xlu0 %v446
      %v448 = vpop.xlane.xlu0 %447
      %v449 = vsel %vm421, %v441, 0.0
      %450 = vadd.xlane.f32.xlu0 %v449
      %v451 = vpop.xlane.xlu0 %450
      %v452 = vsel %vm421, %v443, 0.0
      %453 = vadd.xlane.f32.xlu0 %v452
      %v454 = vpop.xlane.xlu0 %453
      %v455 = vsel %vm421, %v445, 0.0
      %456 = vadd.xlane.f32.xlu0 %v455
      %v457 = vpop.xlane.xlu0 %456
      %v458 = vrcp.pop %v448
      %v459 = vrcp.pop %v451
      %v460 = vrcp.pop %v454
      %v461 = vrcp.pop %v457
      %v462 = vmul.f32 %v439, %v458
      %v463 = vmul.f32 %v441, %v459
      %v464 = vmul.f32 %v443, %v460
      %v465 = vmul.f32 %v445, %v461
      %v466 = vpack.c.bf16 %v462, %v462
      %v467 = vpack.c.bf16 %v463, %v463
      %v468 = vpack.c.bf16 %v464, %v464
      %v469 = vpack.c.bf16 %v465, %v465
      %v471 = vsel %vm421, %v466, 0
      %vm473 = vcmask 1043456
      %v475 = vsel %vm473, %v232, 0
      %477 = vmatprep.subr.bf16.mxu0 0
      %478 = vmatpush1.bf16.msra.mxu0 %v475
      %479 = vmatprep.subr.bf16.mxu0 0
      %480 = vmatpush1.bf16.msra.mxu0 0
      %481 = vmatprep.subr.bf16.mxu0 0
      %482 = vmatpush1.bf16.msra.mxu0 0
      %483 = vmatprep.subr.bf16.mxu0 0
      %484 = vmatpush1.bf16.msra.mxu0 0
      %485 = vmatprep.subr.bf16.mxu0 0
      %486 = vmatpush1.bf16.msra.mxu0 0
      %487 = vmatprep.subr.bf16.mxu0 0
      %488 = vmatpush1.bf16.msra.mxu0 0
      %489 = vmatprep.subr.bf16.mxu0 0
      %490 = vmatpush1.bf16.msra.mxu0 0
      %491 = vmatprep.subr.bf16.mxu0 0
      %492 = vmatpush1.bf16.msra.mxu0 0
      %493 = vmatprep.subr.bf16.mxu0 0
      %494 = vmatpush1.bf16.msra.mxu0 0
      %495 = vmatprep.subr.bf16.mxu0 0
      %496 = vmatpush1.bf16.msra.mxu0 0
      %497 = vmatprep.subr.bf16.mxu0 0
      %498 = vmatpush1.bf16.msra.mxu0 0
      %499 = vmatprep.subr.bf16.mxu0 0
      %500 = vmatpush1.bf16.msra.mxu0 0
      %501 = vmatprep.subr.bf16.mxu0 0
      %502 = vmatpush1.bf16.msra.mxu0 0
      %503 = vmatprep.subr.bf16.mxu0 0
      %504 = vmatpush1.bf16.msra.mxu0 0
      %505 = vmatprep.subr.bf16.mxu0 0
      %506 = vmatpush1.bf16.msra.mxu0 0
      %507 = vmatprep.subr.bf16.mxu0 0
      %508 = vmatpush1.bf16.msra.mxu0 0
      %509 = vmatprep.mubr.bf16.mxu0 0
      %510 = vmatmul.mubr.bf16.gmra.mrb[0].mxu0 %v471
      %v511 = vpop.f32.mrb[0].mxu0
      %v512 = vadd.f32 0.0, %v511
      %v513 = vpop.f32.mrb[0].mxu0
      %v514 = vpop.f32.mrb[0].mxu0
      %v515 = vpop.f32.mrb[0].mxu0
      %516 = vdwg.mxu0
      %v518 = vsel %vm421, %v467, 0
      %v521 = vsel %vm473, %v233, 0
      %523 = vmatprep.subr.bf16.mxu0 0
      %524 = vmatpush1.bf16.msra.mxu0 %v521
      %525 = vmatprep.subr.bf16.mxu0 0
      %526 = vmatpush1.bf16.msra.mxu0 0
      %527 = vmatprep.subr.bf16.mxu0 0
      %528 = vmatpush1.bf16.msra.mxu0 0
      %529 = vmatprep.subr.bf16.mxu0 0
      %530 = vmatpush1.bf16.msra.mxu0 0
      %531 = vmatprep.subr.bf16.mxu0 0
      %532 = vmatpush1.bf16.msra.mxu0 0
      %533 = vmatprep.subr.bf16.mxu0 0
      %534 = vmatpush1.bf16.msra.mxu0 0
      %535 = vmatprep.subr.bf16.mxu0 0
      %536 = vmatpush1.bf16.msra.mxu0 0
      %537 = vmatprep.subr.bf16.mxu0 0
      %538 = vmatpush1.bf16.msra.mxu0 0
      %539 = vmatprep.subr.bf16.mxu0 0
      %540 = vmatpush1.bf16.msra.mxu0 0
      %541 = vmatprep.subr.bf16.mxu0 0
      %542 = vmatpush1.bf16.msra.mxu0 0
      %543 = vmatprep.subr.bf16.mxu0 0
      %544 = vmatpush1.bf16.msra.mxu0 0
      %545 = vmatprep.subr.bf16.mxu0 0
      %546 = vmatpush1.bf16.msra.mxu0 0
      %547 = vmatprep.subr.bf16.mxu0 0
      %548 = vmatpush1.bf16.msra.mxu0 0
      %549 = vmatprep.subr.bf16.mxu0 0
      %550 = vmatpush1.bf16.msra.mxu0 0
      %551 = vmatprep.subr.bf16.mxu0 0
      %552 = vmatpush1.bf16.msra.mxu0 0
      %553 = vmatprep.subr.bf16.mxu0 0
      %554 = vmatpush1.bf16.msra.mxu0 0
      %555 = vmatprep.mubr.bf16.mxu0 0
      %556 = vmatmul.mubr.bf16.gmra.mrb[0].mxu0 %v518
      %v557 = vpop.f32.mrb[0].mxu0
      %v558 = vadd.f32 0.0, %v557
      %v559 = vpop.f32.mrb[0].mxu0
      %v560 = vpop.f32.mrb[0].mxu0
      %v561 = vpop.f32.mrb[0].mxu0
      %562 = vdwg.mxu0
      %v564 = vsel %vm421, %v468, 0
      %v567 = vsel %vm473, %v234, 0
      %569 = vmatprep.subr.bf16.mxu0 0
      %570 = vmatpush1.bf16.msra.mxu0 %v567
      %571 = vmatprep.subr.bf16.mxu0 0
      %572 = vmatpush1.bf16.msra.mxu0 0
      %573 = vmatprep.subr.bf16.mxu0 0
      %574 = vmatpush1.bf16.msra.mxu0 0
      %575 = vmatprep.subr.bf16.mxu0 0
      %576 = vmatpush1.bf16.msra.mxu0 0
      %577 = vmatprep.subr.bf16.mxu0 0
      %578 = vmatpush1.bf16.msra.mxu0 0
      %579 = vmatprep.subr.bf16.mxu0 0
      %580 = vmatpush1.bf16.msra.mxu0 0
      %581 = vmatprep.subr.bf16.mxu0 0
      %582 = vmatpush1.bf16.msra.mxu0 0
      %583 = vmatprep.subr.bf16.mxu0 0
      %584 = vmatpush1.bf16.msra.mxu0 0
      %585 = vmatprep.subr.bf16.mxu0 0
      %586 = vmatpush1.bf16.msra.mxu0 0
      %587 = vmatprep.subr.bf16.mxu0 0
      %588 = vmatpush1.bf16.msra.mxu0 0
      %589 = vmatprep.subr.bf16.mxu0 0
      %590 = vmatpush1.bf16.msra.mxu0 0
      %591 = vmatprep.subr.bf16.mxu0 0
      %592 = vmatpush1.bf16.msra.mxu0 0
      %593 = vmatprep.subr.bf16.mxu0 0
      %594 = vmatpush1.bf16.msra.mxu0 0
      %595 = vmatprep.subr.bf16.mxu0 0
      %596 = vmatpush1.bf16.msra.mxu0 0
      %597 = vmatprep.subr.bf16.mxu0 0
      %598 = vmatpush1.bf16.msra.mxu0 0
      %599 = vmatprep.subr.bf16.mxu0 0
      %600 = vmatpush1.bf16.msra.mxu0 0
      %601 = vmatprep.mubr.bf16.mxu0 0
      %602 = vmatmul.mubr.bf16.gmra.mrb[0].mxu0 %v564
      %v603 = vpop.f32.mrb[0].mxu0
      %v604 = vadd.f32 0.0, %v603
      %v605 = vpop.f32.mrb[0].mxu0
      %v606 = vpop.f32.mrb[0].mxu0
      %v607 = vpop.f32.mrb[0].mxu0
      %608 = vdwg.mxu0
      %v610 = vsel %vm421, %v469, 0
      %v613 = vsel %vm473, %v235, 0
      %615 = vmatprep.subr.bf16.mxu0 0
      %616 = vmatpush1.bf16.msra.mxu0 %v613
      %617 = vmatprep.subr.bf16.mxu0 0
      %618 = vmatpush1.bf16.msra.mxu0 0
      %619 = vmatprep.subr.bf16.mxu0 0
      %620 = vmatpush1.bf16.msra.mxu0 0
      %621 = vmatprep.subr.bf16.mxu0 0
      %622 = vmatpush1.bf16.msra.mxu0 0
      %623 = vmatprep.subr.bf16.mxu0 0
      %624 = vmatpush1.bf16.msra.mxu0 0
      %625 = vmatprep.subr.bf16.mxu0 0
      %626 = vmatpush1.bf16.msra.mxu0 0
      %627 = vmatprep.subr.bf16.mxu0 0
      %628 = vmatpush1.bf16.msra.mxu0 0
      %629 = vmatprep.subr.bf16.mxu0 0
      %630 = vmatpush1.bf16.msra.mxu0 0
      %631 = vmatprep.subr.bf16.mxu0 0
      %632 = vmatpush1.bf16.msra.mxu0 0
      %633 = vmatprep.subr.bf16.mxu0 0
      %634 = vmatpush1.bf16.msra.mxu0 0
      %635 = vmatprep.subr.bf16.mxu0 0
      %636 = vmatpush1.bf16.msra.mxu0 0
      %637 = vmatprep.subr.bf16.mxu0 0
      %638 = vmatpush1.bf16.msra.mxu0 0
      %639 = vmatprep.subr.bf16.mxu0 0
      %640 = vmatpush1.bf16.msra.mxu0 0
      %641 = vmatprep.subr.bf16.mxu0 0
      %642 = vmatpush1.bf16.msra.mxu0 0
      %643 = vmatprep.subr.bf16.mxu0 0
      %644 = vmatpush1.bf16.msra.mxu0 0
      %645 = vmatprep.subr.bf16.mxu0 0
      %646 = vmatpush1.bf16.msra.mxu0 0
      %647 = vmatprep.mubr.bf16.mxu0 0
      %648 = vmatmul.mubr.bf16.gmra.mrb[0].mxu0 %v610
      %v649 = vpop.f32.mrb[0].mxu0
      %v650 = vadd.f32 0.0, %v649
      %v651 = vpop.f32.mrb[0].mxu0
      %v652 = vpop.f32.mrb[0].mxu0
      %v653 = vpop.f32.mrb[0].mxu0
      %654 = vdwg.mxu0
      %v655 = vpack.c.bf16 %v512, %v512
      %v656 = vpack.c.bf16 %v558, %v558
      %v657 = vpack.c.bf16 %v604, %v604
      %v658 = vpack.c.bf16 %v650, %v650
      %vm659 = vcmask 257024
      %660 = vst.msk [vmem:[%s210] sm:$0xf] %vm659, %v655
      %661 = vst.msk [vmem:[%s210 + $0x4] sm:$0xf] %vm659, %v656
      %662 = vst.msk [vmem:[%s210 + $0x8] sm:$0xf] %vm659, %v657
      %663 = vst.msk [vmem:[%s210 + $0xc] sm:$0xf] %vm659, %v658
      %p664 = scmp.lt.s32.totalorder %s14, 1
      %s665 = scalar_select %p664, %s14, 1
      %s666 = smul.addr %s665, 4
      %s667 = smul.addr %s666, 4
      %s668 = scalar_lea.vmem %s3, %s667
      // Predicated region
      $region33: #{transformer_decoder_layer.10} parent=31 // pred_check
        %p669 = pneg %p110
      $region34: #{transformer_decoder_layer.10} parent=31 // pred_check_branch
        %671 = sbr.rel (%p669) target = $region36
      $region35: #{transformer_decoder_layer.10} parent=31 // pred_region
        _
      $region36: #{transformer_decoder_layer.10} parent=31 // pred_fallthru
        _
    $region32: #{transformer_decoder_layer.10} parent=5 // pred_fallthru
      _
    %p672 = scmp.le.s32.totalorder 2, %s9
    // Predicated region
    $region37: #{transformer_decoder_layer.10} parent=5 // pred_check
      %p673 = pneg %p672
    $region38: #{transformer_decoder_layer.10} parent=5 // pred_check_branch
      %675 = sbr.rel (%p673) target = $region40
    $region39: #{transformer_decoder_layer.10} parent=5 // pred_region
      %s676 = ssub.s32 %s9, 2
      // Predicated region
      $region41: #{transformer_decoder_layer.10} parent=39 // pred_check
        %p677 = pneg %p116
      $region42: #{transformer_decoder_layer.10} parent=39 // pred_check_branch
        %679 = sbr.rel (%p677) target = $region44
      $region43: #{transformer_decoder_layer.10} parent=39 // pred_region
        %p680 = scmp.lt.s32.totalorder %s15, 1
        %s681 = scalar_select %p680, %s15, 1
        %s682 = smul.addr %s681, 4
        %s683 = smul.addr %s682, 4
        %s684 = scalar_lea.vmem %s3, %s683
      $region44: #{transformer_decoder_layer.10} parent=39 // pred_fallthru
        _
    $region40: #{transformer_decoder_layer.10} parent=5 // pred_fallthru
      _
  $region6: #{transformer_decoder_layer.10} parent=0 // loop_footer
    %s13 = sadd.s32 1, %s9
  $region7: #{transformer_decoder_layer.10} parent=0 // loop_footer_branch
    %8 = sbr.rel target = $region3
  $region8: #{transformer_decoder_layer.10} parent=0 // loop_exit
    _

// kernel: transformer_decoder_layer.13
$region0: #{transformer_decoder_layer.13}
  #allocation0 [shape = 'u32[]', space=smem, size = 0x4, offset = 0x4, fixed_abs, tag = 'smem constant byte address 0x4 - core index']
  #allocation1 [shape = 'u32[144,128]{1,0:T(1,128)}', space=vmem, size = 0x12000, scoped, tag = 'internal scratch']
  #allocation2 [shape = 'f32[16,256]{1,0:T(8,128)}', space=vmem, size = 0x4000, scoped, tag = 'scratch operand']
  %s0 = inlined_call_operand.vmem [shape: bf16[16,128], index: 0, kind: input, shape index: {}]
  %s1 = inlined_call_operand.vmem [shape: bf16[128,256], index: 1, kind: input, shape index: {}]
  %s2 = inlined_call_operand.vmem [shape: f32[1,256], index: 2, kind: input, shape index: {}]
  %s3 = inlined_call_operand.vmem [shape: bf16[16,256], index: 3, kind: output, shape index: {}]
  %s4 = sld [smem:[#allocation0]]
  $region30: #{transformer_decoder_layer.13} parent=0
    _
  %s6 = ssub.s32 1, %s4
  %s7 = scalar_select 0, %s6, %s4
  // Predicated region
  $region2: #{transformer_decoder_layer.13} parent=0 // pred_check
    _
  $region3: #{transformer_decoder_layer.13} parent=0 // pred_check_branch
    %9 = sbr.rel (0) target = $region5
  $region4: #{transformer_decoder_layer.13} parent=0 // pred_region
    _
  $region5: #{transformer_decoder_layer.13} parent=0 // pred_fallthru
    _
  // Predicated region
  $region6: #{transformer_decoder_layer.13} parent=0 // pred_check
    _
  $region7: #{transformer_decoder_layer.13} parent=0 // pred_check_branch
    %11 = sbr.rel (0) target = $region9
  $region8: #{transformer_decoder_layer.13} parent=0 // pred_region
    _
  $region9: #{transformer_decoder_layer.13} parent=0 // pred_fallthru
    _
  // Predicated region
  $region10: #{transformer_decoder_layer.13} parent=0 // pred_check
    _
  $region11: #{transformer_decoder_layer.13} parent=0 // pred_check_branch
    %13 = sbr.rel (0) target = $region13
  $region12: #{transformer_decoder_layer.13} parent=0 // pred_region
    _
  $region13: #{transformer_decoder_layer.13} parent=0 // pred_fallthru
    _
  %p15 = scmp.eq.s32.totalorder 0, 0
  // Predicated region
  $region14: #{transformer_decoder_layer.13} parent=0 // pred_check
    %p16 = pneg %p15
  $region15: #{transformer_decoder_layer.13} parent=0 // pred_check_branch
    %18 = sbr.rel (%p16) target = $region17
  $region16: #{transformer_decoder_layer.13} parent=0 // pred_region
    %19 = vst [vmem:[#allocation2] sm:$0xff] 0.0
    %20 = vst [vmem:[#allocation2 + $0x8] sm:$0xff] 0.0
    %21 = vst [vmem:[#allocation2 + $0x10] sm:$0xff] 0.0
    %22 = vst [vmem:[#allocation2 + $0x18] sm:$0xff] 0.0
  $region17: #{transformer_decoder_layer.13} parent=0 // pred_fallthru
    _
  %v23 = vld [vmem:[#allocation2] sm:$0xff]
  %v24 = vld [vmem:[#allocation2 + $0x8] sm:$0xff]
  %v25 = vld [vmem:[#allocation2 + $0x10] sm:$0xff]
  %v26 = vld [vmem:[#allocation2 + $0x18] sm:$0xff]
  %v27 = vld [vmem:[%s0] sm:$0xf]
  %v28 = vld [vmem:[%s0 + $0x4] sm:$0xf]
  %v29 = vld [vmem:[%s1] sm:$0xff]
  %v30 = vld [vmem:[%s1 + $0x8] sm:$0xff]
  %v31 = vld [vmem:[%s1 + $0x10] sm:$0xff]
  %v32 = vld [vmem:[%s1 + $0x18] sm:$0xff]
  %v33 = vld [vmem:[%s1 + $0x20] sm:$0xff]
  %v34 = vld [vmem:[%s1 + $0x28] sm:$0xff]
  %v35 = vld [vmem:[%s1 + $0x30] sm:$0xff]
  %v36 = vld [vmem:[%s1 + $0x38] sm:$0xff]
  %v37 = vld [vmem:[%s1 + $0x40] sm:$0xff]
  %v38 = vld [vmem:[%s1 + $0x48] sm:$0xff]
  %v39 = vld [vmem:[%s1 + $0x50] sm:$0xff]
  %v40 = vld [vmem:[%s1 + $0x58] sm:$0xff]
  %v41 = vld [vmem:[%s1 + $0x60] sm:$0xff]
  %v42 = vld [vmem:[%s1 + $0x68] sm:$0xff]
  %v43 = vld [vmem:[%s1 + $0x70] sm:$0xff]
  %v44 = vld [vmem:[%s1 + $0x78] sm:$0xff]
  %v47 = vunpack.c.l.b16 %v27
  %v48 = vunpack.c.l.b16 %v28
  %v49 = vpack.c.b16 %v48, %v47
  %v67 = vunpack.c.l.b16 %v29
  %v68 = vunpack.c.h.b16 %v29
  %v69 = vunpack.c.l.b16 %v30
  %v70 = vunpack.c.h.b16 %v30
  %v71 = vunpack.c.l.b16 %v31
  %v72 = vunpack.c.h.b16 %v31
  %v73 = vunpack.c.l.b16 %v32
  %v74 = vunpack.c.h.b16 %v32
  %v75 = vunpack.c.l.b16 %v33
  %v76 = vunpack.c.h.b16 %v33
  %v77 = vunpack.c.l.b16 %v34
  %v78 = vunpack.c.h.b16 %v34
  %v79 = vunpack.c.l.b16 %v35
  %v80 = vunpack.c.h.b16 %v35
  %v81 = vunpack.c.l.b16 %v36
  %v82 = vunpack.c.h.b16 %v36
  %v83 = vunpack.c.l.b16 %v37
  %v84 = vunpack.c.h.b16 %v37
  %v85 = vunpack.c.l.b16 %v38
  %v86 = vunpack.c.h.b16 %v38
  %v87 = vunpack.c.l.b16 %v39
  %v88 = vunpack.c.h.b16 %v39
  %v89 = vunpack.c.l.b16 %v40
  %v90 = vunpack.c.h.b16 %v40
  %v91 = vunpack.c.l.b16 %v41
  %v92 = vunpack.c.h.b16 %v41
  %v93 = vunpack.c.l.b16 %v42
  %v94 = vunpack.c.h.b16 %v42
  %v95 = vunpack.c.l.b16 %v43
  %v96 = vunpack.c.h.b16 %v43
  %v97 = vunpack.c.l.b16 %v44
  %v98 = vunpack.c.h.b16 %v44
  %v99 = vpack.c.b16 %v69, %v67
  %v100 = vpack.c.b16 %v70, %v68
  %v101 = vpack.c.b16 %v73, %v71
  %v102 = vpack.c.b16 %v74, %v72
  %v103 = vpack.c.b16 %v77, %v75
  %v104 = vpack.c.b16 %v78, %v76
  %v105 = vpack.c.b16 %v81, %v79
  %v106 = vpack.c.b16 %v82, %v80
  %v107 = vpack.c.b16 %v85, %v83
  %v108 = vpack.c.b16 %v86, %v84
  %v109 = vpack.c.b16 %v89, %v87
  %v110 = vpack.c.b16 %v90, %v88
  %v111 = vpack.c.b16 %v93, %v91
  %v112 = vpack.c.b16 %v94, %v92
  %v113 = vpack.c.b16 %v97, %v95
  %v114 = vpack.c.b16 %v98, %v96
  %131 = vmatprep.subr.bf16.mxu0 %v100
  %132 = vmatpush1.bf16.msra.mxu0 %v99
  %133 = vmatprep.subr.bf16.mxu0 %v102
  %134 = vmatpush1.bf16.msra.mxu0 %v101
  %135 = vmatprep.subr.bf16.mxu0 %v104
  %136 = vmatpush1.bf16.msra.mxu0 %v103
  %137 = vmatprep.subr.bf16.mxu0 %v106
  %138 = vmatpush1.bf16.msra.mxu0 %v105
  %139 = vmatprep.subr.bf16.mxu0 %v108
  %140 = vmatpush1.bf16.msra.mxu0 %v107
  %141 = vmatprep.subr.bf16.mxu0 %v110
  %142 = vmatpush1.bf16.msra.mxu0 %v109
  %143 = vmatprep.subr.bf16.mxu0 %v112
  %144 = vmatpush1.bf16.msra.mxu0 %v111
  %145 = vmatprep.subr.bf16.mxu0 %v114
  %146 = vmatpush1.bf16.msra.mxu0 %v113
  %147 = vmatprep.subr.bf16.mxu0 0
  %148 = vmatpush1.bf16.msra.mxu0 0
  %149 = vmatprep.subr.bf16.mxu0 0
  %150 = vmatpush1.bf16.msra.mxu0 0
  %151 = vmatprep.subr.bf16.mxu0 0
  %152 = vmatpush1.bf16.msra.mxu0 0
  %153 = vmatprep.subr.bf16.mxu0 0
  %154 = vmatpush1.bf16.msra.mxu0 0
  %155 = vmatprep.subr.bf16.mxu0 0
  %156 = vmatpush1.bf16.msra.mxu0 0
  %157 = vmatprep.subr.bf16.mxu0 0
  %158 = vmatpush1.bf16.msra.mxu0 0
  %159 = vmatprep.subr.bf16.mxu0 0
  %160 = vmatpush1.bf16.msra.mxu0 0
  %161 = vmatprep.subr.bf16.mxu0 0
  %162 = vmatpush1.bf16.msra.mxu0 0
  %163 = vmatprep.mubr.bf16.mxu0 0
  %164 = vmatmul.mubr.bf16.gmra.mrb[0].mxu0 %v49
  %v165 = vpop.f32.mrb[0].mxu0
  %v166 = vadd.f32 0.0, %v165
  %v167 = vpop.f32.mrb[0].mxu0
  %v168 = vadd.f32 0.0, %v167
  %v169 = vpop.f32.mrb[0].mxu0
  %v170 = vadd.f32 0.0, %v169
  %v171 = vpop.f32.mrb[0].mxu0
  %v172 = vadd.f32 0.0, %v171
  %173 = vdwg.mxu0
  %v174 = vadd.f32 %v23, %v166
  %v175 = vadd.f32 %v24, %v168
  %v176 = vadd.f32 %v25, %v170
  %v177 = vadd.f32 %v26, %v172
  %178 = vst [vmem:[#allocation2] sm:$0xff] %v174
  %179 = vst [vmem:[#allocation2 + $0x8] sm:$0xff] %v175
  %180 = vst [vmem:[#allocation2 + $0x10] sm:$0xff] %v176
  %181 = vst [vmem:[#allocation2 + $0x18] sm:$0xff] %v177
  // Predicated region
  $region18: #{transformer_decoder_layer.13} parent=0 // pred_check
    %p182 = pneg %p15
  $region19: #{transformer_decoder_layer.13} parent=0 // pred_check_branch
    %184 = sbr.rel (%p182) target = $region21
  $region20: #{transformer_decoder_layer.13} parent=0 // pred_region
    %v185 = vld [vmem:[#allocation2] sm:$0xff]
    %v186 = vld [vmem:[#allocation2 + $0x8] sm:$0xff]
    %v187 = vld [vmem:[#allocation2 + $0x10] sm:$0xff]
    %v188 = vld [vmem:[#allocation2 + $0x18] sm:$0xff]
    %v189 = vld [vmem:[%s2] sm:$0x3]
    %v191 = vlaneseq
    %v192 = vshrl.u32 %v191, 7
    %v193 = vsub.s32 0, %v192
    %v194 = vrot.slane %v189, %v193
    %v195 = vlaneseq
    %v196 = vshrl.u32 %v195, 7
    %v197 = vsub.s32 1, %v196
    %v198 = vrot.slane %v189, %v197
    %v201 = vadd.f32 %v185, %v194
    %v202 = vadd.f32 %v186, %v198
    %v203 = vadd.f32 %v187, %v194
    %v204 = vadd.f32 %v188, %v198
    %v205 = vpack.c.bf16 %v203, %v201
    %v206 = vpack.c.bf16 %v204, %v202
    %v209 = vunpack.c.l.b16 %v205
    %v210 = vunpack.c.l.b16 %v206
    %v211 = vunpack.c.h.b16 %v205
    %v212 = vunpack.c.h.b16 %v206
    %v213 = vpack.c.b16 %v210, %v209
    %v214 = vpack.c.b16 %v212, %v211
    %217 = vst [vmem:[%s3] sm:$0xff] %v213
    %218 = vst [vmem:[%s3 + $0x8] sm:$0xff] %v214
  $region21: #{transformer_decoder_layer.13} parent=0 // pred_fallthru
    _
  // Predicated region
  $region22: #{transformer_decoder_layer.13} parent=0 // pred_check
    _
  $region23: #{transformer_decoder_layer.13} parent=0 // pred_check_branch
    %220 = sbr.rel (0) target = $region25
  $region24: #{transformer_decoder_layer.13} parent=0 // pred_region
    _
  $region25: #{transformer_decoder_layer.13} parent=0 // pred_fallthru
    _
  // Predicated region
  $region26: #{transformer_decoder_layer.13} parent=0 // pred_check
    _
  $region27: #{transformer_decoder_layer.13} parent=0 // pred_check_branch
    %222 = sbr.rel (0) target = $region29
  $region28: #{transformer_decoder_layer.13} parent=0 // pred_region
    _
  $region29: #{transformer_decoder_layer.13} parent=0 // pred_fallthru
    _

// kernel: transformer_decoder_layer.16
$region0: #{transformer_decoder_layer.16}
  #allocation0 [shape = 'u32[]', space=smem, size = 0x4, offset = 0x4, fixed_abs, tag = 'smem constant byte address 0x4 - core index']
  #allocation1 [shape = 'u32[144,128]{1,0:T(1,128)}', space=vmem, size = 0x12000, scoped, tag = 'internal scratch']
  #allocation2 [shape = 'f32[16,256]{1,0:T(8,128)}', space=vmem, size = 0x4000, scoped, tag = 'scratch operand']
  %s0 = inlined_call_operand.vmem [shape: bf16[16,128], index: 0, kind: input, shape index: {}]
  %s1 = inlined_call_operand.vmem [shape: bf16[128,512], index: 1, kind: input, shape index: {}]
  %s2 = inlined_call_operand.vmem [shape: f32[1,512], index: 2, kind: input, shape index: {}]
  %s3 = inlined_call_operand.vmem [shape: bf16[16,512], index: 3, kind: output, shape index: {}]
  %s4 = sld [smem:[#allocation0]]
  $region125: #{transformer_decoder_layer.16} parent=0
    _
  %s6 = ssub.s32 1, %s4
  %s7 = scalar_select 0, %s6, %s4
  $region1: #{transformer_decoder_layer.16} parent=0
    #allocation3 [shape = 'u8[131072]{0}', space=vmem, size = 0x20000, scoped, tag = 'input window, operand 1']
    #allocation4 [shape = 'u8[16384]{0}', space=vmem, size = 0x4000, scoped, tag = 'output window, operand 0']
    loop: start=0, step=1, limit=4
    $region2: #{transformer_decoder_layer.16} parent=1 // loop_pre_header
      _
    $region3: #{transformer_decoder_layer.16} parent=1 // loop_header
      %s9 = sphi 0, %s13
      %p10 = scmp.ge.s32.totalorder %s9, 4
      %s16 = sphi 0, %s35
      %s17 = sphi 0, %s31
      %s18 = sphi 0, %s27
      %s19 = sphi 0, %s16
      %s20 = sphi 0, %s17
      %s21 = sphi 0, %s18
      %s22 = sphi 0, %s19
      %s23 = sphi 0, %s20
      %s24 = sphi 0, %s21
      %s40 = sphi 0, %s42
      %s43 = sphi 0, %s40
      %s44 = sphi 0, %s43
      %s60 = sphi 0, %s44
      %s68 = sphi 0, %s70
      %s71 = sphi 0, %s68
      %s72 = sphi 0, %s71
      %s88 = sphi 0, %s72
      %s94 = sphi 0, %s96
      %s97 = sphi 0, %s94
      %s98 = sphi 0, %s97
      %s114 = sphi 0, %s98
      %s122 = sphi 0, %s124
      %s125 = sphi 0, %s122
      %s126 = sphi 0, %s125
      %s142 = sphi 0, %s126
    $region4: #{transformer_decoder_layer.16} parent=1 // loop_header_branch
      %12 = sbr.rel (%p10) target = $region8
    $region5: #{transformer_decoder_layer.16} parent=1 // loop_body
      %s14 = ssub.s32 %s9, 1
      %s15 = ssub.s32 %s9, 2
      %s25 = sadd.s32 1, %s18
      %p26 = scmp.ge.s32.totalorder %s25, 1
      %s27 = scalar_select %p26, 0, %s25
      %s28 = sadd.s32 1, %s17
      %s29 = scalar_select %p26, %s28, %s17
      %p30 = scmp.ge.s32.totalorder %s29, 2
      %s31 = scalar_select %p30, 0, %s29
      %s32 = sadd.s32 1, %s16
      %s33 = scalar_select %p30, %s32, %s16
      %p34 = scmp.ge.s32.totalorder %s33, 1
      %s35 = scalar_select %p34, 0, %s33
      %s36 = ssub.s32 %s16, %s35
      %s37 = ssub.s32 %s18, %s27
      %s38 = sor.u32 %s36, %s37
      %p39 = scmp.eq.s32.totalorder %s38, 0
      %s41 = sadd.s32 %s40, 1
      %s42 = scalar_select %p39, %s40, %s41
      %p45 = pneg %p39
      %p46 = scmp.eq.s32.totalorder %s9, 1
      %p47 = por %p45, %p46
      %p48 = scmp.ne.s32.totalorder %s40, %s43
      %p49 = scmp.eq.s32.totalorder %s9, 0
      %p50 = por %p48, %p49
      %p51 = scmp.ne.s32.totalorder %s40, %s43
      %p52 = scmp.eq.s32.totalorder %s14, 1
      %p53 = por %p51, %p52
      %p54 = scmp.ne.s32.totalorder %s43, %s44
      %p55 = scmp.eq.s32.totalorder %s14, 0
      %p56 = por %p54, %p55
      %p57 = scmp.ne.s32.totalorder %s43, %s44
      %p58 = scmp.eq.s32.totalorder %s15, 1
      %p59 = por %p57, %p58
      %p61 = scmp.ne.s32.totalorder %s44, %s60
      %p62 = scmp.eq.s32.totalorder %s15, 0
      %p63 = por %p61, %p62
      %s64 = ssub.s32 %s18, %s27
      %s65 = ssub.s32 %s17, %s31
      %s66 = sor.u32 %s64, %s65
      %p67 = scmp.eq.s32.totalorder %s66, 0
      %s69 = sadd.s32 %s68, 1
      %s70 = scalar_select %p67, %s68, %s69
      %p73 = pneg %p67
      %p74 = scmp.eq.s32.totalorder %s9, 1
      %p75 = por %p73, %p74
      %p76 = scmp.ne.s32.totalorder %s68, %s71
      %p77 = scmp.eq.s32.totalorder %s9, 0
      %p78 = por %p76, %p77
      %p79 = scmp.ne.s32.totalorder %s68, %s71
      %p80 = scmp.eq.s32.totalorder %s14, 1
      %p81 = por %p79, %p80
      %p82 = scmp.ne.s32.totalorder %s71, %s72
      %p83 = scmp.eq.s32.totalorder %s14, 0
      %p84 = por %p82, %p83
      %p85 = scmp.ne.s32.totalorder %s71, %s72
      %p86 = scmp.eq.s32.totalorder %s15, 1
      %p87 = por %p85, %p86
      %p89 = scmp.ne.s32.totalorder %s72, %s88
      %p90 = scmp.eq.s32.totalorder %s15, 0
      %p91 = por %p89, %p90
      %s92 = ssub.s32 %s17, %s31
      %p93 = scmp.eq.s32.totalorder %s92, 0
      %s95 = sadd.s32 %s94, 1
      %s96 = scalar_select %p93, %s94, %s95
      %p99 = pneg %p93
      %p100 = scmp.eq.s32.totalorder %s9, 1
      %p101 = por %p99, %p100
      %p102 = scmp.ne.s32.totalorder %s94, %s97
      %p103 = scmp.eq.s32.totalorder %s9, 0
      %p104 = por %p102, %p103
      %p105 = scmp.ne.s32.totalorder %s94, %s97
      %p106 = scmp.eq.s32.totalorder %s14, 1
      %p107 = por %p105, %p106
      %p108 = scmp.ne.s32.totalorder %s97, %s98
      %p109 = scmp.eq.s32.totalorder %s14, 0
      %p110 = por %p108, %p109
      %p111 = scmp.ne.s32.totalorder %s97, %s98
      %p112 = scmp.eq.s32.totalorder %s15, 1
      %p113 = por %p111, %p112
      %p115 = scmp.ne.s32.totalorder %s98, %s114
      %p116 = scmp.eq.s32.totalorder %s15, 0
      %p117 = por %p115, %p116
      %s118 = ssub.s32 %s16, %s35
      %s119 = ssub.s32 %s17, %s31
      %s120 = sor.u32 %s118, %s119
      %p121 = scmp.eq.s32.totalorder %s120, 0
      %s123 = sadd.s32 %s122, 1
      %s124 = scalar_select %p121, %s122, %s123
      %p127 = pneg %p121
      %p128 = scmp.eq.s32.totalorder %s9, 1
      %p129 = por %p127, %p128
      %p130 = scmp.ne.s32.totalorder %s122, %s125
      %p131 = scmp.eq.s32.totalorder %s9, 0
      %p132 = por %p130, %p131
      %p133 = scmp.ne.s32.totalorder %s122, %s125
      %p134 = scmp.eq.s32.totalorder %s14, 1
      %p135 = por %p133, %p134
      %p136 = scmp.ne.s32.totalorder %s125, %s126
      %p137 = scmp.eq.s32.totalorder %s14, 0
      %p138 = por %p136, %p137
      %p139 = scmp.ne.s32.totalorder %s125, %s126
      %p140 = scmp.eq.s32.totalorder %s15, 1
      %p141 = por %p139, %p140
      %p143 = scmp.ne.s32.totalorder %s126, %s142
      %p144 = scmp.eq.s32.totalorder %s15, 0
      %p145 = por %p143, %p144
      %p146 = scmp.le.s32.totalorder 1, %s9
      %p147 = scmp.lt.s32.totalorder %s9, 3
      %p148 = pnand %p146, %p147
      %p149 = pneg %p148
      // Predicated region
      $region9: #{transformer_decoder_layer.16} parent=5 // pred_check
        _
      $region10: #{transformer_decoder_layer.16} parent=5 // pred_check_branch
        %151 = sbr.rel (%p148) target = $region12
      $region11: #{transformer_decoder_layer.16} parent=5 // pred_region
        %s152 = ssub.s32 %s9, 1
        // Predicated region
        $region13: #{transformer_decoder_layer.16} parent=11 // pred_check
          %p153 = pneg %p56
        $region14: #{transformer_decoder_layer.16} parent=11 // pred_check_branch
          %155 = sbr.rel (%p153) target = $region16
        $region15: #{transformer_decoder_layer.16} parent=11 // pred_region
          %s156 = smul.u32 2, %s19
          %p157 = scmp.lt.s32.totalorder %s156, 1
          %s158 = scalar_select %p157, %s156, 1
          %p159 = scmp.lt.s32.totalorder %s21, 0
          %s160 = scalar_select %p159, %s21, 0
          %s161 = sadd.s32 %s160, %s158
          %s162 = smul.addr %s161, 4
          %s163 = scalar_lea.vmem %s0, %s162
          %s164 = smul.u32 2, %s19
        $region16: #{transformer_decoder_layer.16} parent=11 // pred_fallthru
          _
      $region12: #{transformer_decoder_layer.16} parent=5 // pred_fallthru
        _
      %p165 = scmp.lt.s32.totalorder %s9, 2
      // Predicated region
      $region17: #{transformer_decoder_layer.16} parent=5 // pred_check
        %p166 = pneg %p165
      $region18: #{transformer_decoder_layer.16} parent=5 // pred_check_branch
        %168 = sbr.rel (%p166) target = $region20
      $region19: #{transformer_decoder_layer.16} parent=5 // pred_region
        // Predicated region
        $region21: #{transformer_decoder_layer.16} parent=19 // pred_check
          %p169 = pneg %p78
        $region22: #{transformer_decoder_layer.16} parent=19 // pred_check_branch
          %171 = sbr.rel (%p169) target = $region24
        $region23: #{transformer_decoder_layer.16} parent=19 // pred_region
          %s172 = sand.u32 %s68, 1
          %s173 = sand.u32 %s68, 1
          %s174 = smul.addr %s173, 128
          %s175 = scalar_lea.vmem [#allocation3], %s174
          %s176 = smul.u32 16, %s18
          %s177 = smul.u32 2, %s17
          %s178 = smul.addr %s176, 4
          %s179 = sadd.s32 %s177, %s178
          %s180 = smul.addr %s179, 4
          %s181 = scalar_lea.vmem %s1, %s180
          // Predicated region
          $region25: #{transformer_decoder_layer.16} parent=23 // pred_check
            _
          $region26: #{transformer_decoder_layer.16} parent=23 // pred_check_branch
            %183 = sbr.rel (0) target = $region28
          $region27: #{transformer_decoder_layer.16} parent=23 // pred_region
            // Predicated region
            $region29: #{transformer_decoder_layer.16} parent=27 // pred_check
              _
            $region30: #{transformer_decoder_layer.16} parent=27 // pred_check_branch
              %185 = sbr.rel (0) target = $region32
            $region31: #{transformer_decoder_layer.16} parent=27 // pred_region
              // Predicated region
              $region44: #{transformer_decoder_layer.16} parent=31 // pred_check
                _
              $region45: #{transformer_decoder_layer.16} parent=31 // pred_check_branch
                %230 = sbr.rel (0) target = $region47
              $region46: #{transformer_decoder_layer.16} parent=31 // pred_region
                loop: start=0, step=1, limit=1
                $region48: #{transformer_decoder_layer.16} parent=46 // loop_pre_header
                  _
                $region49: #{transformer_decoder_layer.16} parent=46 // loop_header
                  %s232 = sphi 0, %s236
                  %p233 = scmp.ge.s32.totalorder %s232, 1
                  %s237 = sphi %s181, %s181
                  %s238 = sphi %s175, %s175
                $region50: #{transformer_decoder_layer.16} parent=46 // loop_header_branch
                  %235 = sbr.rel (%p233) target = $region54
                $region51: #{transformer_decoder_layer.16} parent=46 // loop_body
                  %v239 = vld [vmem:[%s237] sm:$0xff]
                  %240 = vst [vmem:[%s238] sm:$0xff] %v239
                  %v241 = vld [vmem:[%s237 + $0x10] sm:$0xff]
                  %242 = vst [vmem:[%s238 + $0x8] sm:$0xff] %v241
                  %v243 = vld [vmem:[%s237 + $0x20] sm:$0xff]
                  %244 = vst [vmem:[%s238 + $0x10] sm:$0xff] %v243
                  %v245 = vld [vmem:[%s237 + $0x30] sm:$0xff]
                  %246 = vst [vmem:[%s238 + $0x18] sm:$0xff] %v245
                  %v247 = vld [vmem:[%s237 + $0x40] sm:$0xff]
                  %248 = vst [vmem:[%s238 + $0x20] sm:$0xff] %v247
                  %v249 = vld [vmem:[%s237 + $0x50] sm:$0xff]
                  %250 = vst [vmem:[%s238 + $0x28] sm:$0xff] %v249
                  %v251 = vld [vmem:[%s237 + $0x60] sm:$0xff]
                  %252 = vst [vmem:[%s238 + $0x30] sm:$0xff] %v251
                  %v253 = vld [vmem:[%s237 + $0x70] sm:$0xff]
                  %254 = vst [vmem:[%s238 + $0x38] sm:$0xff] %v253
                  %v255 = vld [vmem:[%s237 + $0x80] sm:$0xff]
                  %256 = vst [vmem:[%s238 + $0x40] sm:$0xff] %v255
                  %v257 = vld [vmem:[%s237 + $0x90] sm:$0xff]
                  %258 = vst [vmem:[%s238 + $0x48] sm:$0xff] %v257
                  %v259 = vld [vmem:[%s237 + $0xa0] sm:$0xff]
                  %260 = vst [vmem:[%s238 + $0x50] sm:$0xff] %v259
                  %v261 = vld [vmem:[%s237 + $0xb0] sm:$0xff]
                  %262 = vst [vmem:[%s238 + $0x58] sm:$0xff] %v261
                  %v263 = vld [vmem:[%s237 + $0xc0] sm:$0xff]
                  %264 = vst [vmem:[%s238 + $0x60] sm:$0xff] %v263
                  %v265 = vld [vmem:[%s237 + $0xd0] sm:$0xff]
                  %266 = vst [vmem:[%s238 + $0x68] sm:$0xff] %v265
                  %v267 = vld [vmem:[%s237 + $0xe0] sm:$0xff]
                  %268 = vst [vmem:[%s238 + $0x70] sm:$0xff] %v267
                  %v269 = vld [vmem:[%s237 + $0xf0] sm:$0xff]
                  %270 = vst [vmem:[%s238 + $0x78] sm:$0xff] %v269
                $region52: #{transformer_decoder_layer.16} parent=46 // loop_footer
                  %s236 = sadd.s32 1, %s232
                $region53: #{transformer_decoder_layer.16} parent=46 // loop_footer_branch
                  %231 = sbr.rel target = $region49
                $region54: #{transformer_decoder_layer.16} parent=46 // loop_exit
                  _
              $region47: #{transformer_decoder_layer.16} parent=31 // pred_fallthru
                _
              // Predicated region
              $region55: #{transformer_decoder_layer.16} parent=31 // pred_check
                _
              $region56: #{transformer_decoder_layer.16} parent=31 // pred_check_branch
                %272 = sbr.rel target = $region58
              $region57: #{transformer_decoder_layer.16} parent=31 // pred_region
                _
              $region58: #{transformer_decoder_layer.16} parent=31 // pred_fallthru
                _
            $region32: #{transformer_decoder_layer.16} parent=27 // pred_fallthru
              _
            // Predicated region
            $region33: #{transformer_decoder_layer.16} parent=27 // pred_check
              _
            $region34: #{transformer_decoder_layer.16} parent=27 // pred_check_branch
              %187 = sbr.rel target = $region36
            $region35: #{transformer_decoder_layer.16} parent=27 // pred_region
              loop: start=0, step=1, limit=1
              $region37: #{transformer_decoder_layer.16} parent=35 // loop_pre_header
                _
              $region38: #{transformer_decoder_layer.16} parent=35 // loop_header
                %s190 = sphi 0, %s194
                %p191 = scmp.ge.s32.totalorder %s190, 1
                %s195 = sphi %s181, %s181
                %s196 = sphi %s175, %s175
              $region39: #{transformer_decoder_layer.16} parent=35 // loop_header_branch
                %193 = sbr.rel (%p191) target = $region43
              $region40: #{transformer_decoder_layer.16} parent=35 // loop_body
                %v197 = vld [vmem:[%s195] sm:$0xff]
                %198 = vst [vmem:[%s196] sm:$0xff] %v197
                %v199 = vld [vmem:[%s195 + $0x10] sm:$0xff]
                %200 = vst [vmem:[%s196 + $0x8] sm:$0xff] %v199
                %v201 = vld [vmem:[%s195 + $0x20] sm:$0xff]
                %202 = vst [vmem:[%s196 + $0x10] sm:$0xff] %v201
                %v203 = vld [vmem:[%s195 + $0x30] sm:$0xff]
                %204 = vst [vmem:[%s196 + $0x18] sm:$0xff] %v203
                %v205 = vld [vmem:[%s195 + $0x40] sm:$0xff]
                %206 = vst [vmem:[%s196 + $0x20] sm:$0xff] %v205
                %v207 = vld [vmem:[%s195 + $0x50] sm:$0xff]
                %208 = vst [vmem:[%s196 + $0x28] sm:$0xff] %v207
                %v209 = vld [vmem:[%s195 + $0x60] sm:$0xff]
                %210 = vst [vmem:[%s196 + $0x30] sm:$0xff] %v209
                %v211 = vld [vmem:[%s195 + $0x70] sm:$0xff]
                %212 = vst [vmem:[%s196 + $0x38] sm:$0xff] %v211
                %v213 = vld [vmem:[%s195 + $0x80] sm:$0xff]
                %214 = vst [vmem:[%s196 + $0x40] sm:$0xff] %v213
                %v215 = vld [vmem:[%s195 + $0x90] sm:$0xff]
                %216 = vst [vmem:[%s196 + $0x48] sm:$0xff] %v215
                %v217 = vld [vmem:[%s195 + $0xa0] sm:$0xff]
                %218 = vst [vmem:[%s196 + $0x50] sm:$0xff] %v217
                %v219 = vld [vmem:[%s195 + $0xb0] sm:$0xff]
                %220 = vst [vmem:[%s196 + $0x58] sm:$0xff] %v219
                %v221 = vld [vmem:[%s195 + $0xc0] sm:$0xff]
                %222 = vst [vmem:[%s196 + $0x60] sm:$0xff] %v221
                %v223 = vld [vmem:[%s195 + $0xd0] sm:$0xff]
                %224 = vst [vmem:[%s196 + $0x68] sm:$0xff] %v223
                %v225 = vld [vmem:[%s195 + $0xe0] sm:$0xff]
                %226 = vst [vmem:[%s196 + $0x70] sm:$0xff] %v225
                %v227 = vld [vmem:[%s195 + $0xf0] sm:$0xff]
                %228 = vst [vmem:[%s196 + $0x78] sm:$0xff] %v227
              $region41: #{transformer_decoder_layer.16} parent=35 // loop_footer
                %s194 = sadd.s32 1, %s190
              $region42: #{transformer_decoder_layer.16} parent=35 // loop_footer_branch
                %189 = sbr.rel target = $region38
              $region43: #{transformer_decoder_layer.16} parent=35 // loop_exit
                _
            $region36: #{transformer_decoder_layer.16} parent=27 // pred_fallthru
              _
          $region28: #{transformer_decoder_layer.16} parent=23 // pred_fallthru
            _
          %273 = vnop
        $region24: #{transformer_decoder_layer.16} parent=19 // pred_fallthru
          _
        // Predicated region
        $region59: #{transformer_decoder_layer.16} parent=19 // pred_check
          %p274 = pneg %p104
        $region60: #{transformer_decoder_layer.16} parent=19 // pred_check_branch
          %276 = sbr.rel (%p274) target = $region62
        $region61: #{transformer_decoder_layer.16} parent=19 // pred_region
          %s277 = smul.u32 2, %s17
          %p278 = scmp.lt.s32.totalorder %s277, 3
          %s279 = scalar_select %p278, %s277, 3
          %s280 = scalar_lea.vmem %s2, %s279
          %s281 = smul.u32 2, %s17
        $region62: #{transformer_decoder_layer.16} parent=19 // pred_fallthru
          _
      $region20: #{transformer_decoder_layer.16} parent=5 // pred_fallthru
        _
      %p282 = scmp.le.s32.totalorder 1, %s9
      %p283 = scmp.lt.s32.totalorder %s9, 3
      %p284 = pnand %p282, %p283
      %p285 = pneg %p284
      // Predicated region
      $region63: #{transformer_decoder_layer.16} parent=5 // pred_check
        _
      $region64: #{transformer_decoder_layer.16} parent=5 // pred_check_branch
        %287 = sbr.rel (%p284) target = $region66
      $region65: #{transformer_decoder_layer.16} parent=5 // pred_region
        %s288 = ssub.s32 %s9, 1
        %s289 = sand.u32 %s71, 1
        %s290 = sand.u32 %s71, 1
        %s291 = smul.addr %s290, 128
        %s292 = scalar_lea.vmem [#allocation3], %s291
        // Predicated region
        $region67: #{transformer_decoder_layer.16} parent=65 // pred_check
          %p293 = pneg %p84
        $region68: #{transformer_decoder_layer.16} parent=65 // pred_check_branch
          %295 = sbr.rel (%p293) target = $region70
        $region69: #{transformer_decoder_layer.16} parent=65 // pred_region
          _
        $region70: #{transformer_decoder_layer.16} parent=65 // pred_fallthru
          _
        %s296 = smul.u32 2, %s19
        %p297 = scmp.lt.s32.totalorder %s296, 1
        %s298 = scalar_select %p297, %s296, 1
        %p299 = scmp.lt.s32.totalorder %s21, 0
        %s300 = scalar_select %p299, %s21, 0
        %s301 = sadd.s32 %s300, %s298
        %s302 = smul.addr %s301, 4
        %s303 = scalar_lea.vmem %s0, %s302
        %p304 = pneg %p56
        %p305 = pneg %p53
        %s306 = sand.u32 %s71, 1
        %s307 = sand.u32 %s71, 1
        %s308 = smul.addr %s307, 128
        %s309 = scalar_lea.vmem [#allocation3], %s308
        %p310 = pneg %p84
        %p311 = pneg %p81
        %s312 = smul.u32 2, %s20
        %p313 = scmp.lt.s32.totalorder %s312, 3
        %s314 = scalar_select %p313, %s312, 3
        %s315 = scalar_lea.vmem %s2, %s314
        %p316 = pneg %p110
        %p317 = pneg %p107
        %p318 = pneg %p138
        %p319 = pneg %p135
        %s320 = sand.u32 %s125, 1
        %s321 = sand.u32 %s125, 1
        %s322 = smul.addr %s321, 16
        %s323 = scalar_lea.vmem [#allocation4], %s322
        %s324 = smul.u32 2, %s19
        %p325 = scmp.lt.s32.totalorder %s324, 1
        %s326 = scalar_select %p325, %s324, 1
        %p327 = scmp.lt.s32.totalorder %s21, 0
        %s328 = scalar_select %p327, %s21, 0
        %s329 = sadd.s32 %s328, %s326
        %s330 = smul.addr %s329, 4
        %s331 = scalar_lea.vmem %s0, %s330
        %s332 = smul.u32 2, %s19
        %s333 = smul.u32 16, %s21
        %s334 = smul.u32 2, %s20
        %s335 = smul.u32 2, %s20
        %p336 = scmp.lt.s32.totalorder %s335, 3
        %s337 = scalar_select %p336, %s335, 3
        %s338 = scalar_lea.vmem %s2, %s337
        %s339 = smul.u32 2, %s20
        %s340 = smul.u32 2, %s19
        %s341 = smul.u32 2, %s20
        %p343 = scmp.eq.s32.totalorder %s21, 0
        // Predicated region
        $region71: #{transformer_decoder_layer.16} parent=65 // pred_check
          %p344 = pneg %p343
        $region72: #{transformer_decoder_layer.16} parent=65 // pred_check_branch
          %346 = sbr.rel (%p344) target = $region74
        $region73: #{transformer_decoder_layer.16} parent=65 // pred_region
          %347 = vst [vmem:[#allocation2] sm:$0xff] 0.0
          %348 = vst [vmem:[#allocation2 + $0x8] sm:$0xff] 0.0
          %349 = vst [vmem:[#allocation2 + $0x10] sm:$0xff] 0.0
          %350 = vst [vmem:[#allocation2 + $0x18] sm:$0xff] 0.0
        $region74: #{transformer_decoder_layer.16} parent=65 // pred_fallthru
          _
        %v351 = vld [vmem:[#allocation2] sm:$0xff]
        %v352 = vld [vmem:[#allocation2 + $0x8] sm:$0xff]
        %v353 = vld [vmem:[#allocation2 + $0x10] sm:$0xff]
        %v354 = vld [vmem:[#allocation2 + $0x18] sm:$0xff]
        %v355 = vld [vmem:[%s331] sm:$0xf]
        %v356 = vld [vmem:[%s331 + $0x4] sm:$0xf]
        %v357 = vld [vmem:[%s292] sm:$0xff]
        %v358 = vld [vmem:[%s292 + $0x8] sm:$0xff]
        %v359 = vld [vmem:[%s292 + $0x10] sm:$0xff]
        %v360 = vld [vmem:[%s292 + $0x18] sm:$0xff]
        %v361 = vld [vmem:[%s292 + $0x20] sm:$0xff]
        %v362 = vld [vmem:[%s292 + $0x28] sm:$0xff]
        %v363 = vld [vmem:[%s292 + $0x30] sm:$0xff]
        %v364 = vld [vmem:[%s292 + $0x38] sm:$0xff]
        %v365 = vld [vmem:[%s292 + $0x40] sm:$0xff]
        %v366 = vld [vmem:[%s292 + $0x48] sm:$0xff]
        %v367 = vld [vmem:[%s292 + $0x50] sm:$0xff]
        %v368 = vld [vmem:[%s292 + $0x58] sm:$0xff]
        %v369 = vld [vmem:[%s292 + $0x60] sm:$0xff]
        %v370 = vld [vmem:[%s292 + $0x68] sm:$0xff]
        %v371 = vld [vmem:[%s292 + $0x70] sm:$0xff]
        %v372 = vld [vmem:[%s292 + $0x78] sm:$0xff]
        %v375 = vunpack.c.l.b16 %v355
        %v376 = vunpack.c.l.b16 %v356
        %v377 = vpack.c.b16 %v376, %v375
        %v395 = vunpack.c.l.b16 %v357
        %v396 = vunpack.c.h.b16 %v357
        %v397 = vunpack.c.l.b16 %v358
        %v398 = vunpack.c.h.b16 %v358
        %v399 = vunpack.c.l.b16 %v359
        %v400 = vunpack.c.h.b16 %v359
        %v401 = vunpack.c.l.b16 %v360
        %v402 = vunpack.c.h.b16 %v360
        %v403 = vunpack.c.l.b16 %v361
        %v404 = vunpack.c.h.b16 %v361
        %v405 = vunpack.c.l.b16 %v362
        %v406 = vunpack.c.h.b16 %v362
        %v407 = vunpack.c.l.b16 %v363
        %v408 = vunpack.c.h.b16 %v363
        %v409 = vunpack.c.l.b16 %v364
        %v410 = vunpack.c.h.b16 %v364
        %v411 = vunpack.c.l.b16 %v365
        %v412 = vunpack.c.h.b16 %v365
        %v413 = vunpack.c.l.b16 %v366
        %v414 = vunpack.c.h.b16 %v366
        %v415 = vunpack.c.l.b16 %v367
        %v416 = vunpack.c.h.b16 %v367
        %v417 = vunpack.c.l.b16 %v368
        %v418 = vunpack.c.h.b16 %v368
        %v419 = vunpack.c.l.b16 %v369
        %v420 = vunpack.c.h.b16 %v369
        %v421 = vunpack.c.l.b16 %v370
        %v422 = vunpack.c.h.b16 %v370
        %v423 = vunpack.c.l.b16 %v371
        %v424 = vunpack.c.h.b16 %v371
        %v425 = vunpack.c.l.b16 %v372
        %v426 = vunpack.c.h.b16 %v372
        %v427 = vpack.c.b16 %v397, %v395
        %v428 = vpack.c.b16 %v398, %v396
        %v429 = vpack.c.b16 %v401, %v399
        %v430 = vpack.c.b16 %v402, %v400
        %v431 = vpack.c.b16 %v405, %v403
        %v432 = vpack.c.b16 %v406, %v404
        %v433 = vpack.c.b16 %v409, %v407
        %v434 = vpack.c.b16 %v410, %v408
        %v435 = vpack.c.b16 %v413, %v411
        %v436 = vpack.c.b16 %v414, %v412
        %v437 = vpack.c.b16 %v417, %v415
        %v438 = vpack.c.b16 %v418, %v416
        %v439 = vpack.c.b16 %v421, %v419
        %v440 = vpack.c.b16 %v422, %v420
        %v441 = vpack.c.b16 %v425, %v423
        %v442 = vpack.c.b16 %v426, %v424
        %459 = vmatprep.subr.bf16.mxu0 %v428
        %460 = vmatpush1.bf16.msra.mxu0 %v427
        %461 = vmatprep.subr.bf16.mxu0 %v430
        %462 = vmatpush1.bf16.msra.mxu0 %v429
        %463 = vmatprep.subr.bf16.mxu0 %v432
        %464 = vmatpush1.bf16.msra.mxu0 %v431
        %465 = vmatprep.subr.bf16.mxu0 %v434
        %466 = vmatpush1.bf16.msra.mxu0 %v433
        %467 = vmatprep.subr.bf16.mxu0 %v436
        %468 = vmatpush1.bf16.msra.mxu0 %v435
        %469 = vmatprep.subr.bf16.mxu0 %v438
        %470 = vmatpush1.bf16.msra.mxu0 %v437
        %471 = vmatprep.subr.bf16.mxu0 %v440
        %472 = vmatpush1.bf16.msra.mxu0 %v439
        %473 = vmatprep.subr.bf16.mxu0 %v442
        %474 = vmatpush1.bf16.msra.mxu0 %v441
        %475 = vmatprep.subr.bf16.mxu0 0
        %476 = vmatpush1.bf16.msra.mxu0 0
        %477 = vmatprep.subr.bf16.mxu0 0
        %478 = vmatpush1.bf16.msra.mxu0 0
        %479 = vmatprep.subr.bf16.mxu0 0
        %480 = vmatpush1.bf16.msra.mxu0 0
        %481 = vmatprep.subr.bf16.mxu0 0
        %482 = vmatpush1.bf16.msra.mxu0 0
        %483 = vmatprep.subr.bf16.mxu0 0
        %484 = vmatpush1.bf16.msra.mxu0 0
        %485 = vmatprep.subr.bf16.mxu0 0
        %486 = vmatpush1.bf16.msra.mxu0 0
        %487 = vmatprep.subr.bf16.mxu0 0
        %488 = vmatpush1.bf16.msra.mxu0 0
        %489 = vmatprep.subr.bf16.mxu0 0
        %490 = vmatpush1.bf16.msra.mxu0 0
        %491 = vmatprep.mubr.bf16.mxu0 0
        %492 = vmatmul.mubr.bf16.gmra.mrb[0].mxu0 %v377
        %v493 = vpop.f32.mrb[0].mxu0
        %v494 = vadd.f32 0.0, %v493
        %v495 = vpop.f32.mrb[0].mxu0
        %v496 = vadd.f32 0.0, %v495
        %v497 = vpop.f32.mrb[0].mxu0
        %v498 = vadd.f32 0.0, %v497
        %v499 = vpop.f32.mrb[0].mxu0
        %v500 = vadd.f32 0.0, %v499
        %501 = vdwg.mxu0
        %v502 = vadd.f32 %v351, %v494
        %v503 = vadd.f32 %v352, %v496
        %v504 = vadd.f32 %v353, %v498
        %v505 = vadd.f32 %v354, %v500
        %506 = vst [vmem:[#allocation2] sm:$0xff] %v502
        %507 = vst [vmem:[#allocation2 + $0x8] sm:$0xff] %v503
        %508 = vst [vmem:[#allocation2 + $0x10] sm:$0xff] %v504
        %509 = vst [vmem:[#allocation2 + $0x18] sm:$0xff] %v505
        // Predicated region
        $region75: #{transformer_decoder_layer.16} parent=65 // pred_check
          %p510 = pneg %p343
        $region76: #{transformer_decoder_layer.16} parent=65 // pred_check_branch
          %512 = sbr.rel (%p510) target = $region78
        $region77: #{transformer_decoder_layer.16} parent=65 // pred_region
          %v513 = vld [vmem:[#allocation2] sm:$0xff]
          %v514 = vld [vmem:[#allocation2 + $0x8] sm:$0xff]
          %v515 = vld [vmem:[#allocation2 + $0x10] sm:$0xff]
          %v516 = vld [vmem:[#allocation2 + $0x18] sm:$0xff]
          %v517 = vld [vmem:[%s338] sm:$0x3]
          %v519 = vlaneseq
          %v520 = vshrl.u32 %v519, 7
          %v521 = vsub.s32 0, %v520
          %v522 = vrot.slane %v517, %v521
          %v523 = vlaneseq
          %v524 = vshrl.u32 %v523, 7
          %v525 = vsub.s32 1, %v524
          %v526 = vrot.slane %v517, %v525
          %v529 = vadd.f32 %v513, %v522
          %v530 = vadd.f32 %v514, %v526
          %v531 = vadd.f32 %v515, %v522
          %v532 = vadd.f32 %v516, %v526
          %v533 = vmax.f32 %v529, 0.0
          %v534 = vmax.f32 %v530, 0.0
          %v535 = vmax.f32 %v531, 0.0
          %v536 = vmax.f32 %v532, 0.0
          %v537 = vpack.c.bf16 %v535, %v533
          %v538 = vpack.c.bf16 %v536, %v534
          %v541 = vunpack.c.l.b16 %v537
          %v542 = vunpack.c.l.b16 %v538
          %v543 = vunpack.c.h.b16 %v537
          %v544 = vunpack.c.h.b16 %v538
          %v545 = vpack.c.b16 %v542, %v541
          %v546 = vpack.c.b16 %v544, %v543
          %549 = vst [vmem:[%s323] sm:$0xff] %v545
          %550 = vst [vmem:[%s323 + $0x8] sm:$0xff] %v546
        $region78: #{transformer_decoder_layer.16} parent=65 // pred_fallthru
          _
        %s551 = sand.u32 %s125, 1
        %s552 = sand.u32 %s125, 1
        %s553 = smul.addr %s552, 16
        %s554 = scalar_lea.vmem [#allocation4], %s553
        // Predicated region
        $region79: #{transformer_decoder_layer.16} parent=65 // pred_check
          %p555 = pneg %p135
        $region80: #{transformer_decoder_layer.16} parent=65 // pred_check_branch
          %557 = sbr.rel (%p555) target = $region82
        $region81: #{transformer_decoder_layer.16} parent=65 // pred_region
          %s558 = smul.u32 2, %s19
          %s559 = smul.u32 2, %s20
          %s560 = smul.addr %s558, 4
          %s561 = sadd.s32 %s559, %s560
          %s562 = smul.addr %s561, 4
          %s563 = scalar_lea.vmem %s3, %s562
          // Predicated region
          $region83: #{transformer_decoder_layer.16} parent=81 // pred_check
            _
          $region84: #{transformer_decoder_layer.16} parent=81 // pred_check_branch
            %565 = sbr.rel (0) target = $region86
          $region85: #{transformer_decoder_layer.16} parent=81 // pred_region
            // Predicated region
            $region87: #{transformer_decoder_layer.16} parent=85 // pred_check
              _
            $region88: #{transformer_decoder_layer.16} parent=85 // pred_check_branch
              %567 = sbr.rel (0) target = $region90
            $region89: #{transformer_decoder_layer.16} parent=85 // pred_region
              // Predicated region
              $region102: #{transformer_decoder_layer.16} parent=89 // pred_check
                _
              $region103: #{transformer_decoder_layer.16} parent=89 // pred_check_branch
                %584 = sbr.rel (0) target = $region105
              $region104: #{transformer_decoder_layer.16} parent=89 // pred_region
                loop: start=0, step=1, limit=1
                $region106: #{transformer_decoder_layer.16} parent=104 // loop_pre_header
                  _
                $region107: #{transformer_decoder_layer.16} parent=104 // loop_header
                  %s586 = sphi 0, %s590
                  %p587 = scmp.ge.s32.totalorder %s586, 1
                  %s591 = sphi %s554, %s554
                  %s592 = sphi %s563, %s563
                $region108: #{transformer_decoder_layer.16} parent=104 // loop_header_branch
                  %589 = sbr.rel (%p587) target = $region112
                $region109: #{transformer_decoder_layer.16} parent=104 // loop_body
                  %v593 = vld [vmem:[%s591] sm:$0xff]
                  %594 = vst [vmem:[%s592] sm:$0xff] %v593
                  %v595 = vld [vmem:[%s591 + $0x8] sm:$0xff]
                  %596 = vst [vmem:[%s592 + $0x10] sm:$0xff] %v595
                $region110: #{transformer_decoder_layer.16} parent=104 // loop_footer
                  %s590 = sadd.s32 1, %s586
                $region111: #{transformer_decoder_layer.16} parent=104 // loop_footer_branch
                  %585 = sbr.rel target = $region107
                $region112: #{transformer_decoder_layer.16} parent=104 // loop_exit
                  _
              $region105: #{transformer_decoder_layer.16} parent=89 // pred_fallthru
                _
              // Predicated region
              $region113: #{transformer_decoder_layer.16} parent=89 // pred_check
                _
              $region114: #{transformer_decoder_layer.16} parent=89 // pred_check_branch
                %598 = sbr.rel target = $region116
              $region115: #{transformer_decoder_layer.16} parent=89 // pred_region
                _
              $region116: #{transformer_decoder_layer.16} parent=89 // pred_fallthru
                _
            $region90: #{transformer_decoder_layer.16} parent=85 // pred_fallthru
              _
            // Predicated region
            $region91: #{transformer_decoder_layer.16} parent=85 // pred_check
              _
            $region92: #{transformer_decoder_layer.16} parent=85 // pred_check_branch
              %569 = sbr.rel target = $region94
            $region93: #{transformer_decoder_layer.16} parent=85 // pred_region
              loop: start=0, step=1, limit=1
              $region95: #{transformer_decoder_layer.16} parent=93 // loop_pre_header
                _
              $region96: #{transformer_decoder_layer.16} parent=93 // loop_header
                %s572 = sphi 0, %s576
                %p573 = scmp.ge.s32.totalorder %s572, 1
                %s577 = sphi %s554, %s554
                %s578 = sphi %s563, %s563
              $region97: #{transformer_decoder_layer.16} parent=93 // loop_header_branch
                %575 = sbr.rel (%p573) target = $region101
              $region98: #{transformer_decoder_layer.16} parent=93 // loop_body
                %v579 = vld [vmem:[%s577] sm:$0xff]
                %580 = vst [vmem:[%s578] sm:$0xff] %v579
                %v581 = vld [vmem:[%s577 + $0x8] sm:$0xff]
                %582 = vst [vmem:[%s578 + $0x10] sm:$0xff] %v581
              $region99: #{transformer_decoder_layer.16} parent=93 // loop_footer
                %s576 = sadd.s32 1, %s572
              $region100: #{transformer_decoder_layer.16} parent=93 // loop_footer_branch
                %571 = sbr.rel target = $region96
              $region101: #{transformer_decoder_layer.16} parent=93 // loop_exit
                _
            $region94: #{transformer_decoder_layer.16} parent=85 // pred_fallthru
              _
          $region86: #{transformer_decoder_layer.16} parent=81 // pred_fallthru
            _
          %599 = vnop
        $region82: #{transformer_decoder_layer.16} parent=65 // pred_fallthru
          _
      $region66: #{transformer_decoder_layer.16} parent=5 // pred_fallthru
        _
      %p600 = scmp.le.s32.totalorder 2, %s9
      // Predicated region
      $region117: #{transformer_decoder_layer.16} parent=5 // pred_check
        %p601 = pneg %p600
      $region118: #{transformer_decoder_layer.16} parent=5 // pred_check_branch
        %603 = sbr.rel (%p601) target = $region120
      $region119: #{transformer_decoder_layer.16} parent=5 // pred_region
        %s604 = ssub.s32 %s9, 2
        // Predicated region
        $region121: #{transformer_decoder_layer.16} parent=119 // pred_check
          %p605 = pneg %p141
        $region122: #{transformer_decoder_layer.16} parent=119 // pred_check_branch
          %607 = sbr.rel (%p605) target = $region124
        $region123: #{transformer_decoder_layer.16} parent=119 // pred_region
          %s608 = sand.u32 %s126, 1
          %s609 = sand.u32 %s126, 1
          %s610 = smul.addr %s609, 16
          %s611 = scalar_lea.vmem [#allocation4], %s610
        $region124: #{transformer_decoder_layer.16} parent=119 // pred_fallthru
          _
      $region120: #{transformer_decoder_layer.16} parent=5 // pred_fallthru
        _
    $region6: #{transformer_decoder_layer.16} parent=1 // loop_footer
      %s13 = sadd.s32 1, %s9
    $region7: #{transformer_decoder_layer.16} parent=1 // loop_footer_branch
      %8 = sbr.rel target = $region3
    $region8: #{transformer_decoder_layer.16} parent=1 // loop_exit
      _

// kernel: transformer_decoder_layer.14
$region0: #{transformer_decoder_layer.14}
  #allocation0 [shape = 'u32[]', space=smem, size = 0x4, offset = 0x4, fixed_abs, tag = 'smem constant byte address 0x4 - core index']
  #allocation1 [shape = 'u32[144,128]{1,0:T(1,128)}', space=vmem, size = 0x12000, scoped, tag = 'internal scratch']
  %s0 = inlined_call_operand.vmem [shape: bf16[2,4,8,32], index: 0, kind: input, shape index: {}]
  %s1 = inlined_call_operand.vmem [shape: bf16[2,4,8,32], index: 1, kind: input, shape index: {}]
  %s2 = inlined_call_operand.vmem [shape: bf16[2,4,8,32], index: 2, kind: input, shape index: {}]
  %s3 = inlined_call_operand.vmem [shape: bf16[2,4,8,32], index: 3, kind: output, shape index: {0}]
  %s4 = inlined_call_operand.hbm [shape: f32[2,8,8], index: 4, kind: output, shape index: {1}]
  %5 = xla_tuple %s3, %s4
  %s6 = sld [smem:[#allocation0]]
  $region53: #{transformer_decoder_layer.14} parent=0
    _
  %s8 = ssub.s32 1, %s6
  %s9 = scalar_select 0, %s8, %s6
  $region1: #{transformer_decoder_layer.14} parent=0
    #allocation2 [shape = 'u8[8192]{0}', space=vmem, size = 0x2000, scoped, tag = 'output window, operand 1']
    #allocation3 [shape = 's32[2]{0}', space=sflag, size = 0x8, scoped, tag = 'scoped memory for transformer_decoder_layer.14']
    %10 = vsyncpa [#allocation3], 0
    %s11 = scalar_lea.sflag [#allocation3], 1
    %12 = vsyncpa %s11, 0
    loop: start=0, step=1, limit=4
    $region2: #{transformer_decoder_layer.14} parent=1 // loop_pre_header
      _
    $region3: #{transformer_decoder_layer.14} parent=1 // loop_header
      %s14 = sphi 0, %s18
      %p15 = scmp.ge.s32.totalorder %s14, 4
      %s24 = sphi 0, %s26
      %s27 = sphi 0, %s24
      %s28 = sphi 0, %s27
      %s44 = sphi 0, %s28
      %s50 = sphi 0, %s52
      %s53 = sphi 0, %s50
      %s54 = sphi 0, %s53
      %s70 = sphi 0, %s54
      %s76 = sphi 0, %s78
      %s79 = sphi 0, %s76
      %s80 = sphi 0, %s79
      %s96 = sphi 0, %s80
      %s102 = sphi 0, %s104
      %s105 = sphi 0, %s102
      %s106 = sphi 0, %s105
      %s122 = sphi 0, %s106
      %s128 = sphi 0, %s130
      %s131 = sphi 0, %s128
      %s132 = sphi 0, %s131
      %s148 = sphi 0, %s132
    $region4: #{transformer_decoder_layer.14} parent=1 // loop_header_branch
      %17 = sbr.rel (%p15) target = $region8
    $region5: #{transformer_decoder_layer.14} parent=1 // loop_body
      %s19 = ssub.s32 %s14, 1
      %s20 = ssub.s32 %s14, 2
      %s21 = sadd.s32 %s14, 1
      %s22 = ssub.s32 %s14, %s21
      %p23 = scmp.eq.s32.totalorder %s22, 0
      %s25 = sadd.s32 %s24, 1
      %s26 = scalar_select %p23, %s24, %s25
      %p29 = pneg %p23
      %p30 = scmp.eq.s32.totalorder %s14, 1
      %p31 = por %p29, %p30
      %p32 = scmp.ne.s32.totalorder %s24, %s27
      %p33 = scmp.eq.s32.totalorder %s14, 0
      %p34 = por %p32, %p33
      %p35 = scmp.ne.s32.totalorder %s24, %s27
      %p36 = scmp.eq.s32.totalorder %s19, 1
      %p37 = por %p35, %p36
      %p38 = scmp.ne.s32.totalorder %s27, %s28
      %p39 = scmp.eq.s32.totalorder %s19, 0
      %p40 = por %p38, %p39
      %p41 = scmp.ne.s32.totalorder %s27, %s28
      %p42 = scmp.eq.s32.totalorder %s20, 1
      %p43 = por %p41, %p42
      %p45 = scmp.ne.s32.totalorder %s28, %s44
      %p46 = scmp.eq.s32.totalorder %s20, 0
      %p47 = por %p45, %p46
      %s48 = ssub.s32 %s14, %s21
      %p49 = scmp.eq.s32.totalorder %s48, 0
      %s51 = sadd.s32 %s50, 1
      %s52 = scalar_select %p49, %s50, %s51
      %p55 = pneg %p49
      %p56 = scmp.eq.s32.totalorder %s14, 1
      %p57 = por %p55, %p56
      %p58 = scmp.ne.s32.totalorder %s50, %s53
      %p59 = scmp.eq.s32.totalorder %s14, 0
      %p60 = por %p58, %p59
      %p61 = scmp.ne.s32.totalorder %s50, %s53
      %p62 = scmp.eq.s32.totalorder %s19, 1
      %p63 = por %p61, %p62
      %p64 = scmp.ne.s32.totalorder %s53, %s54
      %p65 = scmp.eq.s32.totalorder %s19, 0
      %p66 = por %p64, %p65
      %p67 = scmp.ne.s32.totalorder %s53, %s54
      %p68 = scmp.eq.s32.totalorder %s20, 1
      %p69 = por %p67, %p68
      %p71 = scmp.ne.s32.totalorder %s54, %s70
      %p72 = scmp.eq.s32.totalorder %s20, 0
      %p73 = por %p71, %p72
      %s74 = ssub.s32 %s14, %s21
      %p75 = scmp.eq.s32.totalorder %s74, 0
      %s77 = sadd.s32 %s76, 1
      %s78 = scalar_select %p75, %s76, %s77
      %p81 = pneg %p75
      %p82 = scmp.eq.s32.totalorder %s14, 1
      %p83 = por %p81, %p82
      %p84 = scmp.ne.s32.totalorder %s76, %s79
      %p85 = scmp.eq.s32.totalorder %s14, 0
      %p86 = por %p84, %p85
      %p87 = scmp.ne.s32.totalorder %s76, %s79
      %p88 = scmp.eq.s32.totalorder %s19, 1
      %p89 = por %p87, %p88
      %p90 = scmp.ne.s32.totalorder %s79, %s80
      %p91 = scmp.eq.s32.totalorder %s19, 0
      %p92 = por %p90, %p91
      %p93 = scmp.ne.s32.totalorder %s79, %s80
      %p94 = scmp.eq.s32.totalorder %s20, 1
      %p95 = por %p93, %p94
      %p97 = scmp.ne.s32.totalorder %s80, %s96
      %p98 = scmp.eq.s32.totalorder %s20, 0
      %p99 = por %p97, %p98
      %s100 = ssub.s32 %s14, %s21
      %p101 = scmp.eq.s32.totalorder %s100, 0
      %s103 = sadd.s32 %s102, 1
      %s104 = scalar_select %p101, %s102, %s103
      %p107 = pneg %p101
      %p108 = scmp.eq.s32.totalorder %s14, 1
      %p109 = por %p107, %p108
      %p110 = scmp.ne.s32.totalorder %s102, %s105
      %p111 = scmp.eq.s32.totalorder %s14, 0
      %p112 = por %p110, %p111
      %p113 = scmp.ne.s32.totalorder %s102, %s105
      %p114 = scmp.eq.s32.totalorder %s19, 1
      %p115 = por %p113, %p114
      %p116 = scmp.ne.s32.totalorder %s105, %s106
      %p117 = scmp.eq.s32.totalorder %s19, 0
      %p118 = por %p116, %p117
      %p119 = scmp.ne.s32.totalorder %s105, %s106
      %p120 = scmp.eq.s32.totalorder %s20, 1
      %p121 = por %p119, %p120
      %p123 = scmp.ne.s32.totalorder %s106, %s122
      %p124 = scmp.eq.s32.totalorder %s20, 0
      %p125 = por %p123, %p124
      %s126 = ssub.s32 %s14, %s21
      %p127 = scmp.eq.s32.totalorder %s126, 0
      %s129 = sadd.s32 %s128, 1
      %s130 = scalar_select %p127, %s128, %s129
      %p133 = pneg %p127
      %p134 = scmp.eq.s32.totalorder %s14, 1
      %p135 = por %p133, %p134
      %p136 = scmp.ne.s32.totalorder %s128, %s131
      %p137 = scmp.eq.s32.totalorder %s14, 0
      %p138 = por %p136, %p137
      %p139 = scmp.ne.s32.totalorder %s128, %s131
      %p140 = scmp.eq.s32.totalorder %s19, 1
      %p141 = por %p139, %p140
      %p142 = scmp.ne.s32.totalorder %s131, %s132
      %p143 = scmp.eq.s32.totalorder %s19, 0
      %p144 = por %p142, %p143
      %p145 = scmp.ne.s32.totalorder %s131, %s132
      %p146 = scmp.eq.s32.totalorder %s20, 1
      %p147 = por %p145, %p146
      %p149 = scmp.ne.s32.totalorder %s132, %s148
      %p150 = scmp.eq.s32.totalorder %s20, 0
      %p151 = por %p149, %p150
      %p152 = scmp.le.s32.totalorder 1, %s14
      %p153 = scmp.lt.s32.totalorder %s14, 3
      %p154 = pnand %p152, %p153
      %p155 = pneg %p154
      // Predicated region
      $region9: #{transformer_decoder_layer.14} parent=5 // pred_check
        _
      $region10: #{transformer_decoder_layer.14} parent=5 // pred_check_branch
        %157 = sbr.rel (%p154) target = $region12
      $region11: #{transformer_decoder_layer.14} parent=5 // pred_region
        %s158 = ssub.s32 %s14, 1
      $region12: #{transformer_decoder_layer.14} parent=5 // pred_fallthru
        _
      %p159 = scmp.lt.s32.totalorder %s14, 2
      // Predicated region
      $region13: #{transformer_decoder_layer.14} parent=5 // pred_check
        %p160 = pneg %p159
      $region14: #{transformer_decoder_layer.14} parent=5 // pred_check_branch
        %162 = sbr.rel (%p160) target = $region16
      $region15: #{transformer_decoder_layer.14} parent=5 // pred_region
        // Predicated region
        $region17: #{transformer_decoder_layer.14} parent=15 // pred_check
          %p163 = pneg %p34
        $region18: #{transformer_decoder_layer.14} parent=15 // pred_check_branch
          %165 = sbr.rel (%p163) target = $region20
        $region19: #{transformer_decoder_layer.14} parent=15 // pred_region
          %p166 = scmp.lt.s32.totalorder %s14, 1
          %s167 = scalar_select %p166, %s14, 1
          %s168 = smul.addr %s167, 4
          %s169 = smul.addr %s168, 4
          %s170 = scalar_lea.vmem %s0, %s169
        $region20: #{transformer_decoder_layer.14} parent=15 // pred_fallthru
          _
        // Predicated region
        $region21: #{transformer_decoder_layer.14} parent=15 // pred_check
          %p171 = pneg %p60
        $region22: #{transformer_decoder_layer.14} parent=15 // pred_check_branch
          %173 = sbr.rel (%p171) target = $region24
        $region23: #{transformer_decoder_layer.14} parent=15 // pred_region
          %p174 = scmp.lt.s32.totalorder %s14, 1
          %s175 = scalar_select %p174, %s14, 1
          %s176 = smul.addr %s175, 4
          %s177 = smul.addr %s176, 4
          %s178 = scalar_lea.vmem %s1, %s177
        $region24: #{transformer_decoder_layer.14} parent=15 // pred_fallthru
          _
        // Predicated region
        $region25: #{transformer_decoder_layer.14} parent=15 // pred_check
          %p179 = pneg %p86
        $region26: #{transformer_decoder_layer.14} parent=15 // pred_check_branch
          %181 = sbr.rel (%p179) target = $region28
        $region27: #{transformer_decoder_layer.14} parent=15 // pred_region
          %p182 = scmp.lt.s32.totalorder %s14, 1
          %s183 = scalar_select %p182, %s14, 1
          %s184 = smul.addr %s183, 4
          %s185 = smul.addr %s184, 4
          %s186 = scalar_lea.vmem %s2, %s185
        $region28: #{transformer_decoder_layer.14} parent=15 // pred_fallthru
          _
      $region16: #{transformer_decoder_layer.14} parent=5 // pred_fallthru
        _
      %p187 = scmp.le.s32.totalorder 1, %s14
      %p188 = scmp.lt.s32.totalorder %s14, 3
      %p189 = pnand %p187, %p188
      %p190 = pneg %p189
      // Predicated region
      $region29: #{transformer_decoder_layer.14} parent=5 // pred_check
        _
      $region30: #{transformer_decoder_layer.14} parent=5 // pred_check_branch
        %192 = sbr.rel (%p189) target = $region32
      $region31: #{transformer_decoder_layer.14} parent=5 // pred_region
        %s193 = ssub.s32 %s14, 1
        %p194 = scmp.lt.s32.totalorder %s19, 1
        %s195 = scalar_select %p194, %s19, 1
        %s196 = smul.addr %s195, 4
        %s197 = smul.addr %s196, 4
        %s198 = scalar_lea.vmem %s0, %s197
        %p199 = pneg %p40
        %p200 = pneg %p37
        %p201 = scmp.lt.s32.totalorder %s19, 1
        %s202 = scalar_select %p201, %s19, 1
        %s203 = smul.addr %s202, 4
        %s204 = smul.addr %s203, 4
        %s205 = scalar_lea.vmem %s1, %s204
        %p206 = pneg %p66
        %p207 = pneg %p63
        %p208 = scmp.lt.s32.totalorder %s19, 1
        %s209 = scalar_select %p208, %s19, 1
        %s210 = smul.addr %s209, 4
        %s211 = smul.addr %s210, 4
        %s212 = scalar_lea.vmem %s2, %s211
        %p213 = pneg %p92
        %p214 = pneg %p89
        %p215 = pneg %p118
        %p216 = pneg %p115
        %p217 = scmp.lt.s32.totalorder %s19, 1
        %s218 = scalar_select %p217, %s19, 1
        %s219 = smul.addr %s218, 4
        %s220 = smul.addr %s219, 4
        %s221 = scalar_lea.vmem %s3, %s220
        %p222 = pneg %p144
        %p223 = pneg %p141
        %s224 = sand.u32 %s131, 1
        %s225 = scalar_lea.sflag [#allocation3], %s224
        %s226 = sand.u32 %s131, 1
        %s227 = smul.addr %s226, 8
        %s228 = scalar_lea.vmem [#allocation2], %s227
        %p229 = scmp.lt.s32.totalorder %s19, 1
        %s230 = scalar_select %p229, %s19, 1
        %s231 = smul.addr %s230, 4
        %s232 = smul.addr %s231, 4
        %s233 = scalar_lea.vmem %s0, %s232
        %p234 = scmp.lt.s32.totalorder %s19, 1
        %s235 = scalar_select %p234, %s19, 1
        %s236 = smul.addr %s235, 4
        %s237 = smul.addr %s236, 4
        %s238 = scalar_lea.vmem %s1, %s237
        %p239 = scmp.lt.s32.totalorder %s19, 1
        %s240 = scalar_select %p239, %s19, 1
        %s241 = smul.addr %s240, 4
        %s242 = smul.addr %s241, 4
        %s243 = scalar_lea.vmem %s2, %s242
        %p244 = scmp.lt.s32.totalorder %s19, 1
        %s245 = scalar_select %p244, %s19, 1
        %s246 = smul.addr %s245, 4
        %s247 = smul.addr %s246, 4
        %s248 = scalar_lea.vmem %s3, %s247
        %v250 = vld [vmem:[%s233] sm:$0xf]
        %v251 = vld [vmem:[%s233 + $0x4] sm:$0xf]
        %v252 = vld [vmem:[%s233 + $0x8] sm:$0xf]
        %v253 = vld [vmem:[%s233 + $0xc] sm:$0xf]
        %v254 = vunpack.c.l.bf16 %v250
        %v255 = vunpack.c.l.bf16 %v251
        %v256 = vunpack.c.l.bf16 %v252
        %v257 = vunpack.c.l.bf16 %v253
        %v258 = vmul.f32 %v254, 0.17677669
        %v259 = vmul.f32 %v255, 0.17677669
        %v260 = vmul.f32 %v256, 0.17677669
        %v261 = vmul.f32 %v257, 0.17677669
        %v262 = vpack.c.bf16 %v258, %v258
        %v263 = vpack.c.bf16 %v259, %v259
        %v264 = vpack.c.bf16 %v260, %v260
        %v265 = vpack.c.bf16 %v261, %v261
        %v266 = vld [vmem:[%s238] sm:$0xf]
        %v267 = vld [vmem:[%s238 + $0x4] sm:$0xf]
        %v268 = vld [vmem:[%s238 + $0x8] sm:$0xf]
        %v269 = vld [vmem:[%s238 + $0xc] sm:$0xf]
        %v270 = vld [vmem:[%s243] sm:$0xf]
        %v271 = vld [vmem:[%s243 + $0x4] sm:$0xf]
        %v272 = vld [vmem:[%s243 + $0x8] sm:$0xf]
        %v273 = vld [vmem:[%s243 + $0xc] sm:$0xf]
        %vm274 = vcmask 261120
        %v276 = vsel %vm274, %v262, 0
        %v279 = vsel %vm274, %v266, 0
        %281 = vmatprep.subr.bf16.mxu0 0
        %282 = vmatpush1.bf16.xpose.msra.mxu0 %v279
        %283 = vmatprep.subr.bf16.mxu0 0
        %284 = vmatpush1.bf16.xpose.msra.mxu0 0
        %285 = vmatprep.subr.bf16.mxu0 0
        %286 = vmatpush1.bf16.xpose.msra.mxu0 0
        %287 = vmatprep.subr.bf16.mxu0 0
        %288 = vmatpush1.bf16.xpose.msra.mxu0 0
        %289 = vmatprep.subr.bf16.mxu0 0
        %290 = vmatpush1.bf16.xpose.msra.mxu0 0
        %291 = vmatprep.subr.bf16.mxu0 0
        %292 = vmatpush1.bf16.xpose.msra.mxu0 0
        %293 = vmatprep.subr.bf16.mxu0 0
        %294 = vmatpush1.bf16.xpose.msra.mxu0 0
        %295 = vmatprep.subr.bf16.mxu0 0
        %296 = vmatpush1.bf16.xpose.msra.mxu0 0
        %297 = vmatprep.subr.bf16.mxu0 0
        %298 = vmatpush1.bf16.xpose.msra.mxu0 0
        %299 = vmatprep.subr.bf16.mxu0 0
        %300 = vmatpush1.bf16.xpose.msra.mxu0 0
        %301 = vmatprep.subr.bf16.mxu0 0
        %302 = vmatpush1.bf16.xpose.msra.mxu0 0
        %303 = vmatprep.subr.bf16.mxu0 0
        %304 = vmatpush1.bf16.xpose.msra.mxu0 0
        %305 = vmatprep.subr.bf16.mxu0 0
        %306 = vmatpush1.bf16.xpose.msra.mxu0 0
        %307 = vmatprep.subr.bf16.mxu0 0
        %308 = vmatpush1.bf16.xpose.msra.mxu0 0
        %309 = vmatprep.subr.bf16.mxu0 0
        %310 = vmatpush1.bf16.xpose.msra.mxu0 0
        %311 = vmatprep.subr.bf16.mxu0 0
        %312 = vmatpush1.bf16.xpose.msra.mxu0 0
        %313 = vmatprep.mubr.bf16.mxu0 0
        %314 = vmatmul.mubr.bf16.gmra.mrb[0].mxu0 %v276
        %v315 = vpop.f32.mrb[0].mxu0
        %v316 = vadd.f32 0.0, %v315
        %v317 = vpop.f32.mrb[0].mxu0
        %v318 = vpop.f32.mrb[0].mxu0
        %v319 = vpop.f32.mrb[0].mxu0
        %320 = vdwg.mxu0
        %v322 = vsel %vm274, %v263, 0
        %v325 = vsel %vm274, %v267, 0
        %327 = vmatprep.subr.bf16.mxu0 0
        %328 = vmatpush1.bf16.xpose.msra.mxu0 %v325
        %329 = vmatprep.subr.bf16.mxu0 0
        %330 = vmatpush1.bf16.xpose.msra.mxu0 0
        %331 = vmatprep.subr.bf16.mxu0 0
        %332 = vmatpush1.bf16.xpose.msra.mxu0 0
        %333 = vmatprep.subr.bf16.mxu0 0
        %334 = vmatpush1.bf16.xpose.msra.mxu0 0
        %335 = vmatprep.subr.bf16.mxu0 0
        %336 = vmatpush1.bf16.xpose.msra.mxu0 0
        %337 = vmatprep.subr.bf16.mxu0 0
        %338 = vmatpush1.bf16.xpose.msra.mxu0 0
        %339 = vmatprep.subr.bf16.mxu0 0
        %340 = vmatpush1.bf16.xpose.msra.mxu0 0
        %341 = vmatprep.subr.bf16.mxu0 0
        %342 = vmatpush1.bf16.xpose.msra.mxu0 0
        %343 = vmatprep.subr.bf16.mxu0 0
        %344 = vmatpush1.bf16.xpose.msra.mxu0 0
        %345 = vmatprep.subr.bf16.mxu0 0
        %346 = vmatpush1.bf16.xpose.msra.mxu0 0
        %347 = vmatprep.subr.bf16.mxu0 0
        %348 = vmatpush1.bf16.xpose.msra.mxu0 0
        %349 = vmatprep.subr.bf16.mxu0 0
        %350 = vmatpush1.bf16.xpose.msra.mxu0 0
        %351 = vmatprep.subr.bf16.mxu0 0
        %352 = vmatpush1.bf16.xpose.msra.mxu0 0
        %353 = vmatprep.subr.bf16.mxu0 0
        %354 = vmatpush1.bf16.xpose.msra.mxu0 0
        %355 = vmatprep.subr.bf16.mxu0 0
        %356 = vmatpush1.bf16.xpose.msra.mxu0 0
        %357 = vmatprep.subr.bf16.mxu0 0
        %358 = vmatpush1.bf16.xpose.msra.mxu0 0
        %359 = vmatprep.mubr.bf16.mxu0 0
        %360 = vmatmul.mubr.bf16.gmra.mrb[0].mxu0 %v322
        %v361 = vpop.f32.mrb[0].mxu0
        %v362 = vadd.f32 0.0, %v361
        %v363 = vpop.f32.mrb[0].mxu0
        %v364 = vpop.f32.mrb[0].mxu0
        %v365 = vpop.f32.mrb[0].mxu0
        %366 = vdwg.mxu0
        %v368 = vsel %vm274, %v264, 0
        %v371 = vsel %vm274, %v268, 0
        %373 = vmatprep.subr.bf16.mxu0 0
        %374 = vmatpush1.bf16.xpose.msra.mxu0 %v371
        %375 = vmatprep.subr.bf16.mxu0 0
        %376 = vmatpush1.bf16.xpose.msra.mxu0 0
        %377 = vmatprep.subr.bf16.mxu0 0
        %378 = vmatpush1.bf16.xpose.msra.mxu0 0
        %379 = vmatprep.subr.bf16.mxu0 0
        %380 = vmatpush1.bf16.xpose.msra.mxu0 0
        %381 = vmatprep.subr.bf16.mxu0 0
        %382 = vmatpush1.bf16.xpose.msra.mxu0 0
        %383 = vmatprep.subr.bf16.mxu0 0
        %384 = vmatpush1.bf16.xpose.msra.mxu0 0
        %385 = vmatprep.subr.bf16.mxu0 0
        %386 = vmatpush1.bf16.xpose.msra.mxu0 0
        %387 = vmatprep.subr.bf16.mxu0 0
        %388 = vmatpush1.bf16.xpose.msra.mxu0 0
        %389 = vmatprep.subr.bf16.mxu0 0
        %390 = vmatpush1.bf16.xpose.msra.mxu0 0
        %391 = vmatprep.subr.bf16.mxu0 0
        %392 = vmatpush1.bf16.xpose.msra.mxu0 0
        %393 = vmatprep.subr.bf16.mxu0 0
        %394 = vmatpush1.bf16.xpose.msra.mxu0 0
        %395 = vmatprep.subr.bf16.mxu0 0
        %396 = vmatpush1.bf16.xpose.msra.mxu0 0
        %397 = vmatprep.subr.bf16.mxu0 0
        %398 = vmatpush1.bf16.xpose.msra.mxu0 0
        %399 = vmatprep.subr.bf16.mxu0 0
        %400 = vmatpush1.bf16.xpose.msra.mxu0 0
        %401 = vmatprep.subr.bf16.mxu0 0
        %402 = vmatpush1.bf16.xpose.msra.mxu0 0
        %403 = vmatprep.subr.bf16.mxu0 0
        %404 = vmatpush1.bf16.xpose.msra.mxu0 0
        %405 = vmatprep.mubr.bf16.mxu0 0
        %406 = vmatmul.mubr.bf16.gmra.mrb[0].mxu0 %v368
        %v407 = vpop.f32.mrb[0].mxu0
        %v408 = vadd.f32 0.0, %v407
        %v409 = vpop.f32.mrb[0].mxu0
        %v410 = vpop.f32.mrb[0].mxu0
        %v411 = vpop.f32.mrb[0].mxu0
        %412 = vdwg.mxu0
        %v414 = vsel %vm274, %v265, 0
        %v417 = vsel %vm274, %v269, 0
        %419 = vmatprep.subr.bf16.mxu0 0
        %420 = vmatpush1.bf16.xpose.msra.mxu0 %v417
        %421 = vmatprep.subr.bf16.mxu0 0
        %422 = vmatpush1.bf16.xpose.msra.mxu0 0
        %423 = vmatprep.subr.bf16.mxu0 0
        %424 = vmatpush1.bf16.xpose.msra.mxu0 0
        %425 = vmatprep.subr.bf16.mxu0 0
        %426 = vmatpush1.bf16.xpose.msra.mxu0 0
        %427 = vmatprep.subr.bf16.mxu0 0
        %428 = vmatpush1.bf16.xpose.msra.mxu0 0
        %429 = vmatprep.subr.bf16.mxu0 0
        %430 = vmatpush1.bf16.xpose.msra.mxu0 0
        %431 = vmatprep.subr.bf16.mxu0 0
        %432 = vmatpush1.bf16.xpose.msra.mxu0 0
        %433 = vmatprep.subr.bf16.mxu0 0
        %434 = vmatpush1.bf16.xpose.msra.mxu0 0
        %435 = vmatprep.subr.bf16.mxu0 0
        %436 = vmatpush1.bf16.xpose.msra.mxu0 0
        %437 = vmatprep.subr.bf16.mxu0 0
        %438 = vmatpush1.bf16.xpose.msra.mxu0 0
        %439 = vmatprep.subr.bf16.mxu0 0
        %440 = vmatpush1.bf16.xpose.msra.mxu0 0
        %441 = vmatprep.subr.bf16.mxu0 0
        %442 = vmatpush1.bf16.xpose.msra.mxu0 0
        %443 = vmatprep.subr.bf16.mxu0 0
        %444 = vmatpush1.bf16.xpose.msra.mxu0 0
        %445 = vmatprep.subr.bf16.mxu0 0
        %446 = vmatpush1.bf16.xpose.msra.mxu0 0
        %447 = vmatprep.subr.bf16.mxu0 0
        %448 = vmatpush1.bf16.xpose.msra.mxu0 0
        %449 = vmatprep.subr.bf16.mxu0 0
        %450 = vmatpush1.bf16.xpose.msra.mxu0 0
        %451 = vmatprep.mubr.bf16.mxu0 0
        %452 = vmatmul.mubr.bf16.gmra.mrb[0].mxu0 %v414
        %v453 = vpop.f32.mrb[0].mxu0
        %v454 = vadd.f32 0.0, %v453
        %v455 = vpop.f32.mrb[0].mxu0
        %v456 = vpop.f32.mrb[0].mxu0
        %v457 = vpop.f32.mrb[0].mxu0
        %458 = vdwg.mxu0
        %vm459 = vcmask 64512
        %v460 = vsel %vm459, %v316, -inf
        %461 = vmax.xlane.f32.xlu0 %v460
        %v462 = vpop.xlane.xlu0 %461
        %v463 = vsel %vm459, %v362, -inf
        %464 = vmax.xlane.f32.xlu0 %v463
        %v465 = vpop.xlane.xlu0 %464
        %v466 = vsel %vm459, %v408, -inf
        %467 = vmax.xlane.f32.xlu0 %v466
        %v468 = vpop.xlane.xlu0 %467
        %v469 = vsel %vm459, %v454, -inf
        %470 = vmax.xlane.f32.xlu0 %v469
        %v471 = vpop.xlane.xlu0 %470
        %v472 = vsub.f32 %v316, %v462
        %v473 = vsub.f32 %v362, %v465
        %v474 = vsub.f32 %v408, %v468
        %v475 = vsub.f32 %v454, %v471
        %v476 = vmul.f32 %v472, 1.442695
        %v477 = vpow.pop %v476
        %v478 = vmul.f32 %v473, 1.442695
        %v479 = vpow.pop %v478
        %v480 = vmul.f32 %v474, 1.442695
        %v481 = vpow.pop %v480
        %v482 = vmul.f32 %v475, 1.442695
        %v483 = vpow.pop %v482
        %v484 = vsel %vm459, %v477, 0.0
        %485 = vadd.xlane.f32.xlu0 %v484
        %v486 = vpop.xlane.xlu0 %485
        %v487 = vsel %vm459, %v479, 0.0
        %488 = vadd.xlane.f32.xlu0 %v487
        %v489 = vpop.xlane.xlu0 %488
        %v490 = vsel %vm459, %v481, 0.0
        %491 = vadd.xlane.f32.xlu0 %v490
        %v492 = vpop.xlane.xlu0 %491
        %v493 = vsel %vm459, %v483, 0.0
        %494 = vadd.xlane.f32.xlu0 %v493
        %v495 = vpop.xlane.xlu0 %494
        %v496 = vrcp.pop %v486
        %v497 = vrcp.pop %v489
        %v498 = vrcp.pop %v492
        %v499 = vrcp.pop %v495
        %v500 = vmul.f32 %v477, %v496
        %v501 = vmul.f32 %v479, %v497
        %v502 = vmul.f32 %v481, %v498
        %v503 = vmul.f32 %v483, %v499
        %v504 = vpack.c.bf16 %v500, %v500
        %v505 = vpack.c.bf16 %v501, %v501
        %v506 = vpack.c.bf16 %v502, %v502
        %v507 = vpack.c.bf16 %v503, %v503
        %v509 = vsel %vm459, %v504, 0
        %vm511 = vcmask 1043456
        %v513 = vsel %vm511, %v270, 0
        %515 = vmatprep.subr.bf16.mxu0 0
        %516 = vmatpush1.bf16.msra.mxu0 %v513
        %517 = vmatprep.subr.bf16.mxu0 0
        %518 = vmatpush1.bf16.msra.mxu0 0
        %519 = vmatprep.subr.bf16.mxu0 0
        %520 = vmatpush1.bf16.msra.mxu0 0
        %521 = vmatprep.subr.bf16.mxu0 0
        %522 = vmatpush1.bf16.msra.mxu0 0
        %523 = vmatprep.subr.bf16.mxu0 0
        %524 = vmatpush1.bf16.msra.mxu0 0
        %525 = vmatprep.subr.bf16.mxu0 0
        %526 = vmatpush1.bf16.msra.mxu0 0
        %527 = vmatprep.subr.bf16.mxu0 0
        %528 = vmatpush1.bf16.msra.mxu0 0
        %529 = vmatprep.subr.bf16.mxu0 0
        %530 = vmatpush1.bf16.msra.mxu0 0
        %531 = vmatprep.subr.bf16.mxu0 0
        %532 = vmatpush1.bf16.msra.mxu0 0
        %533 = vmatprep.subr.bf16.mxu0 0
        %534 = vmatpush1.bf16.msra.mxu0 0
        %535 = vmatprep.subr.bf16.mxu0 0
        %536 = vmatpush1.bf16.msra.mxu0 0
        %537 = vmatprep.subr.bf16.mxu0 0
        %538 = vmatpush1.bf16.msra.mxu0 0
        %539 = vmatprep.subr.bf16.mxu0 0
        %540 = vmatpush1.bf16.msra.mxu0 0
        %541 = vmatprep.subr.bf16.mxu0 0
        %542 = vmatpush1.bf16.msra.mxu0 0
        %543 = vmatprep.subr.bf16.mxu0 0
        %544 = vmatpush1.bf16.msra.mxu0 0
        %545 = vmatprep.subr.bf16.mxu0 0
        %546 = vmatpush1.bf16.msra.mxu0 0
        %547 = vmatprep.mubr.bf16.mxu0 0
        %548 = vmatmul.mubr.bf16.gmra.mrb[0].mxu0 %v509
        %v549 = vpop.f32.mrb[0].mxu0
        %v550 = vadd.f32 0.0, %v549
        %v551 = vpop.f32.mrb[0].mxu0
        %v552 = vpop.f32.mrb[0].mxu0
        %v553 = vpop.f32.mrb[0].mxu0
        %554 = vdwg.mxu0
        %v556 = vsel %vm459, %v505, 0
        %v559 = vsel %vm511, %v271, 0
        %561 = vmatprep.subr.bf16.mxu0 0
        %562 = vmatpush1.bf16.msra.mxu0 %v559
        %563 = vmatprep.subr.bf16.mxu0 0
        %564 = vmatpush1.bf16.msra.mxu0 0
        %565 = vmatprep.subr.bf16.mxu0 0
        %566 = vmatpush1.bf16.msra.mxu0 0
        %567 = vmatprep.subr.bf16.mxu0 0
        %568 = vmatpush1.bf16.msra.mxu0 0
        %569 = vmatprep.subr.bf16.mxu0 0
        %570 = vmatpush1.bf16.msra.mxu0 0
        %571 = vmatprep.subr.bf16.mxu0 0
        %572 = vmatpush1.bf16.msra.mxu0 0
        %573 = vmatprep.subr.bf16.mxu0 0
        %574 = vmatpush1.bf16.msra.mxu0 0
        %575 = vmatprep.subr.bf16.mxu0 0
        %576 = vmatpush1.bf16.msra.mxu0 0
        %577 = vmatprep.subr.bf16.mxu0 0
        %578 = vmatpush1.bf16.msra.mxu0 0
        %579 = vmatprep.subr.bf16.mxu0 0
        %580 = vmatpush1.bf16.msra.mxu0 0
        %581 = vmatprep.subr.bf16.mxu0 0
        %582 = vmatpush1.bf16.msra.mxu0 0
        %583 = vmatprep.subr.bf16.mxu0 0
        %584 = vmatpush1.bf16.msra.mxu0 0
        %585 = vmatprep.subr.bf16.mxu0 0
        %586 = vmatpush1.bf16.msra.mxu0 0
        %587 = vmatprep.subr.bf16.mxu0 0
        %588 = vmatpush1.bf16.msra.mxu0 0
        %589 = vmatprep.subr.bf16.mxu0 0
        %590 = vmatpush1.bf16.msra.mxu0 0
        %591 = vmatprep.subr.bf16.mxu0 0
        %592 = vmatpush1.bf16.msra.mxu0 0
        %593 = vmatprep.mubr.bf16.mxu0 0
        %594 = vmatmul.mubr.bf16.gmra.mrb[0].mxu0 %v556
        %v595 = vpop.f32.mrb[0].mxu0
        %v596 = vadd.f32 0.0, %v595
        %v597 = vpop.f32.mrb[0].mxu0
        %v598 = vpop.f32.mrb[0].mxu0
        %v599 = vpop.f32.mrb[0].mxu0
        %600 = vdwg.mxu0
        %v602 = vsel %vm459, %v506, 0
        %v605 = vsel %vm511, %v272, 0
        %607 = vmatprep.subr.bf16.mxu0 0
        %608 = vmatpush1.bf16.msra.mxu0 %v605
        %609 = vmatprep.subr.bf16.mxu0 0
        %610 = vmatpush1.bf16.msra.mxu0 0
        %611 = vmatprep.subr.bf16.mxu0 0
        %612 = vmatpush1.bf16.msra.mxu0 0
        %613 = vmatprep.subr.bf16.mxu0 0
        %614 = vmatpush1.bf16.msra.mxu0 0
        %615 = vmatprep.subr.bf16.mxu0 0
        %616 = vmatpush1.bf16.msra.mxu0 0
        %617 = vmatprep.subr.bf16.mxu0 0
        %618 = vmatpush1.bf16.msra.mxu0 0
        %619 = vmatprep.subr.bf16.mxu0 0
        %620 = vmatpush1.bf16.msra.mxu0 0
        %621 = vmatprep.subr.bf16.mxu0 0
        %622 = vmatpush1.bf16.msra.mxu0 0
        %623 = vmatprep.subr.bf16.mxu0 0
        %624 = vmatpush1.bf16.msra.mxu0 0
        %625 = vmatprep.subr.bf16.mxu0 0
        %626 = vmatpush1.bf16.msra.mxu0 0
        %627 = vmatprep.subr.bf16.mxu0 0
        %628 = vmatpush1.bf16.msra.mxu0 0
        %629 = vmatprep.subr.bf16.mxu0 0
        %630 = vmatpush1.bf16.msra.mxu0 0
        %631 = vmatprep.subr.bf16.mxu0 0
        %632 = vmatpush1.bf16.msra.mxu0 0
        %633 = vmatprep.subr.bf16.mxu0 0
        %634 = vmatpush1.bf16.msra.mxu0 0
        %635 = vmatprep.subr.bf16.mxu0 0
        %636 = vmatpush1.bf16.msra.mxu0 0
        %637 = vmatprep.subr.bf16.mxu0 0
        %638 = vmatpush1.bf16.msra.mxu0 0
        %639 = vmatprep.mubr.bf16.mxu0 0
        %640 = vmatmul.mubr.bf16.gmra.mrb[0].mxu0 %v602
        %v641 = vpop.f32.mrb[0].mxu0
        %v642 = vadd.f32 0.0, %v641
        %v643 = vpop.f32.mrb[0].mxu0
        %v644 = vpop.f32.mrb[0].mxu0
        %v645 = vpop.f32.mrb[0].mxu0
        %646 = vdwg.mxu0
        %v648 = vsel %vm459, %v507, 0
        %v651 = vsel %vm511, %v273, 0
        %653 = vmatprep.subr.bf16.mxu0 0
        %654 = vmatpush1.bf16.msra.mxu0 %v651
        %655 = vmatprep.subr.bf16.mxu0 0
        %656 = vmatpush1.bf16.msra.mxu0 0
        %657 = vmatprep.subr.bf16.mxu0 0
        %658 = vmatpush1.bf16.msra.mxu0 0
        %659 = vmatprep.subr.bf16.mxu0 0
        %660 = vmatpush1.bf16.msra.mxu0 0
        %661 = vmatprep.subr.bf16.mxu0 0
        %662 = vmatpush1.bf16.msra.mxu0 0
        %663 = vmatprep.subr.bf16.mxu0 0
        %664 = vmatpush1.bf16.msra.mxu0 0
        %665 = vmatprep.subr.bf16.mxu0 0
        %666 = vmatpush1.bf16.msra.mxu0 0
        %667 = vmatprep.subr.bf16.mxu0 0
        %668 = vmatpush1.bf16.msra.mxu0 0
        %669 = vmatprep.subr.bf16.mxu0 0
        %670 = vmatpush1.bf16.msra.mxu0 0
        %671 = vmatprep.subr.bf16.mxu0 0
        %672 = vmatpush1.bf16.msra.mxu0 0
        %673 = vmatprep.subr.bf16.mxu0 0
        %674 = vmatpush1.bf16.msra.mxu0 0
        %675 = vmatprep.subr.bf16.mxu0 0
        %676 = vmatpush1.bf16.msra.mxu0 0
        %677 = vmatprep.subr.bf16.mxu0 0
        %678 = vmatpush1.bf16.msra.mxu0 0
        %679 = vmatprep.subr.bf16.mxu0 0
        %680 = vmatpush1.bf16.msra.mxu0 0
        %681 = vmatprep.subr.bf16.mxu0 0
        %682 = vmatpush1.bf16.msra.mxu0 0
        %683 = vmatprep.subr.bf16.mxu0 0
        %684 = vmatpush1.bf16.msra.mxu0 0
        %685 = vmatprep.mubr.bf16.mxu0 0
        %686 = vmatmul.mubr.bf16.gmra.mrb[0].mxu0 %v648
        %v687 = vpop.f32.mrb[0].mxu0
        %v688 = vadd.f32 0.0, %v687
        %v689 = vpop.f32.mrb[0].mxu0
        %v690 = vpop.f32.mrb[0].mxu0
        %v691 = vpop.f32.mrb[0].mxu0
        %692 = vdwg.mxu0
        %v693 = vpack.c.bf16 %v550, %v550
        %v694 = vpack.c.bf16 %v596, %v596
        %v695 = vpack.c.bf16 %v642, %v642
        %v696 = vpack.c.bf16 %v688, %v688
        %vm697 = vcmask 257024
        %698 = vst.msk [vmem:[%s248] sm:$0xf] %vm697, %v693
        %699 = vst.msk [vmem:[%s248 + $0x4] sm:$0xf] %vm697, %v694
        %700 = vst.msk [vmem:[%s248 + $0x8] sm:$0xf] %vm697, %v695
        %701 = vst.msk [vmem:[%s248 + $0xc] sm:$0xf] %vm697, %v696
        %v702 = vsel %vm459, %v500, 0.0
        %v703 = vsel %vm459, %v501, 0.0
        %v704 = vadd.f32 %v702, %v703
        %v705 = vsel %vm459, %v502, 0.0
        %v706 = vadd.f32 %v704, %v705
        %v707 = vsel %vm459, %v503, 0.0
        %v708 = vadd.f32 %v706, %v707
        %v709 = vrcp.pop 4.0
        %v710 = vmul.f32 %v708, %v709
        %711 = vst.msk [vmem:[%s228] sm:$0xff] %vm459, %v710
        %p712 = scmp.lt.s32.totalorder %s19, 1
        %s713 = scalar_select %p712, %s19, 1
        %s714 = smul.addr %s713, 4
        %s715 = smul.addr %s714, 4
        %s716 = scalar_lea.vmem %s3, %s715
        %s717 = sand.u32 %s131, 1
        %s718 = scalar_lea.sflag [#allocation3], %s717
        %s719 = sand.u32 %s131, 1
        %s720 = smul.addr %s719, 8
        %s721 = scalar_lea.vmem [#allocation2], %s720
        // Predicated region
        $region33: #{transformer_decoder_layer.14} parent=31 // pred_check
          %p722 = pneg %p115
        $region34: #{transformer_decoder_layer.14} parent=31 // pred_check_branch
          %724 = sbr.rel (%p722) target = $region36
        $region35: #{transformer_decoder_layer.14} parent=31 // pred_region
          _
        $region36: #{transformer_decoder_layer.14} parent=31 // pred_fallthru
          _
        // Predicated region
        $region37: #{transformer_decoder_layer.14} parent=31 // pred_check
          %p725 = pneg %p141
        $region38: #{transformer_decoder_layer.14} parent=31 // pred_check_branch
          %727 = sbr.rel (%p725) target = $region40
        $region39: #{transformer_decoder_layer.14} parent=31 // pred_region
          %s729 = ssub.s32 128, 128
          %730 = vsyncadd %s718, %s729
          %s731 = smul.addr %s19, 128
          %s732 = scalar_lea.hbm %s4, %s731
          %s734 = sshll.u32 %s721, 4
          %s735 = int_to_ptr.vmem [resolvable:$true] %s734
          %737 = dma.vmem_to_hbm [thread:$0]  %s735, 128, %s732, %s718
        $region40: #{transformer_decoder_layer.14} parent=31 // pred_fallthru
          _
      $region32: #{transformer_decoder_layer.14} parent=5 // pred_fallthru
        _
      %p738 = scmp.le.s32.totalorder 2, %s14
      // Predicated region
      $region41: #{transformer_decoder_layer.14} parent=5 // pred_check
        %p739 = pneg %p738
      $region42: #{transformer_decoder_layer.14} parent=5 // pred_check_branch
        %741 = sbr.rel (%p739) target = $region44
      $region43: #{transformer_decoder_layer.14} parent=5 // pred_region
        %s742 = ssub.s32 %s14, 2
        // Predicated region
        $region45: #{transformer_decoder_layer.14} parent=43 // pred_check
          %p743 = pneg %p121
        $region46: #{transformer_decoder_layer.14} parent=43 // pred_check_branch
          %745 = sbr.rel (%p743) target = $region48
        $region47: #{transformer_decoder_layer.14} parent=43 // pred_region
          %p746 = scmp.lt.s32.totalorder %s20, 1
          %s747 = scalar_select %p746, %s20, 1
          %s748 = smul.addr %s747, 4
          %s749 = smul.addr %s748, 4
          %s750 = scalar_lea.vmem %s3, %s749
        $region48: #{transformer_decoder_layer.14} parent=43 // pred_fallthru
          _
        // Predicated region
        $region49: #{transformer_decoder_layer.14} parent=43 // pred_check
          %p751 = pneg %p147
        $region50: #{transformer_decoder_layer.14} parent=43 // pred_check_branch
          %753 = sbr.rel (%p751) target = $region52
        $region51: #{transformer_decoder_layer.14} parent=43 // pred_region
          %s754 = sand.u32 %s132, 1
          %s755 = scalar_lea.sflag [#allocation3], %s754
          %s756 = sand.u32 %s132, 1
          %s757 = smul.addr %s756, 8
          %s758 = scalar_lea.vmem [#allocation2], %s757
          %759 = dma.done %s755, 128
        $region52: #{transformer_decoder_layer.14} parent=43 // pred_fallthru
          _
      $region44: #{transformer_decoder_layer.14} parent=5 // pred_fallthru
        _
    $region6: #{transformer_decoder_layer.14} parent=1 // loop_footer
      %s18 = sadd.s32 1, %s14
    $region7: #{transformer_decoder_layer.14} parent=1 // loop_footer_branch
      %13 = sbr.rel target = $region3
    $region8: #{transformer_decoder_layer.14} parent=1 // loop_exit
      _
    %760 = vsyncpa [#allocation3], 1
    %s761 = scalar_lea.sflag [#allocation3], 1
    %762 = vsyncpa %s761, 1

// kernel: transformer_decoder_layer.17
$region0: #{transformer_decoder_layer.17}
  #allocation0 [shape = 'u32[]', space=smem, size = 0x4, offset = 0x4, fixed_abs, tag = 'smem constant byte address 0x4 - core index']
  #allocation1 [shape = 'u32[144,128]{1,0:T(1,128)}', space=vmem, size = 0x12000, scoped, tag = 'internal scratch']
  #allocation2 [shape = 'f32[16,128]{1,0:T(8,128)}', space=vmem, size = 0x2000, scoped, tag = 'scratch operand']
  %s0 = inlined_call_operand.vmem [shape: bf16[16,512], index: 0, kind: input, shape index: {}]
  %s1 = inlined_call_operand.vmem [shape: bf16[512,128], index: 1, kind: input, shape index: {}]
  %s2 = inlined_call_operand.vmem [shape: f32[1,128], index: 2, kind: input, shape index: {}]
  %s3 = inlined_call_operand.vmem [shape: f32[16,128], index: 3, kind: input, shape index: {}]
  %s4 = inlined_call_operand.vmem [shape: f32[1,128], index: 4, kind: input, shape index: {}]
  %s5 = inlined_call_operand.vmem [shape: f32[1,128], index: 5, kind: input, shape index: {}]
  %s6 = inlined_call_operand.vmem [shape: f32[16,128], index: 6, kind: output, shape index: {}]
  %s7 = sld [smem:[#allocation0]]
  $region42: #{transformer_decoder_layer.17} parent=0
    _
  %s9 = ssub.s32 1, %s7
  %s10 = scalar_select 0, %s9, %s7
  // Predicated region
  $region2: #{transformer_decoder_layer.17} parent=0 // pred_check
    _
  $region3: #{transformer_decoder_layer.17} parent=0 // pred_check_branch
    %12 = sbr.rel (0) target = $region5
  $region4: #{transformer_decoder_layer.17} parent=0 // pred_region
    _
  $region5: #{transformer_decoder_layer.17} parent=0 // pred_fallthru
    _
  // Predicated region
  $region6: #{transformer_decoder_layer.17} parent=0 // pred_check
    _
  $region7: #{transformer_decoder_layer.17} parent=0 // pred_check_branch
    %14 = sbr.rel (0) target = $region9
  $region8: #{transformer_decoder_layer.17} parent=0 // pred_region
    _
  $region9: #{transformer_decoder_layer.17} parent=0 // pred_fallthru
    _
  // Predicated region
  $region10: #{transformer_decoder_layer.17} parent=0 // pred_check
    _
  $region11: #{transformer_decoder_layer.17} parent=0 // pred_check_branch
    %16 = sbr.rel (0) target = $region13
  $region12: #{transformer_decoder_layer.17} parent=0 // pred_region
    _
  $region13: #{transformer_decoder_layer.17} parent=0 // pred_fallthru
    _
  // Predicated region
  $region14: #{transformer_decoder_layer.17} parent=0 // pred_check
    _
  $region15: #{transformer_decoder_layer.17} parent=0 // pred_check_branch
    %18 = sbr.rel (0) target = $region17
  $region16: #{transformer_decoder_layer.17} parent=0 // pred_region
    _
  $region17: #{transformer_decoder_layer.17} parent=0 // pred_fallthru
    _
  // Predicated region
  $region18: #{transformer_decoder_layer.17} parent=0 // pred_check
    _
  $region19: #{transformer_decoder_layer.17} parent=0 // pred_check_branch
    %20 = sbr.rel (0) target = $region21
  $region20: #{transformer_decoder_layer.17} parent=0 // pred_region
    _
  $region21: #{transformer_decoder_layer.17} parent=0 // pred_fallthru
    _
  // Predicated region
  $region22: #{transformer_decoder_layer.17} parent=0 // pred_check
    _
  $region23: #{transformer_decoder_layer.17} parent=0 // pred_check_branch
    %22 = sbr.rel (0) target = $region25
  $region24: #{transformer_decoder_layer.17} parent=0 // pred_region
    _
  $region25: #{transformer_decoder_layer.17} parent=0 // pred_fallthru
    _
  %p24 = scmp.eq.s32.totalorder 0, 0
  // Predicated region
  $region26: #{transformer_decoder_layer.17} parent=0 // pred_check
    %p25 = pneg %p24
  $region27: #{transformer_decoder_layer.17} parent=0 // pred_check_branch
    %27 = sbr.rel (%p25) target = $region29
  $region28: #{transformer_decoder_layer.17} parent=0 // pred_region
    %28 = vst [vmem:[#allocation2] sm:$0xff] 0.0
    %29 = vst [vmem:[#allocation2 + $0x8] sm:$0xff] 0.0
  $region29: #{transformer_decoder_layer.17} parent=0 // pred_fallthru
    _
  %v30 = vld [vmem:[#allocation2] sm:$0xff]
  %v31 = vld [vmem:[#allocation2 + $0x8] sm:$0xff]
  %v32 = vld [vmem:[%s0] sm:$0xff]
  %v33 = vld [vmem:[%s0 + $0x8] sm:$0xff]
  %v34 = vld [vmem:[%s0 + $0x10] sm:$0xff]
  %v35 = vld [vmem:[%s0 + $0x18] sm:$0xff]
  %v36 = vld [vmem:[%s1] sm:$0xf]
  %v37 = vld [vmem:[%s1 + $0x4] sm:$0xf]
  %v38 = vld [vmem:[%s1 + $0x8] sm:$0xf]
  %v39 = vld [vmem:[%s1 + $0xc] sm:$0xf]
  %v40 = vld [vmem:[%s1 + $0x10] sm:$0xf]
  %v41 = vld [vmem:[%s1 + $0x14] sm:$0xf]
  %v42 = vld [vmem:[%s1 + $0x18] sm:$0xf]
  %v43 = vld [vmem:[%s1 + $0x1c] sm:$0xf]
  %v44 = vld [vmem:[%s1 + $0x20] sm:$0xf]
  %v45 = vld [vmem:[%s1 + $0x24] sm:$0xf]
  %v46 = vld [vmem:[%s1 + $0x28] sm:$0xf]
  %v47 = vld [vmem:[%s1 + $0x2c] sm:$0xf]
  %v48 = vld [vmem:[%s1 + $0x30] sm:$0xf]
  %v49 = vld [vmem:[%s1 + $0x34] sm:$0xf]
  %v50 = vld [vmem:[%s1 + $0x38] sm:$0xf]
  %v51 = vld [vmem:[%s1 + $0x3c] sm:$0xf]
  %v52 = vld [vmem:[%s1 + $0x40] sm:$0xf]
  %v53 = vld [vmem:[%s1 + $0x44] sm:$0xf]
  %v54 = vld [vmem:[%s1 + $0x48] sm:$0xf]
  %v55 = vld [vmem:[%s1 + $0x4c] sm:$0xf]
  %v56 = vld [vmem:[%s1 + $0x50] sm:$0xf]
  %v57 = vld [vmem:[%s1 + $0x54] sm:$0xf]
  %v58 = vld [vmem:[%s1 + $0x58] sm:$0xf]
  %v59 = vld [vmem:[%s1 + $0x5c] sm:$0xf]
  %v60 = vld [vmem:[%s1 + $0x60] sm:$0xf]
  %v61 = vld [vmem:[%s1 + $0x64] sm:$0xf]
  %v62 = vld [vmem:[%s1 + $0x68] sm:$0xf]
  %v63 = vld [vmem:[%s1 + $0x6c] sm:$0xf]
  %v64 = vld [vmem:[%s1 + $0x70] sm:$0xf]
  %v65 = vld [vmem:[%s1 + $0x74] sm:$0xf]
  %v66 = vld [vmem:[%s1 + $0x78] sm:$0xf]
  %v67 = vld [vmem:[%s1 + $0x7c] sm:$0xf]
  %v68 = vld [vmem:[%s1 + $0x80] sm:$0xf]
  %v69 = vld [vmem:[%s1 + $0x84] sm:$0xf]
  %v70 = vld [vmem:[%s1 + $0x88] sm:$0xf]
  %v71 = vld [vmem:[%s1 + $0x8c] sm:$0xf]
  %v72 = vld [vmem:[%s1 + $0x90] sm:$0xf]
  %v73 = vld [vmem:[%s1 + $0x94] sm:$0xf]
  %v74 = vld [vmem:[%s1 + $0x98] sm:$0xf]
  %v75 = vld [vmem:[%s1 + $0x9c] sm:$0xf]
  %v76 = vld [vmem:[%s1 + $0xa0] sm:$0xf]
  %v77 = vld [vmem:[%s1 + $0xa4] sm:$0xf]
  %v78 = vld [vmem:[%s1 + $0xa8] sm:$0xf]
  %v79 = vld [vmem:[%s1 + $0xac] sm:$0xf]
  %v80 = vld [vmem:[%s1 + $0xb0] sm:$0xf]
  %v81 = vld [vmem:[%s1 + $0xb4] sm:$0xf]
  %v82 = vld [vmem:[%s1 + $0xb8] sm:$0xf]
  %v83 = vld [vmem:[%s1 + $0xbc] sm:$0xf]
  %v84 = vld [vmem:[%s1 + $0xc0] sm:$0xf]
  %v85 = vld [vmem:[%s1 + $0xc4] sm:$0xf]
  %v86 = vld [vmem:[%s1 + $0xc8] sm:$0xf]
  %v87 = vld [vmem:[%s1 + $0xcc] sm:$0xf]
  %v88 = vld [vmem:[%s1 + $0xd0] sm:$0xf]
  %v89 = vld [vmem:[%s1 + $0xd4] sm:$0xf]
  %v90 = vld [vmem:[%s1 + $0xd8] sm:$0xf]
  %v91 = vld [vmem:[%s1 + $0xdc] sm:$0xf]
  %v92 = vld [vmem:[%s1 + $0xe0] sm:$0xf]
  %v93 = vld [vmem:[%s1 + $0xe4] sm:$0xf]
  %v94 = vld [vmem:[%s1 + $0xe8] sm:$0xf]
  %v95 = vld [vmem:[%s1 + $0xec] sm:$0xf]
  %v96 = vld [vmem:[%s1 + $0xf0] sm:$0xf]
  %v97 = vld [vmem:[%s1 + $0xf4] sm:$0xf]
  %v98 = vld [vmem:[%s1 + $0xf8] sm:$0xf]
  %v99 = vld [vmem:[%s1 + $0xfc] sm:$0xf]
  %v104 = vunpack.c.l.b16 %v32
  %v105 = vunpack.c.h.b16 %v32
  %v106 = vunpack.c.l.b16 %v33
  %v107 = vunpack.c.h.b16 %v33
  %v108 = vunpack.c.l.b16 %v34
  %v109 = vunpack.c.h.b16 %v34
  %v110 = vunpack.c.l.b16 %v35
  %v111 = vunpack.c.h.b16 %v35
  %v112 = vpack.c.b16 %v108, %v104
  %v113 = vpack.c.b16 %v109, %v105
  %v114 = vpack.c.b16 %v110, %v106
  %v115 = vpack.c.b16 %v111, %v107
  %v184 = vunpack.c.l.b16 %v36
  %v185 = vunpack.c.l.b16 %v37
  %v186 = vunpack.c.l.b16 %v38
  %v187 = vunpack.c.l.b16 %v39
  %v188 = vunpack.c.l.b16 %v40
  %v189 = vunpack.c.l.b16 %v41
  %v190 = vunpack.c.l.b16 %v42
  %v191 = vunpack.c.l.b16 %v43
  %v192 = vunpack.c.l.b16 %v44
  %v193 = vunpack.c.l.b16 %v45
  %v194 = vunpack.c.l.b16 %v46
  %v195 = vunpack.c.l.b16 %v47
  %v196 = vunpack.c.l.b16 %v48
  %v197 = vunpack.c.l.b16 %v49
  %v198 = vunpack.c.l.b16 %v50
  %v199 = vunpack.c.l.b16 %v51
  %v200 = vunpack.c.l.b16 %v52
  %v201 = vunpack.c.l.b16 %v53
  %v202 = vunpack.c.l.b16 %v54
  %v203 = vunpack.c.l.b16 %v55
  %v204 = vunpack.c.l.b16 %v56
  %v205 = vunpack.c.l.b16 %v57
  %v206 = vunpack.c.l.b16 %v58
  %v207 = vunpack.c.l.b16 %v59
  %v208 = vunpack.c.l.b16 %v60
  %v209 = vunpack.c.l.b16 %v61
  %v210 = vunpack.c.l.b16 %v62
  %v211 = vunpack.c.l.b16 %v63
  %v212 = vunpack.c.l.b16 %v64
  %v213 = vunpack.c.l.b16 %v65
  %v214 = vunpack.c.l.b16 %v66
  %v215 = vunpack.c.l.b16 %v67
  %v216 = vunpack.c.l.b16 %v68
  %v217 = vunpack.c.l.b16 %v69
  %v218 = vunpack.c.l.b16 %v70
  %v219 = vunpack.c.l.b16 %v71
  %v220 = vunpack.c.l.b16 %v72
  %v221 = vunpack.c.l.b16 %v73
  %v222 = vunpack.c.l.b16 %v74
  %v223 = vunpack.c.l.b16 %v75
  %v224 = vunpack.c.l.b16 %v76
  %v225 = vunpack.c.l.b16 %v77
  %v226 = vunpack.c.l.b16 %v78
  %v227 = vunpack.c.l.b16 %v79
  %v228 = vunpack.c.l.b16 %v80
  %v229 = vunpack.c.l.b16 %v81
  %v230 = vunpack.c.l.b16 %v82
  %v231 = vunpack.c.l.b16 %v83
  %v232 = vunpack.c.l.b16 %v84
  %v233 = vunpack.c.l.b16 %v85
  %v234 = vunpack.c.l.b16 %v86
  %v235 = vunpack.c.l.b16 %v87
  %v236 = vunpack.c.l.b16 %v88
  %v237 = vunpack.c.l.b16 %v89
  %v238 = vunpack.c.l.b16 %v90
  %v239 = vunpack.c.l.b16 %v91
  %v240 = vunpack.c.l.b16 %v92
  %v241 = vunpack.c.l.b16 %v93
  %v242 = vunpack.c.l.b16 %v94
  %v243 = vunpack.c.l.b16 %v95
  %v244 = vunpack.c.l.b16 %v96
  %v245 = vunpack.c.l.b16 %v97
  %v246 = vunpack.c.l.b16 %v98
  %v247 = vunpack.c.l.b16 %v99
  %v248 = vpack.c.b16 %v185, %v184
  %v249 = vpack.c.b16 %v187, %v186
  %v250 = vpack.c.b16 %v189, %v188
  %v251 = vpack.c.b16 %v191, %v190
  %v252 = vpack.c.b16 %v193, %v192
  %v253 = vpack.c.b16 %v195, %v194
  %v254 = vpack.c.b16 %v197, %v196
  %v255 = vpack.c.b16 %v199, %v198
  %v256 = vpack.c.b16 %v201, %v200
  %v257 = vpack.c.b16 %v203, %v202
  %v258 = vpack.c.b16 %v205, %v204
  %v259 = vpack.c.b16 %v207, %v206
  %v260 = vpack.c.b16 %v209, %v208
  %v261 = vpack.c.b16 %v211, %v210
  %v262 = vpack.c.b16 %v213, %v212
  %v263 = vpack.c.b16 %v215, %v214
  %v264 = vpack.c.b16 %v217, %v216
  %v265 = vpack.c.b16 %v219, %v218
  %v266 = vpack.c.b16 %v221, %v220
  %v267 = vpack.c.b16 %v223, %v222
  %v268 = vpack.c.b16 %v225, %v224
  %v269 = vpack.c.b16 %v227, %v226
  %v270 = vpack.c.b16 %v229, %v228
  %v271 = vpack.c.b16 %v231, %v230
  %v272 = vpack.c.b16 %v233, %v232
  %v273 = vpack.c.b16 %v235, %v234
  %v274 = vpack.c.b16 %v237, %v236
  %v275 = vpack.c.b16 %v239, %v238
  %v276 = vpack.c.b16 %v241, %v240
  %v277 = vpack.c.b16 %v243, %v242
  %v278 = vpack.c.b16 %v245, %v244
  %v279 = vpack.c.b16 %v247, %v246
  %312 = vmatprep.subr.bf16.mxu0 0
  %313 = vmatpush1.bf16.msra.mxu0 %v248
  %314 = vmatprep.subr.bf16.mxu0 0
  %315 = vmatpush1.bf16.msra.mxu0 %v249
  %316 = vmatprep.subr.bf16.mxu0 0
  %317 = vmatpush1.bf16.msra.mxu0 %v250
  %318 = vmatprep.subr.bf16.mxu0 0
  %319 = vmatpush1.bf16.msra.mxu0 %v251
  %320 = vmatprep.subr.bf16.mxu0 0
  %321 = vmatpush1.bf16.msra.mxu0 %v252
  %322 = vmatprep.subr.bf16.mxu0 0
  %323 = vmatpush1.bf16.msra.mxu0 %v253
  %324 = vmatprep.subr.bf16.mxu0 0
  %325 = vmatpush1.bf16.msra.mxu0 %v254
  %326 = vmatprep.subr.bf16.mxu0 0
  %327 = vmatpush1.bf16.msra.mxu0 %v255
  %328 = vmatprep.subr.bf16.mxu0 0
  %329 = vmatpush1.bf16.msra.mxu0 %v256
  %330 = vmatprep.subr.bf16.mxu0 0
  %331 = vmatpush1.bf16.msra.mxu0 %v257
  %332 = vmatprep.subr.bf16.mxu0 0
  %333 = vmatpush1.bf16.msra.mxu0 %v258
  %334 = vmatprep.subr.bf16.mxu0 0
  %335 = vmatpush1.bf16.msra.mxu0 %v259
  %336 = vmatprep.subr.bf16.mxu0 0
  %337 = vmatpush1.bf16.msra.mxu0 %v260
  %338 = vmatprep.subr.bf16.mxu0 0
  %339 = vmatpush1.bf16.msra.mxu0 %v261
  %340 = vmatprep.subr.bf16.mxu0 0
  %341 = vmatpush1.bf16.msra.mxu0 %v262
  %342 = vmatprep.subr.bf16.mxu0 0
  %343 = vmatpush1.bf16.msra.mxu0 %v263
  %344 = vmatprep.mubr.bf16.mxu0 %v113
  %345 = vmatmul.mubr.bf16.gmra.mrb[0].mxu0 %v112
  %v346 = vpop.f32.mrb[0].mxu0
  %v347 = vadd.f32 0.0, %v346
  %v348 = vpop.f32.mrb[0].mxu0
  %v349 = vpop.f32.mrb[0].mxu0
  %v350 = vadd.f32 0.0, %v349
  %v351 = vpop.f32.mrb[0].mxu0
  %352 = vdwg.mxu0
  %353 = vmatprep.subr.bf16.mxu0 0
  %354 = vmatpush1.bf16.msra.mxu0 %v264
  %355 = vmatprep.subr.bf16.mxu0 0
  %356 = vmatpush1.bf16.msra.mxu0 %v265
  %357 = vmatprep.subr.bf16.mxu0 0
  %358 = vmatpush1.bf16.msra.mxu0 %v266
  %359 = vmatprep.subr.bf16.mxu0 0
  %360 = vmatpush1.bf16.msra.mxu0 %v267
  %361 = vmatprep.subr.bf16.mxu0 0
  %362 = vmatpush1.bf16.msra.mxu0 %v268
  %363 = vmatprep.subr.bf16.mxu0 0
  %364 = vmatpush1.bf16.msra.mxu0 %v269
  %365 = vmatprep.subr.bf16.mxu0 0
  %366 = vmatpush1.bf16.msra.mxu0 %v270
  %367 = vmatprep.subr.bf16.mxu0 0
  %368 = vmatpush1.bf16.msra.mxu0 %v271
  %369 = vmatprep.subr.bf16.mxu0 0
  %370 = vmatpush1.bf16.msra.mxu0 %v272
  %371 = vmatprep.subr.bf16.mxu0 0
  %372 = vmatpush1.bf16.msra.mxu0 %v273
  %373 = vmatprep.subr.bf16.mxu0 0
  %374 = vmatpush1.bf16.msra.mxu0 %v274
  %375 = vmatprep.subr.bf16.mxu0 0
  %376 = vmatpush1.bf16.msra.mxu0 %v275
  %377 = vmatprep.subr.bf16.mxu0 0
  %378 = vmatpush1.bf16.msra.mxu0 %v276
  %379 = vmatprep.subr.bf16.mxu0 0
  %380 = vmatpush1.bf16.msra.mxu0 %v277
  %381 = vmatprep.subr.bf16.mxu0 0
  %382 = vmatpush1.bf16.msra.mxu0 %v278
  %383 = vmatprep.subr.bf16.mxu0 0
  %384 = vmatpush1.bf16.msra.mxu0 %v279
  %385 = vmatprep.mubr.bf16.mxu0 %v115
  %386 = vmatmul.mubr.bf16.gmra.mrb[0].mxu0 %v114
  %v387 = vpop.f32.mrb[0].mxu0
  %v388 = vadd.f32 %v347, %v387
  %v389 = vpop.f32.mrb[0].mxu0
  %v390 = vpop.f32.mrb[0].mxu0
  %v391 = vadd.f32 %v350, %v390
  %v392 = vpop.f32.mrb[0].mxu0
  %393 = vdwg.mxu0
  %v394 = vadd.f32 %v30, %v388
  %v395 = vadd.f32 %v31, %v391
  %396 = vst [vmem:[#allocation2] sm:$0xff] %v394
  %397 = vst [vmem:[#allocation2 + $0x8] sm:$0xff] %v395
  // Predicated region
  $region30: #{transformer_decoder_layer.17} parent=0 // pred_check
    %p398 = pneg %p24
  $region31: #{transformer_decoder_layer.17} parent=0 // pred_check_branch
    %400 = sbr.rel (%p398) target = $region33
  $region32: #{transformer_decoder_layer.17} parent=0 // pred_region
    %v401 = vld [vmem:[#allocation2] sm:$0xff]
    %v402 = vld [vmem:[#allocation2 + $0x8] sm:$0xff]
    %v403 = vld [vmem:[%s2] sm:$0x1]
    %v405 = vlaneseq
    %v406 = vshrl.u32 %v405, 7
    %v407 = vsub.s32 0, %v406
    %v408 = vrot.slane %v403, %v407
    %v410 = vadd.f32 %v401, %v408
    %v411 = vadd.f32 %v402, %v408
    %v412 = vld [vmem:[%s3] sm:$0xff]
    %v413 = vld [vmem:[%s3 + $0x8] sm:$0xff]
    %v414 = vadd.f32 %v410, %v412
    %v415 = vadd.f32 %v411, %v413
    %416 = vadd.xlane.f32.xlu0 %v414
    %v417 = vpop.xlane.xlu0 %416
    %418 = vadd.xlane.f32.xlu0 %v415
    %v419 = vpop.xlane.xlu0 %418
    %v420 = vrcp.pop 128.0
    %v421 = vmul.f32 %v417, %v420
    %v422 = vmul.f32 %v419, %v420
    %v423 = vsub.f32 %v414, %v421
    %v424 = vsub.f32 %v415, %v422
    %v425 = vmul.f32 %v423, %v423
    %v426 = vmul.f32 %v424, %v424
    %427 = vadd.xlane.f32.xlu0 %v425
    %v428 = vpop.xlane.xlu0 %427
    %429 = vadd.xlane.f32.xlu0 %v426
    %v430 = vpop.xlane.xlu0 %429
    %v431 = vmul.f32 %v428, %v420
    %v432 = vmul.f32 %v430, %v420
    %v433 = vadd.f32 %v431, 1e-05
    %v434 = vadd.f32 %v432, 1e-05
    %v435 = vrsqrt.pop %v433
    %v436 = vrsqrt.pop %v434
    %v437 = vmul.f32 %v423, %v435
    %v438 = vmul.f32 %v424, %v436
    %v439 = vld [vmem:[%s4] sm:$0x1]
    %v441 = vlaneseq
    %v442 = vshrl.u32 %v441, 7
    %v443 = vsub.s32 0, %v442
    %v444 = vrot.slane %v439, %v443
    %v446 = vmul.f32 %v437, %v444
    %v447 = vmul.f32 %v438, %v444
    %v448 = vld [vmem:[%s5] sm:$0x1]
    %v450 = vlaneseq
    %v451 = vshrl.u32 %v450, 7
    %v452 = vsub.s32 0, %v451
    %v453 = vrot.slane %v448, %v452
    %v455 = vadd.f32 %v446, %v453
    %v456 = vadd.f32 %v447, %v453
    %457 = vst [vmem:[%s6] sm:$0xff] %v455
    %458 = vst [vmem:[%s6 + $0x8] sm:$0xff] %v456
  $region33: #{transformer_decoder_layer.17} parent=0 // pred_fallthru
    _
  // Predicated region
  $region34: #{transformer_decoder_layer.17} parent=0 // pred_check
    _
  $region35: #{transformer_decoder_layer.17} parent=0 // pred_check_branch
    %460 = sbr.rel (0) target = $region37
  $region36: #{transformer_decoder_layer.17} parent=0 // pred_region
    _
  $region37: #{transformer_decoder_layer.17} parent=0 // pred_fallthru
    _
  // Predicated region
  $region38: #{transformer_decoder_layer.17} parent=0 // pred_check
    _
  $region39: #{transformer_decoder_layer.17} parent=0 // pred_check_branch
    %462 = sbr.rel (0) target = $region41
  $region40: #{transformer_decoder_layer.17} parent=0 // pred_region
    _
  $region41: #{transformer_decoder_layer.17} parent=0 // pred_fallthru
    _

</llo_original>
